<compile_context>
chip_gen: v7x
topology: tpu7x:2x2x1
jax: 0.10.0
libtpu: 0.0.40
codegen_flags: <defaults>
</compile_context>

<pallas_src>
import jax
import jax.numpy as jnp
from jax.experimental import pallas as pl
from jax.experimental.pallas import tpu as pltpu


def _make_mlp_kernel(num_layers):
    """Fused MLP kernel: (Linear + ReLU) x (num_layers-1), then dot-with-row + sigmoid."""

    def kernel(*refs):
        x_ref = refs[0]
        o_ref = refs[-1]
        wb = refs[1:-1]  # alternating weight / bias refs, 2 per layer

        # In-kernel cast: avoids a standalone XLA cast (extra full HBM pass over x).
        h = x_ref[...].astype(jnp.bfloat16)  # [block_b, in_dim]
        for l in range(num_layers - 1):
            w = wb[2 * l][...]        # bf16 [in_l, out_l]
            b = wb[2 * l + 1][...]    # f32  [1, out_l]
            z = jnp.dot(h, w, preferred_element_type=jnp.float32) + b
            # bf16 ReLU: packed VALU on v6e/v7x; numerically identical to max-then-cast.
            h = jnp.maximum(z.astype(jnp.bfloat16), 0)

        # Last layer has out_features = 1: VPU multiply + cross-lane reduce (fp32) instead
        # of a 1/256-utilization MXU pass.
        w_last = wb[2 * (num_layers - 1)][...]      # f32 [1, hidden]
        b_last = wb[2 * (num_layers - 1) + 1][...]  # f32 [1, 1]
        logits = jnp.sum(h.astype(jnp.float32) * w_last, axis=-1) + b_last[0, 0]  # [block_b]
        # Lane-dense store: batch lands on the lane axis of the (1, block_b) output block.
        o_ref[...] = jax.nn.sigmoid(logits)[None, :].astype(o_ref.dtype)

    return kernel


def mlp_pallas(x, weights, biases, *, block_b=1024):
    """x: [B, mapping_size]; weights[l]: [in_l, out_l] (pre-transposed); biases[l]: [1, out_l]."""
    B, in_dim = x.shape
    num_layers = len(weights)
    assert num_layers >= 2, "this kernel expects depth >= 2"
    hidden = weights[-1].shape[0]

    # ---- Grid sizing: no batch padding, no even-grid round-up. ----
    # Pallas handles a ragged last block (masked output store); rows are independent so the
    # garbage tail rows of the last input block never contaminate valid outputs.
    if B >= 256:
        block_b = max(128, (block_b // 128) * 128)                        # lane-dense out blocks
        block_b = min(block_b, ((pl.cdiv(B, 2) + 127) // 128) * 128)      # keep nb >= 2 (v7x: 2 TCs)
    else:
        block_b = B                                                        # single whole-batch block
    nb = pl.cdiv(B, block_b)

    # Weights/biases: cast once here (not per grid step); resident in VMEM across the grid.
    wb_args, wb_specs = [], []
    for l in range(num_layers - 1):
        w = weights[l].astype(jnp.bfloat16)   # [in, out] for y = x @ W
        b = biases[l].astype(jnp.float32)     # [1, out], bias add stays fp32
        wb_args += [w, b]
        wb_specs += [
            pl.BlockSpec(w.shape, lambda i: (0, 0)),
            pl.BlockSpec(b.shape, lambda i: (0, 0)),
        ]
    # Final layer: (hidden, 1) weight stored as a fp32 (1, hidden) row for the VPU path.
    w_last = weights[-1].reshape(1, hidden).astype(jnp.float32)
    b_last = biases[-1].reshape(1, 1).astype(jnp.float32)
    wb_args += [w_last, b_last]
    wb_specs += [
        pl.BlockSpec(w_last.shape, lambda i: (0, 0)),
        pl.BlockSpec(b_last.shape, lambda i: (0, 0)),
    ]
    # TODO(synk): if VMEM gets tight on v7x at very large block_b/mapping_size, mark the
    # constant-index weight/bias specs with pipeline_mode=pl.Buffered(1) to skip their
    # double buffer.

    # VMEM budget: double-buffered x block + resident weights + fp32 working set, clamped to
    # 48 MiB so it stays inside v7x's 64 MiB physical VMEM (v5e/v6e have 128 MiB).
    x_blk_bytes = block_b * in_dim * x.dtype.itemsize
    w_bytes = sum(int(a.size) * a.dtype.itemsize for a in wb_args)
    work_bytes = block_b * max(in_dim, hidden) * 4 * 4
    vmem_limit = int(min(48 * 1024 * 1024,
                         max(32 * 1024 * 1024,
                             2 * x_blk_bytes + 2 * w_bytes + work_bytes)))

    out = pl.pallas_call(
        _make_mlp_kernel(num_layers),
        out_shape=jax.ShapeDtypeStruct((1, B), jnp.float32),
        grid_spec=pl.GridSpec(
            grid=(nb,),
            in_specs=[pl.BlockSpec((block_b, in_dim), lambda i: (i, 0))] + wb_specs,
            out_specs=pl.BlockSpec((1, block_b), lambda i: (0, i)),
        ),
        compiler_params=pltpu.CompilerParams(
            dimension_semantics=("parallel",),
            vmem_limit_bytes=vmem_limit,
        ),
    )(x, *wb_args)

    return out[0, :].reshape(B, 1)


def init_mlp_params(key, depth, mapping_size, hidden_size):
    """PyTorch-Linear-style init; weights stored as [in, out] (transposed for x @ W)."""
    dims = [mapping_size] + [hidden_size] * (depth - 1) + [1]
    weights, biases = [], []
    for l in range(depth):
        fan_in, fan_out = dims[l], dims[l + 1]
        key, kw, kb = jax.random.split(key, 3)
        bound = 1.0 / jnp.sqrt(fan_in)
        w = jax.random.uniform(kw, (fan_in, fan_out), jnp.float32, -bound, bound)
        b = jax.random.uniform(kb, (1, fan_out), jnp.float32, -bound, bound)
        weights.append(w)
        biases.append(b)
    return weights, biases


def mlp_reference(x, weights, biases):
    h = x
    for l, (w, b) in enumerate(zip(weights, biases)):
        h = h @ w + b
        if l < len(weights) - 1:
            h = jnp.maximum(h, 0.0)
    return jax.nn.sigmoid(h)


if __name__ == "__main__":
    # Small shapes consistent with the module (defaults mapping_size=1024, hidden=256,
    # depth=3), shrunk for the demo.  With batch=512 the grid-sizing logic yields
    # block_b=256 and a 2-step parallel grid (both v7x TensorCores get work).
    depth, mapping_size, hidden_size = 3, 256, 128
    batch = 512

    key = jax.random.PRNGKey(0)
    key, kx = jax.random.split(key)
    x = jax.random.normal(kx, (batch, mapping_size), jnp.float32)

    weights, biases = init_mlp_params(key, depth, mapping_size, hidden_size)

    out = mlp_pallas(x, weights, biases)
    out = jax.block_until_ready(out)

    ref = mlp_reference(x, weights, biases)  # fp32 reference
    assert out.shape == (batch, 1)
    max_err = float(jnp.max(jnp.abs(out - ref)))
    # bf16 MXU operands (fp32 accumulation) -> looser tolerance than a pure-fp32 version.
    assert max_err < 2e-2, max_err
    print("KERNEL_OK")
</pallas_src>

<mosaic_0001>
module attributes {stable_mosaic.version = 11 : i64} {
  func.func @kernel(%arg0: i32, %arg1: memref<256x256xf32, #tpu.memory_space<vmem>>, %arg2: memref<256x128xbf16, #tpu.memory_space<vmem>>, %arg3: memref<1x128xf32, #tpu.memory_space<vmem>>, %arg4: memref<128x128xbf16, #tpu.memory_space<vmem>>, %arg5: memref<1x128xf32, #tpu.memory_space<vmem>>, %arg6: memref<1x128xf32, #tpu.memory_space<vmem>>, %arg7: memref<1x1xf32, #tpu.memory_space<vmem>>, %arg8: memref<1x256xf32, #tpu.memory_space<vmem>>) attributes {dimension_semantics = [#tpu.dimension_semantics<parallel>], iteration_bounds = array<i64: 2>, scalar_prefetch = 0 : i64, scratch_operands = 0 : i64, tpu.core_type = #tpu.core_type<tc>, window_params = [{transform_indices = @transform_0, window_bounds = array<i64: 256, 256>}, {pipeline_mode = #tpu.pipeline_mode<synchronous>, transform_indices = @transform_1, window_bounds = array<i64: 256, 128>}, {pipeline_mode = #tpu.pipeline_mode<synchronous>, transform_indices = @transform_2, window_bounds = array<i64: 1, 128>}, {pipeline_mode = #tpu.pipeline_mode<synchronous>, transform_indices = @transform_3, window_bounds = array<i64: 128, 128>}, {pipeline_mode = #tpu.pipeline_mode<synchronous>, transform_indices = @transform_4, window_bounds = array<i64: 1, 128>}, {pipeline_mode = #tpu.pipeline_mode<synchronous>, transform_indices = @transform_5, window_bounds = array<i64: 1, 128>}, {pipeline_mode = #tpu.pipeline_mode<synchronous>, transform_indices = @transform_6, window_bounds = array<i64: 1, 1>}, {transform_indices = @transform_7, window_bounds = array<i64: 1, 256>}]} {
    %c0 = arith.constant 0 : index
    %c0_0 = arith.constant 0 : index
    %0 = vector.load %arg1[%c0, %c0_0] : memref<256x256xf32, #tpu.memory_space<vmem>>, vector<256x256xf32>
    %1 = arith.truncf %0 : vector<256x256xf32> to vector<256x256xbf16>
    %c0_1 = arith.constant 0 : index
    %c0_2 = arith.constant 0 : index
    %2 = vector.load %arg2[%c0_1, %c0_2] : memref<256x128xbf16, #tpu.memory_space<vmem>>, vector<256x128xbf16>
    %c0_3 = arith.constant 0 : index
    %c0_4 = arith.constant 0 : index
    %3 = vector.load %arg3[%c0_3, %c0_4] : memref<1x128xf32, #tpu.memory_space<vmem>>, vector<1x128xf32>
    %cst = arith.constant dense<0.000000e+00> : vector<256x128xf32>
    %4 = tpu.matmul %1, %2, %cst {dimension_numbers = #tpu.dot_dimension_numbers<[1], [0], [0], [1], [0, 0, 1, 1], [], []>} : vector<256x256xbf16>, vector<256x128xbf16>, vector<256x128xf32> -> vector<256x128xf32>
    %5 = vector.broadcast %3 : vector<1x128xf32> to vector<256x128xf32>
    %6 = arith.addf %4, %5 : vector<256x128xf32>
    %7 = arith.truncf %6 : vector<256x128xf32> to vector<256x128xbf16>
    %cst_5 = arith.constant 0.000000e+00 : bf16
    %8 = vector.broadcast %cst_5 : bf16 to vector<256x128xbf16>
    %9 = arith.maximumf %7, %8 : vector<256x128xbf16>
    %c0_6 = arith.constant 0 : index
    %c0_7 = arith.constant 0 : index
    %10 = vector.load %arg4[%c0_6, %c0_7] : memref<128x128xbf16, #tpu.memory_space<vmem>>, vector<128x128xbf16>
    %c0_8 = arith.constant 0 : index
    %c0_9 = arith.constant 0 : index
    %11 = vector.load %arg5[%c0_8, %c0_9] : memref<1x128xf32, #tpu.memory_space<vmem>>, vector<1x128xf32>
    %cst_10 = arith.constant dense<0.000000e+00> : vector<256x128xf32>
    %12 = tpu.matmul %9, %10, %cst_10 {dimension_numbers = #tpu.dot_dimension_numbers<[1], [0], [0], [1], [0, 0, 1, 1], [], []>} : vector<256x128xbf16>, vector<128x128xbf16>, vector<256x128xf32> -> vector<256x128xf32>
    %13 = vector.broadcast %11 : vector<1x128xf32> to vector<256x128xf32>
    %14 = arith.addf %12, %13 : vector<256x128xf32>
    %15 = arith.truncf %14 : vector<256x128xf32> to vector<256x128xbf16>
    %cst_11 = arith.constant 0.000000e+00 : bf16
    %16 = vector.broadcast %cst_11 : bf16 to vector<256x128xbf16>
    %17 = arith.maximumf %15, %16 : vector<256x128xbf16>
    %c0_12 = arith.constant 0 : index
    %c0_13 = arith.constant 0 : index
    %18 = vector.load %arg6[%c0_12, %c0_13] : memref<1x128xf32, #tpu.memory_space<vmem>>, vector<1x128xf32>
    %c0_14 = arith.constant 0 : index
    %c0_15 = arith.constant 0 : index
    %19 = vector.load %arg7[%c0_14, %c0_15] : memref<1x1xf32, #tpu.memory_space<vmem>>, vector<1x1xf32>
    %20 = arith.extf %17 : vector<256x128xbf16> to vector<256x128xf32>
    %21 = vector.broadcast %18 : vector<1x128xf32> to vector<256x128xf32>
    %22 = arith.mulf %20, %21 : vector<256x128xf32>
    %cst_16 = arith.constant dense<0.000000e+00> : vector<256xf32>
    %23 = vector.multi_reduction <add>, %22, %cst_16 [1] : vector<256x128xf32> to vector<256xf32>
    %24 = vector.extract %19[0, 0] : f32 from vector<1x1xf32>
    %25 = vector.broadcast %24 : f32 to vector<256xf32>
    %26 = arith.addf %23, %25 : vector<256xf32>
    %27 = arith.negf %26 : vector<256xf32>
    %28 = math.exp %27 : vector<256xf32>
    %cst_17 = arith.constant 1.000000e+00 : f32
    %29 = vector.broadcast %cst_17 : f32 to vector<256xf32>
    %30 = arith.addf %29, %28 : vector<256xf32>
    %31 = arith.divf %29, %30 : vector<256xf32>
    %32 = vector.shape_cast %31 : vector<256xf32> to vector<1x256xf32>
    %c0_18 = arith.constant 0 : index
    %c0_19 = arith.constant 0 : index
    %33 = vector.load %arg8[%c0_18, %c0_19] : memref<1x256xf32, #tpu.memory_space<vmem>>, vector<1x256xf32>
    tpu.vector_store %arg8[%c0_18, %c0_19], %32 {strides = array<i32>} : memref<1x256xf32, #tpu.memory_space<vmem>>, vector<1x256xf32>,
    return
  }
  func.func @transform_0(%arg0: i32) -> (i32, i32) {
    %c0_i32 = arith.constant 0 : i32
    %c0_i32_0 = arith.constant 0 : i32
    return %arg0, %c0_i32 : i32, i32
  }
  func.func @transform_1(%arg0: i32) -> (i32, i32) {
    %c0_i32 = arith.constant 0 : i32
    %c0_i32_0 = arith.constant 0 : i32
    %c0_i32_1 = arith.constant 0 : i32
    return %c0_i32, %c0_i32_0 : i32, i32
  }
  func.func @transform_2(%arg0: i32) -> (i32, i32) {
    %c0_i32 = arith.constant 0 : i32
    %c0_i32_0 = arith.constant 0 : i32
    %c0_i32_1 = arith.constant 0 : i32
    return %c0_i32, %c0_i32_0 : i32, i32
  }
  func.func @transform_3(%arg0: i32) -> (i32, i32) {
    %c0_i32 = arith.constant 0 : i32
    %c0_i32_0 = arith.constant 0 : i32
    %c0_i32_1 = arith.constant 0 : i32
    return %c0_i32, %c0_i32_0 : i32, i32
  }
  func.func @transform_4(%arg0: i32) -> (i32, i32) {
    %c0_i32 = arith.constant 0 : i32
    %c0_i32_0 = arith.constant 0 : i32
    %c0_i32_1 = arith.constant 0 : i32
    return %c0_i32, %c0_i32_0 : i32, i32
  }
  func.func @transform_5(%arg0: i32) -> (i32, i32) {
    %c0_i32 = arith.constant 0 : i32
    %c0_i32_0 = arith.constant 0 : i32
    %c0_i32_1 = arith.constant 0 : i32
    return %c0_i32, %c0_i32_0 : i32, i32
  }
  func.func @transform_6(%arg0: i32) -> (i32, i32) {
    %c0_i32 = arith.constant 0 : i32
    %c0_i32_0 = arith.constant 0 : i32
    %c0_i32_1 = arith.constant 0 : i32
    return %c0_i32, %c0_i32_0 : i32, i32
  }
  func.func @transform_7(%arg0: i32) -> (i32, i32) {
    %c0_i32 = arith.constant 0 : i32
    %c0_i32_0 = arith.constant 0 : i32
    return %c0_i32, %arg0 : i32, i32
  }
}

</mosaic_0001>

<llo_original>
// kernel: tpu_custom_call.1
$region0: #{tpu_custom_call.1}
  #allocation0 [shape = 'u32[]', space=smem, size = 0x4, offset = 0x4, fixed_abs, tag = 'smem constant byte address 0x4 - core index']
  #allocation1 [shape = 'u32[144,128]{1,0:T(1,128)}', space=vmem, size = 0x12000, scoped, tag = 'internal scratch']
  #allocation2 [shape = 'f32[1,1]{1,0:T(1,128)S(1)}', space=vmem, size = 0x200, scoped, tag = 'scoped memory for tpu_custom_call.1']
  %s0 = inlined_call_operand.hbm [shape: f32[512,256], index: 0, kind: input, shape index: {}]
  %s1 = inlined_call_operand.hbm [shape: bf16[256,128], index: 1, kind: input, shape index: {}]
  %s2 = inlined_call_operand.vmem [shape: f32[1,128], index: 2, kind: input, shape index: {}]
  %s3 = inlined_call_operand.hbm [shape: bf16[128,128], index: 3, kind: input, shape index: {}]
  %s4 = inlined_call_operand.vmem [shape: f32[1,128], index: 4, kind: input, shape index: {}]
  %s5 = inlined_call_operand.vmem [shape: f32[1,128], index: 5, kind: input, shape index: {}]
  %s6 = inlined_call_operand.<no memory space> [shape: f32[1,1], index: 6, kind: input, shape index: {}]
  %s7 = inlined_call_operand.hbm [shape: f32[1,512], index: 7, kind: output, shape index: {}]
  %s8 = sld [smem:[#allocation0]]
  $region73: #{tpu_custom_call.1} parent=0
    _
  %s10 = ssub.s32 1, %s8
  %s11 = scalar_select 0, %s10, %s8
  %v12 = vstv %s6
  %13 = vst [vmem:[#allocation2] sm:$0x1] %v12
  $region1: #{tpu_custom_call.1} parent=0
    #allocation3 [shape = 'u8[524288]{0}', space=vmem, size = 0x80000, scoped, tag = 'input window, operand 0']
    #allocation4 [shape = 's32[2]{0}', space=sflag, size = 0x8, scoped, tag = 'scoped memory for tpu_custom_call.1']
    #allocation5 [shape = 's32[2]{0}', space=sflag, size = 0x8, scoped, tag = 'scoped memory for tpu_custom_call.1']
    #allocation6 [shape = 'u8[65536]{0}', space=vmem, size = 0x10000, scoped, tag = 'input window, operand 1, single buffered']
    #allocation7 [shape = 's32[1]{0}', space=sflag, size = 0x4, scoped, tag = 'scoped memory for tpu_custom_call.1']
    #allocation8 [shape = 'u8[32768]{0}', space=vmem, size = 0x8000, scoped, tag = 'input window, operand 3, single buffered']
    #allocation9 [shape = 'u8[2048]{0}', space=vmem, size = 0x800, scoped, tag = 'output window, operand 0']
    %14 = vsyncpa [#allocation4], 0
    %s15 = scalar_lea.sflag [#allocation4], 1
    %16 = vsyncpa %s15, 0
    %17 = vsyncpa [#allocation7], 0
    %18 = vsyncpa [#allocation5], 0
    %s19 = scalar_lea.sflag [#allocation5], 1
    %20 = vsyncpa %s19, 0
    loop: start=0, step=1, limit=4
    $region2: #{tpu_custom_call.1} parent=1 // loop_pre_header
      _
    $region3: #{tpu_custom_call.1} parent=1 // loop_header
      %s22 = sphi 0, %s26
      %p23 = scmp.ge.s32.totalorder %s22, 4
      %s32 = sphi 0, %s34
      %s35 = sphi 0, %s32
      %s36 = sphi 0, %s35
      %s52 = sphi 0, %s36
      %s56 = sphi 0, %s56
      %s58 = sphi 0, %s56
      %s59 = sphi 0, %s58
      %s73 = sphi 0, %s59
      %s77 = sphi 0, %s77
      %s79 = sphi 0, %s77
      %s80 = sphi 0, %s79
      %s94 = sphi 0, %s80
      %s98 = sphi 0, %s98
      %s100 = sphi 0, %s98
      %s101 = sphi 0, %s100
      %s115 = sphi 0, %s101
      %s119 = sphi 0, %s119
      %s121 = sphi 0, %s119
      %s122 = sphi 0, %s121
      %s136 = sphi 0, %s122
      %s140 = sphi 0, %s140
      %s142 = sphi 0, %s140
      %s143 = sphi 0, %s142
      %s157 = sphi 0, %s143
      %s161 = sphi 0, %s161
      %s163 = sphi 0, %s161
      %s164 = sphi 0, %s163
      %s178 = sphi 0, %s164
      %s184 = sphi 0, %s186
      %s187 = sphi 0, %s184
      %s188 = sphi 0, %s187
      %s204 = sphi 0, %s188
    $region4: #{tpu_custom_call.1} parent=1 // loop_header_branch
      %25 = sbr.rel (%p23) target = $region8
    $region5: #{tpu_custom_call.1} parent=1 // loop_body
      %s27 = ssub.s32 %s22, 1
      %s28 = ssub.s32 %s22, 2
      %s29 = sadd.s32 %s22, 1
      %s30 = ssub.s32 %s22, %s29
      %p31 = scmp.eq.s32.totalorder %s30, 0
      %s33 = sadd.s32 %s32, 1
      %s34 = scalar_select %p31, %s32, %s33
      %p37 = pneg %p31
      %p38 = scmp.eq.s32.totalorder %s22, 1
      %p39 = por %p37, %p38
      %p40 = scmp.ne.s32.totalorder %s32, %s35
      %p41 = scmp.eq.s32.totalorder %s22, 0
      %p42 = por %p40, %p41
      %p43 = scmp.ne.s32.totalorder %s32, %s35
      %p44 = scmp.eq.s32.totalorder %s27, 1
      %p45 = por %p43, %p44
      %p46 = scmp.ne.s32.totalorder %s35, %s36
      %p47 = scmp.eq.s32.totalorder %s27, 0
      %p48 = por %p46, %p47
      %p49 = scmp.ne.s32.totalorder %s35, %s36
      %p50 = scmp.eq.s32.totalorder %s28, 1
      %p51 = por %p49, %p50
      %p53 = scmp.ne.s32.totalorder %s36, %s52
      %p54 = scmp.eq.s32.totalorder %s28, 0
      %p55 = por %p53, %p54
      %s57 = sadd.s32 %s56, 1
      %p60 = scmp.eq.s32.totalorder %s22, 1
      %p61 = scmp.ne.s32.totalorder %s56, %s58
      %p62 = scmp.eq.s32.totalorder %s22, 0
      %p63 = por %p61, %p62
      %p64 = scmp.ne.s32.totalorder %s56, %s58
      %p65 = scmp.eq.s32.totalorder %s27, 1
      %p66 = por %p64, %p65
      %p67 = scmp.ne.s32.totalorder %s58, %s59
      %p68 = scmp.eq.s32.totalorder %s27, 0
      %p69 = por %p67, %p68
      %p70 = scmp.ne.s32.totalorder %s58, %s59
      %p71 = scmp.eq.s32.totalorder %s28, 1
      %p72 = por %p70, %p71
      %p74 = scmp.ne.s32.totalorder %s59, %s73
      %p75 = scmp.eq.s32.totalorder %s28, 0
      %p76 = por %p74, %p75
      %s78 = sadd.s32 %s77, 1
      %p81 = scmp.eq.s32.totalorder %s22, 1
      %p82 = scmp.ne.s32.totalorder %s77, %s79
      %p83 = scmp.eq.s32.totalorder %s22, 0
      %p84 = por %p82, %p83
      %p85 = scmp.ne.s32.totalorder %s77, %s79
      %p86 = scmp.eq.s32.totalorder %s27, 1
      %p87 = por %p85, %p86
      %p88 = scmp.ne.s32.totalorder %s79, %s80
      %p89 = scmp.eq.s32.totalorder %s27, 0
      %p90 = por %p88, %p89
      %p91 = scmp.ne.s32.totalorder %s79, %s80
      %p92 = scmp.eq.s32.totalorder %s28, 1
      %p93 = por %p91, %p92
      %p95 = scmp.ne.s32.totalorder %s80, %s94
      %p96 = scmp.eq.s32.totalorder %s28, 0
      %p97 = por %p95, %p96
      %s99 = sadd.s32 %s98, 1
      %p102 = scmp.eq.s32.totalorder %s22, 1
      %p103 = scmp.ne.s32.totalorder %s98, %s100
      %p104 = scmp.eq.s32.totalorder %s22, 0
      %p105 = por %p103, %p104
      %p106 = scmp.ne.s32.totalorder %s98, %s100
      %p107 = scmp.eq.s32.totalorder %s27, 1
      %p108 = por %p106, %p107
      %p109 = scmp.ne.s32.totalorder %s100, %s101
      %p110 = scmp.eq.s32.totalorder %s27, 0
      %p111 = por %p109, %p110
      %p112 = scmp.ne.s32.totalorder %s100, %s101
      %p113 = scmp.eq.s32.totalorder %s28, 1
      %p114 = por %p112, %p113
      %p116 = scmp.ne.s32.totalorder %s101, %s115
      %p117 = scmp.eq.s32.totalorder %s28, 0
      %p118 = por %p116, %p117
      %s120 = sadd.s32 %s119, 1
      %p123 = scmp.eq.s32.totalorder %s22, 1
      %p124 = scmp.ne.s32.totalorder %s119, %s121
      %p125 = scmp.eq.s32.totalorder %s22, 0
      %p126 = por %p124, %p125
      %p127 = scmp.ne.s32.totalorder %s119, %s121
      %p128 = scmp.eq.s32.totalorder %s27, 1
      %p129 = por %p127, %p128
      %p130 = scmp.ne.s32.totalorder %s121, %s122
      %p131 = scmp.eq.s32.totalorder %s27, 0
      %p132 = por %p130, %p131
      %p133 = scmp.ne.s32.totalorder %s121, %s122
      %p134 = scmp.eq.s32.totalorder %s28, 1
      %p135 = por %p133, %p134
      %p137 = scmp.ne.s32.totalorder %s122, %s136
      %p138 = scmp.eq.s32.totalorder %s28, 0
      %p139 = por %p137, %p138
      %s141 = sadd.s32 %s140, 1
      %p144 = scmp.eq.s32.totalorder %s22, 1
      %p145 = scmp.ne.s32.totalorder %s140, %s142
      %p146 = scmp.eq.s32.totalorder %s22, 0
      %p147 = por %p145, %p146
      %p148 = scmp.ne.s32.totalorder %s140, %s142
      %p149 = scmp.eq.s32.totalorder %s27, 1
      %p150 = por %p148, %p149
      %p151 = scmp.ne.s32.totalorder %s142, %s143
      %p152 = scmp.eq.s32.totalorder %s27, 0
      %p153 = por %p151, %p152
      %p154 = scmp.ne.s32.totalorder %s142, %s143
      %p155 = scmp.eq.s32.totalorder %s28, 1
      %p156 = por %p154, %p155
      %p158 = scmp.ne.s32.totalorder %s143, %s157
      %p159 = scmp.eq.s32.totalorder %s28, 0
      %p160 = por %p158, %p159
      %s162 = sadd.s32 %s161, 1
      %p165 = scmp.eq.s32.totalorder %s22, 1
      %p166 = scmp.ne.s32.totalorder %s161, %s163
      %p167 = scmp.eq.s32.totalorder %s22, 0
      %p168 = por %p166, %p167
      %p169 = scmp.ne.s32.totalorder %s161, %s163
      %p170 = scmp.eq.s32.totalorder %s27, 1
      %p171 = por %p169, %p170
      %p172 = scmp.ne.s32.totalorder %s163, %s164
      %p173 = scmp.eq.s32.totalorder %s27, 0
      %p174 = por %p172, %p173
      %p175 = scmp.ne.s32.totalorder %s163, %s164
      %p176 = scmp.eq.s32.totalorder %s28, 1
      %p177 = por %p175, %p176
      %p179 = scmp.ne.s32.totalorder %s164, %s178
      %p180 = scmp.eq.s32.totalorder %s28, 0
      %p181 = por %p179, %p180
      %s182 = ssub.s32 %s22, %s29
      %p183 = scmp.eq.s32.totalorder %s182, 0
      %s185 = sadd.s32 %s184, 1
      %s186 = scalar_select %p183, %s184, %s185
      %p189 = pneg %p183
      %p190 = scmp.eq.s32.totalorder %s22, 1
      %p191 = por %p189, %p190
      %p192 = scmp.ne.s32.totalorder %s184, %s187
      %p193 = scmp.eq.s32.totalorder %s22, 0
      %p194 = por %p192, %p193
      %p195 = scmp.ne.s32.totalorder %s184, %s187
      %p196 = scmp.eq.s32.totalorder %s27, 1
      %p197 = por %p195, %p196
      %p198 = scmp.ne.s32.totalorder %s187, %s188
      %p199 = scmp.eq.s32.totalorder %s27, 0
      %p200 = por %p198, %p199
      %p201 = scmp.ne.s32.totalorder %s187, %s188
      %p202 = scmp.eq.s32.totalorder %s28, 1
      %p203 = por %p201, %p202
      %p205 = scmp.ne.s32.totalorder %s188, %s204
      %p206 = scmp.eq.s32.totalorder %s28, 0
      %p207 = por %p205, %p206
      %p208 = scmp.le.s32.totalorder 1, %s22
      %p209 = scmp.lt.s32.totalorder %s22, 3
      %p210 = pnand %p208, %p209
      %p211 = pneg %p210
      // Predicated region
      $region9: #{tpu_custom_call.1} parent=5 // pred_check
        _
      $region10: #{tpu_custom_call.1} parent=5 // pred_check_branch
        %213 = sbr.rel (%p210) target = $region12
      $region11: #{tpu_custom_call.1} parent=5 // pred_region
        %s214 = ssub.s32 %s22, 1
        // Predicated region
        $region13: #{tpu_custom_call.1} parent=11 // pred_check
          %p215 = pneg %p69
        $region14: #{tpu_custom_call.1} parent=11 // pred_check_branch
          %217 = sbr.rel (%p215) target = $region16
        $region15: #{tpu_custom_call.1} parent=11 // pred_region
          %s219 = ssub.s32 2048, 2048
          %220 = vsyncadd [#allocation7], %s219
          %s221 = sshll.u32 [#allocation6], 4
          %s222 = int_to_ptr.vmem [resolvable:$true] %s221
          %227 = dma.hbm_to_vmem [thread:$0]  %s1, 2048, %s222, [#allocation7], 64, 64, 4
        $region16: #{tpu_custom_call.1} parent=11 // pred_fallthru
          _
        // Predicated region
        $region17: #{tpu_custom_call.1} parent=11 // pred_check
          %p228 = pneg %p90
        $region18: #{tpu_custom_call.1} parent=11 // pred_check_branch
          %230 = sbr.rel (%p228) target = $region20
        $region19: #{tpu_custom_call.1} parent=11 // pred_region
          _
        $region20: #{tpu_custom_call.1} parent=11 // pred_fallthru
          _
        // Predicated region
        $region21: #{tpu_custom_call.1} parent=11 // pred_check
          %p231 = pneg %p111
        $region22: #{tpu_custom_call.1} parent=11 // pred_check_branch
          %233 = sbr.rel (%p231) target = $region24
        $region23: #{tpu_custom_call.1} parent=11 // pred_region
          %s235 = ssub.s32 1024, 1024
          %236 = vsyncadd [#allocation7], %s235
          %s237 = sshll.u32 [#allocation8], 4
          %s238 = int_to_ptr.vmem [resolvable:$true] %s237
          %243 = dma.hbm_to_vmem [thread:$0]  %s3, 1024, %s238, [#allocation7], 64, 64, 4
        $region24: #{tpu_custom_call.1} parent=11 // pred_fallthru
          _
        // Predicated region
        $region25: #{tpu_custom_call.1} parent=11 // pred_check
          %p244 = pneg %p132
        $region26: #{tpu_custom_call.1} parent=11 // pred_check_branch
          %246 = sbr.rel (%p244) target = $region28
        $region27: #{tpu_custom_call.1} parent=11 // pred_region
          _
        $region28: #{tpu_custom_call.1} parent=11 // pred_fallthru
          _
        // Predicated region
        $region29: #{tpu_custom_call.1} parent=11 // pred_check
          %p247 = pneg %p153
        $region30: #{tpu_custom_call.1} parent=11 // pred_check_branch
          %249 = sbr.rel (%p247) target = $region32
        $region31: #{tpu_custom_call.1} parent=11 // pred_region
          _
        $region32: #{tpu_custom_call.1} parent=11 // pred_fallthru
          _
        // Predicated region
        $region33: #{tpu_custom_call.1} parent=11 // pred_check
          %p250 = pneg %p174
        $region34: #{tpu_custom_call.1} parent=11 // pred_check_branch
          %252 = sbr.rel (%p250) target = $region36
        $region35: #{tpu_custom_call.1} parent=11 // pred_region
          _
        $region36: #{tpu_custom_call.1} parent=11 // pred_fallthru
          _
      $region12: #{tpu_custom_call.1} parent=5 // pred_fallthru
        _
      %p253 = scmp.lt.s32.totalorder %s22, 2
      // Predicated region
      $region37: #{tpu_custom_call.1} parent=5 // pred_check
        %p254 = pneg %p253
      $region38: #{tpu_custom_call.1} parent=5 // pred_check_branch
        %256 = sbr.rel (%p254) target = $region40
      $region39: #{tpu_custom_call.1} parent=5 // pred_region
        // Predicated region
        $region41: #{tpu_custom_call.1} parent=39 // pred_check
          %p257 = pneg %p42
        $region42: #{tpu_custom_call.1} parent=39 // pred_check_branch
          %259 = sbr.rel (%p257) target = $region44
        $region43: #{tpu_custom_call.1} parent=39 // pred_region
          %s260 = sand.u32 %s32, 1
          %s261 = scalar_lea.sflag [#allocation4], %s260
          %s262 = sand.u32 %s32, 1
          %s263 = smul.addr %s262, 512
          %s264 = scalar_lea.vmem [#allocation3], %s263
          %s265 = smul.u32 32, %s22
          %s267 = ssub.s32 8192, 8192
          %268 = vsyncadd %s261, %s267
          %s269 = smul.addr %s265, 2
          %s270 = smul.addr %s269, 128
          %s271 = scalar_lea.hbm %s0, %s270
          %s272 = sshll.u32 %s264, 4
          %s273 = int_to_ptr.vmem [resolvable:$true] %s272
          %278 = dma.hbm_to_vmem [thread:$0]  %s271, 8192, %s273, %s261, 256, 256, 16
        $region44: #{tpu_custom_call.1} parent=39 // pred_fallthru
          _
      $region40: #{tpu_custom_call.1} parent=5 // pred_fallthru
        _
      %p279 = scmp.le.s32.totalorder 1, %s22
      %p280 = scmp.lt.s32.totalorder %s22, 3
      %p281 = pnand %p279, %p280
      %p282 = pneg %p281
      // Predicated region
      $region45: #{tpu_custom_call.1} parent=5 // pred_check
        _
      $region46: #{tpu_custom_call.1} parent=5 // pred_check_branch
        %284 = sbr.rel (%p281) target = $region48
      $region47: #{tpu_custom_call.1} parent=5 // pred_region
        %s285 = ssub.s32 %s22, 1
        %s286 = sand.u32 %s35, 1
        %s287 = scalar_lea.sflag [#allocation4], %s286
        %s288 = sand.u32 %s35, 1
        %s289 = smul.addr %s288, 512
        %s290 = scalar_lea.vmem [#allocation3], %s289
        // Predicated region
        $region49: #{tpu_custom_call.1} parent=47 // pred_check
          %p291 = pneg %p48
        $region50: #{tpu_custom_call.1} parent=47 // pred_check_branch
          %293 = sbr.rel (%p291) target = $region52
        $region51: #{tpu_custom_call.1} parent=47 // pred_region
          %294 = dma.done %s287, 8192
        $region52: #{tpu_custom_call.1} parent=47 // pred_fallthru
          _
        // Predicated region
        $region53: #{tpu_custom_call.1} parent=47 // pred_check
          %p295 = pneg %p69
        $region54: #{tpu_custom_call.1} parent=47 // pred_check_branch
          %297 = sbr.rel (%p295) target = $region56
        $region55: #{tpu_custom_call.1} parent=47 // pred_region
          %298 = dma.done [#allocation7], 2048
        $region56: #{tpu_custom_call.1} parent=47 // pred_fallthru
          _
        // Predicated region
        $region57: #{tpu_custom_call.1} parent=47 // pred_check
          %p299 = pneg %p111
        $region58: #{tpu_custom_call.1} parent=47 // pred_check_branch
          %301 = sbr.rel (%p299) target = $region60
        $region59: #{tpu_custom_call.1} parent=47 // pred_region
          %302 = dma.done [#allocation7], 1024
        $region60: #{tpu_custom_call.1} parent=47 // pred_fallthru
          _
        %s303 = sand.u32 %s35, 1
        %s304 = scalar_lea.sflag [#allocation4], %s303
        %s305 = sand.u32 %s35, 1
        %s306 = smul.addr %s305, 512
        %s307 = scalar_lea.vmem [#allocation3], %s306
        %p308 = pneg %p48
        %p309 = pneg %p45
        %p310 = pneg %p69
        %p311 = pneg %p66
        %p312 = pneg %p90
        %p313 = pneg %p87
        %p314 = pneg %p111
        %p315 = pneg %p108
        %p316 = pneg %p132
        %p317 = pneg %p129
        %p318 = pneg %p153
        %p319 = pneg %p150
        %p320 = pneg %p174
        %p321 = pneg %p171
        %p322 = pneg %p200
        %p323 = pneg %p197
        %s324 = sand.u32 %s187, 1
        %s325 = scalar_lea.sflag [#allocation5], %s324
        %s326 = sand.u32 %s187, 1
        %s327 = smul.addr %s326, 2
        %s328 = scalar_lea.vmem [#allocation9], %s327
        %s329 = smul.u32 32, %s27
        %s330 = smul.u32 2, %s27
        %v332 = vld [vmem:[%s290] sm:$0xff]
        %v333 = vld [vmem:[%s290 + $0x8] sm:$0xff]
        %v334 = vld [vmem:[%s290 + $0x10] sm:$0xff]
        %v335 = vld [vmem:[%s290 + $0x18] sm:$0xff]
        %v336 = vld [vmem:[%s290 + $0x20] sm:$0xff]
        %v337 = vld [vmem:[%s290 + $0x28] sm:$0xff]
        %v338 = vld [vmem:[%s290 + $0x30] sm:$0xff]
        %v339 = vld [vmem:[%s290 + $0x38] sm:$0xff]
        %v340 = vld [vmem:[%s290 + $0x40] sm:$0xff]
        %v341 = vld [vmem:[%s290 + $0x48] sm:$0xff]
        %v342 = vld [vmem:[%s290 + $0x50] sm:$0xff]
        %v343 = vld [vmem:[%s290 + $0x58] sm:$0xff]
        %v344 = vld [vmem:[%s290 + $0x60] sm:$0xff]
        %v345 = vld [vmem:[%s290 + $0x68] sm:$0xff]
        %v346 = vld [vmem:[%s290 + $0x70] sm:$0xff]
        %v347 = vld [vmem:[%s290 + $0x78] sm:$0xff]
        %v348 = vld [vmem:[%s290 + $0x80] sm:$0xff]
        %v349 = vld [vmem:[%s290 + $0x88] sm:$0xff]
        %v350 = vld [vmem:[%s290 + $0x90] sm:$0xff]
        %v351 = vld [vmem:[%s290 + $0x98] sm:$0xff]
        %v352 = vld [vmem:[%s290 + $0xa0] sm:$0xff]
        %v353 = vld [vmem:[%s290 + $0xa8] sm:$0xff]
        %v354 = vld [vmem:[%s290 + $0xb0] sm:$0xff]
        %v355 = vld [vmem:[%s290 + $0xb8] sm:$0xff]
        %v356 = vld [vmem:[%s290 + $0xc0] sm:$0xff]
        %v357 = vld [vmem:[%s290 + $0xc8] sm:$0xff]
        %v358 = vld [vmem:[%s290 + $0xd0] sm:$0xff]
        %v359 = vld [vmem:[%s290 + $0xd8] sm:$0xff]
        %v360 = vld [vmem:[%s290 + $0xe0] sm:$0xff]
        %v361 = vld [vmem:[%s290 + $0xe8] sm:$0xff]
        %v362 = vld [vmem:[%s290 + $0xf0] sm:$0xff]
        %v363 = vld [vmem:[%s290 + $0xf8] sm:$0xff]
        %v364 = vld [vmem:[%s290 + $0x100] sm:$0xff]
        %v365 = vld [vmem:[%s290 + $0x108] sm:$0xff]
        %v366 = vld [vmem:[%s290 + $0x110] sm:$0xff]
        %v367 = vld [vmem:[%s290 + $0x118] sm:$0xff]
        %v368 = vld [vmem:[%s290 + $0x120] sm:$0xff]
        %v369 = vld [vmem:[%s290 + $0x128] sm:$0xff]
        %v370 = vld [vmem:[%s290 + $0x130] sm:$0xff]
        %v371 = vld [vmem:[%s290 + $0x138] sm:$0xff]
        %v372 = vld [vmem:[%s290 + $0x140] sm:$0xff]
        %v373 = vld [vmem:[%s290 + $0x148] sm:$0xff]
        %v374 = vld [vmem:[%s290 + $0x150] sm:$0xff]
        %v375 = vld [vmem:[%s290 + $0x158] sm:$0xff]
        %v376 = vld [vmem:[%s290 + $0x160] sm:$0xff]
        %v377 = vld [vmem:[%s290 + $0x168] sm:$0xff]
        %v378 = vld [vmem:[%s290 + $0x170] sm:$0xff]
        %v379 = vld [vmem:[%s290 + $0x178] sm:$0xff]
        %v380 = vld [vmem:[%s290 + $0x180] sm:$0xff]
        %v381 = vld [vmem:[%s290 + $0x188] sm:$0xff]
        %v382 = vld [vmem:[%s290 + $0x190] sm:$0xff]
        %v383 = vld [vmem:[%s290 + $0x198] sm:$0xff]
        %v384 = vld [vmem:[%s290 + $0x1a0] sm:$0xff]
        %v385 = vld [vmem:[%s290 + $0x1a8] sm:$0xff]
        %v386 = vld [vmem:[%s290 + $0x1b0] sm:$0xff]
        %v387 = vld [vmem:[%s290 + $0x1b8] sm:$0xff]
        %v388 = vld [vmem:[%s290 + $0x1c0] sm:$0xff]
        %v389 = vld [vmem:[%s290 + $0x1c8] sm:$0xff]
        %v390 = vld [vmem:[%s290 + $0x1d0] sm:$0xff]
        %v391 = vld [vmem:[%s290 + $0x1d8] sm:$0xff]
        %v392 = vld [vmem:[%s290 + $0x1e0] sm:$0xff]
        %v393 = vld [vmem:[%s290 + $0x1e8] sm:$0xff]
        %v394 = vld [vmem:[%s290 + $0x1f0] sm:$0xff]
        %v395 = vld [vmem:[%s290 + $0x1f8] sm:$0xff]
        %v396 = vpack.c.bf16 %v334, %v332
        %v397 = vpack.c.bf16 %v335, %v333
        %v398 = vpack.c.bf16 %v338, %v336
        %v399 = vpack.c.bf16 %v339, %v337
        %v400 = vpack.c.bf16 %v342, %v340
        %v401 = vpack.c.bf16 %v343, %v341
        %v402 = vpack.c.bf16 %v346, %v344
        %v403 = vpack.c.bf16 %v347, %v345
        %v404 = vpack.c.bf16 %v350, %v348
        %v405 = vpack.c.bf16 %v351, %v349
        %v406 = vpack.c.bf16 %v354, %v352
        %v407 = vpack.c.bf16 %v355, %v353
        %v408 = vpack.c.bf16 %v358, %v356
        %v409 = vpack.c.bf16 %v359, %v357
        %v410 = vpack.c.bf16 %v362, %v360
        %v411 = vpack.c.bf16 %v363, %v361
        %v412 = vpack.c.bf16 %v366, %v364
        %v413 = vpack.c.bf16 %v367, %v365
        %v414 = vpack.c.bf16 %v370, %v368
        %v415 = vpack.c.bf16 %v371, %v369
        %v416 = vpack.c.bf16 %v374, %v372
        %v417 = vpack.c.bf16 %v375, %v373
        %v418 = vpack.c.bf16 %v378, %v376
        %v419 = vpack.c.bf16 %v379, %v377
        %v420 = vpack.c.bf16 %v382, %v380
        %v421 = vpack.c.bf16 %v383, %v381
        %v422 = vpack.c.bf16 %v386, %v384
        %v423 = vpack.c.bf16 %v387, %v385
        %v424 = vpack.c.bf16 %v390, %v388
        %v425 = vpack.c.bf16 %v391, %v389
        %v426 = vpack.c.bf16 %v394, %v392
        %v427 = vpack.c.bf16 %v395, %v393
        %v428 = vld [vmem:[#allocation6] sm:$0xf]
        %v429 = vld [vmem:[#allocation6 + $0x4] sm:$0xf]
        %v430 = vld [vmem:[#allocation6 + $0x8] sm:$0xf]
        %v431 = vld [vmem:[#allocation6 + $0xc] sm:$0xf]
        %v432 = vld [vmem:[#allocation6 + $0x10] sm:$0xf]
        %v433 = vld [vmem:[#allocation6 + $0x14] sm:$0xf]
        %v434 = vld [vmem:[#allocation6 + $0x18] sm:$0xf]
        %v435 = vld [vmem:[#allocation6 + $0x1c] sm:$0xf]
        %v436 = vld [vmem:[#allocation6 + $0x20] sm:$0xf]
        %v437 = vld [vmem:[#allocation6 + $0x24] sm:$0xf]
        %v438 = vld [vmem:[#allocation6 + $0x28] sm:$0xf]
        %v439 = vld [vmem:[#allocation6 + $0x2c] sm:$0xf]
        %v440 = vld [vmem:[#allocation6 + $0x30] sm:$0xf]
        %v441 = vld [vmem:[#allocation6 + $0x34] sm:$0xf]
        %v442 = vld [vmem:[#allocation6 + $0x38] sm:$0xf]
        %v443 = vld [vmem:[#allocation6 + $0x3c] sm:$0xf]
        %v444 = vld [vmem:[#allocation6 + $0x40] sm:$0xf]
        %v445 = vld [vmem:[#allocation6 + $0x44] sm:$0xf]
        %v446 = vld [vmem:[#allocation6 + $0x48] sm:$0xf]
        %v447 = vld [vmem:[#allocation6 + $0x4c] sm:$0xf]
        %v448 = vld [vmem:[#allocation6 + $0x50] sm:$0xf]
        %v449 = vld [vmem:[#allocation6 + $0x54] sm:$0xf]
        %v450 = vld [vmem:[#allocation6 + $0x58] sm:$0xf]
        %v451 = vld [vmem:[#allocation6 + $0x5c] sm:$0xf]
        %v452 = vld [vmem:[#allocation6 + $0x60] sm:$0xf]
        %v453 = vld [vmem:[#allocation6 + $0x64] sm:$0xf]
        %v454 = vld [vmem:[#allocation6 + $0x68] sm:$0xf]
        %v455 = vld [vmem:[#allocation6 + $0x6c] sm:$0xf]
        %v456 = vld [vmem:[#allocation6 + $0x70] sm:$0xf]
        %v457 = vld [vmem:[#allocation6 + $0x74] sm:$0xf]
        %v458 = vld [vmem:[#allocation6 + $0x78] sm:$0xf]
        %v459 = vld [vmem:[#allocation6 + $0x7c] sm:$0xf]
        %v460 = vld [vmem:[%s2] sm:$0x1]
        %v462 = vlaneseq
        %v463 = vshrl.u32 %v462, 7
        %v464 = vsub.s32 0, %v463
        %v465 = vrot.slane %v460, %v464
        %v499 = vunpack.c.l.b16 %v428
        %v500 = vunpack.c.l.b16 %v429
        %v501 = vunpack.c.l.b16 %v430
        %v502 = vunpack.c.l.b16 %v431
        %v503 = vunpack.c.l.b16 %v432
        %v504 = vunpack.c.l.b16 %v433
        %v505 = vunpack.c.l.b16 %v434
        %v506 = vunpack.c.l.b16 %v435
        %v507 = vunpack.c.l.b16 %v436
        %v508 = vunpack.c.l.b16 %v437
        %v509 = vunpack.c.l.b16 %v438
        %v510 = vunpack.c.l.b16 %v439
        %v511 = vunpack.c.l.b16 %v440
        %v512 = vunpack.c.l.b16 %v441
        %v513 = vunpack.c.l.b16 %v442
        %v514 = vunpack.c.l.b16 %v443
        %v515 = vunpack.c.l.b16 %v444
        %v516 = vunpack.c.l.b16 %v445
        %v517 = vunpack.c.l.b16 %v446
        %v518 = vunpack.c.l.b16 %v447
        %v519 = vunpack.c.l.b16 %v448
        %v520 = vunpack.c.l.b16 %v449
        %v521 = vunpack.c.l.b16 %v450
        %v522 = vunpack.c.l.b16 %v451
        %v523 = vunpack.c.l.b16 %v452
        %v524 = vunpack.c.l.b16 %v453
        %v525 = vunpack.c.l.b16 %v454
        %v526 = vunpack.c.l.b16 %v455
        %v527 = vunpack.c.l.b16 %v456
        %v528 = vunpack.c.l.b16 %v457
        %v529 = vunpack.c.l.b16 %v458
        %v530 = vunpack.c.l.b16 %v459
        %v531 = vpack.c.b16 %v500, %v499
        %v532 = vpack.c.b16 %v502, %v501
        %v533 = vpack.c.b16 %v504, %v503
        %v534 = vpack.c.b16 %v506, %v505
        %v535 = vpack.c.b16 %v508, %v507
        %v536 = vpack.c.b16 %v510, %v509
        %v537 = vpack.c.b16 %v512, %v511
        %v538 = vpack.c.b16 %v514, %v513
        %v539 = vpack.c.b16 %v516, %v515
        %v540 = vpack.c.b16 %v518, %v517
        %v541 = vpack.c.b16 %v520, %v519
        %v542 = vpack.c.b16 %v522, %v521
        %v543 = vpack.c.b16 %v524, %v523
        %v544 = vpack.c.b16 %v526, %v525
        %v545 = vpack.c.b16 %v528, %v527
        %v546 = vpack.c.b16 %v530, %v529
        %563 = vmatprep.subr.bf16.mxu0 0
        %564 = vmatpush1.bf16.msra.mxu0 %v531
        %565 = vmatprep.subr.bf16.mxu0 0
        %566 = vmatpush1.bf16.msra.mxu0 %v532
        %567 = vmatprep.subr.bf16.mxu0 0
        %568 = vmatpush1.bf16.msra.mxu0 %v533
        %569 = vmatprep.subr.bf16.mxu0 0
        %570 = vmatpush1.bf16.msra.mxu0 %v534
        %571 = vmatprep.subr.bf16.mxu0 0
        %572 = vmatpush1.bf16.msra.mxu0 %v535
        %573 = vmatprep.subr.bf16.mxu0 0
        %574 = vmatpush1.bf16.msra.mxu0 %v536
        %575 = vmatprep.subr.bf16.mxu0 0
        %576 = vmatpush1.bf16.msra.mxu0 %v537
        %577 = vmatprep.subr.bf16.mxu0 0
        %578 = vmatpush1.bf16.msra.mxu0 %v538
        %579 = vmatprep.subr.bf16.mxu0 0
        %580 = vmatpush1.bf16.msra.mxu0 %v539
        %581 = vmatprep.subr.bf16.mxu0 0
        %582 = vmatpush1.bf16.msra.mxu0 %v540
        %583 = vmatprep.subr.bf16.mxu0 0
        %584 = vmatpush1.bf16.msra.mxu0 %v541
        %585 = vmatprep.subr.bf16.mxu0 0
        %586 = vmatpush1.bf16.msra.mxu0 %v542
        %587 = vmatprep.subr.bf16.mxu0 0
        %588 = vmatpush1.bf16.msra.mxu0 %v543
        %589 = vmatprep.subr.bf16.mxu0 0
        %590 = vmatpush1.bf16.msra.mxu0 %v544
        %591 = vmatprep.subr.bf16.mxu0 0
        %592 = vmatpush1.bf16.msra.mxu0 %v545
        %593 = vmatprep.subr.bf16.mxu0 0
        %594 = vmatpush1.bf16.msra.mxu0 %v546
        %595 = vmatprep.mubr.bf16.mxu0 %v397
        %596 = vmatmul.mubr.bf16.gmra.mrb[0].mxu0 %v396
        %v597 = vpop.f32.mrb[0].mxu0
        %v598 = vadd.f32 %v465, %v597
        %v599 = vpop.f32.mrb[0].mxu0
        %v600 = vpop.f32.mrb[0].mxu0
        %v601 = vadd.f32 %v465, %v600
        %v602 = vpop.f32.mrb[0].mxu0
        %603 = vmatprep.mubr.bf16.mxu0 %v399
        %604 = vmatmul.mubr.bf16.gmra.mrb[0].mxu0 %v398
        %v605 = vpop.f32.mrb[0].mxu0
        %v606 = vadd.f32 %v465, %v605
        %v607 = vpop.f32.mrb[0].mxu0
        %v608 = vpop.f32.mrb[0].mxu0
        %v609 = vadd.f32 %v465, %v608
        %v610 = vpop.f32.mrb[0].mxu0
        %611 = vmatprep.mubr.bf16.mxu0 %v401
        %612 = vmatmul.mubr.bf16.gmra.mrb[0].mxu0 %v400
        %v613 = vpop.f32.mrb[0].mxu0
        %v614 = vadd.f32 %v465, %v613
        %v615 = vpop.f32.mrb[0].mxu0
        %v616 = vpop.f32.mrb[0].mxu0
        %v617 = vadd.f32 %v465, %v616
        %v618 = vpop.f32.mrb[0].mxu0
        %619 = vmatprep.mubr.bf16.mxu0 %v403
        %620 = vmatmul.mubr.bf16.gmra.mrb[0].mxu0 %v402
        %v621 = vpop.f32.mrb[0].mxu0
        %v622 = vadd.f32 %v465, %v621
        %v623 = vpop.f32.mrb[0].mxu0
        %v624 = vpop.f32.mrb[0].mxu0
        %v625 = vadd.f32 %v465, %v624
        %v626 = vpop.f32.mrb[0].mxu0
        %627 = vmatprep.mubr.bf16.mxu0 %v405
        %628 = vmatmul.mubr.bf16.gmra.mrb[0].mxu0 %v404
        %v629 = vpop.f32.mrb[0].mxu0
        %v630 = vadd.f32 %v465, %v629
        %v631 = vpop.f32.mrb[0].mxu0
        %v632 = vpop.f32.mrb[0].mxu0
        %v633 = vadd.f32 %v465, %v632
        %v634 = vpop.f32.mrb[0].mxu0
        %635 = vmatprep.mubr.bf16.mxu0 %v407
        %636 = vmatmul.mubr.bf16.gmra.mrb[0].mxu0 %v406
        %v637 = vpop.f32.mrb[0].mxu0
        %v638 = vadd.f32 %v465, %v637
        %v639 = vpop.f32.mrb[0].mxu0
        %v640 = vpop.f32.mrb[0].mxu0
        %v641 = vadd.f32 %v465, %v640
        %v642 = vpop.f32.mrb[0].mxu0
        %643 = vmatprep.mubr.bf16.mxu0 %v409
        %644 = vmatmul.mubr.bf16.gmra.mrb[0].mxu0 %v408
        %v645 = vpop.f32.mrb[0].mxu0
        %v646 = vadd.f32 %v465, %v645
        %v647 = vpop.f32.mrb[0].mxu0
        %v648 = vpop.f32.mrb[0].mxu0
        %v649 = vadd.f32 %v465, %v648
        %v650 = vpop.f32.mrb[0].mxu0
        %651 = vmatprep.mubr.bf16.mxu0 %v411
        %652 = vmatmul.mubr.bf16.gmra.mrb[0].mxu0 %v410
        %v653 = vpop.f32.mrb[0].mxu0
        %v654 = vadd.f32 %v465, %v653
        %v655 = vpop.f32.mrb[0].mxu0
        %v656 = vpop.f32.mrb[0].mxu0
        %v657 = vadd.f32 %v465, %v656
        %v658 = vpop.f32.mrb[0].mxu0
        %659 = vmatprep.mubr.bf16.mxu0 %v413
        %660 = vmatmul.mubr.bf16.gmra.mrb[0].mxu0 %v412
        %v661 = vpop.f32.mrb[0].mxu0
        %v662 = vadd.f32 %v465, %v661
        %v663 = vpop.f32.mrb[0].mxu0
        %v664 = vpop.f32.mrb[0].mxu0
        %v665 = vadd.f32 %v465, %v664
        %v666 = vpop.f32.mrb[0].mxu0
        %667 = vmatprep.mubr.bf16.mxu0 %v415
        %668 = vmatmul.mubr.bf16.gmra.mrb[0].mxu0 %v414
        %v669 = vpop.f32.mrb[0].mxu0
        %v670 = vadd.f32 %v465, %v669
        %v671 = vpop.f32.mrb[0].mxu0
        %v672 = vpop.f32.mrb[0].mxu0
        %v673 = vadd.f32 %v465, %v672
        %v674 = vpop.f32.mrb[0].mxu0
        %675 = vmatprep.mubr.bf16.mxu0 %v417
        %676 = vmatmul.mubr.bf16.gmra.mrb[0].mxu0 %v416
        %v677 = vpop.f32.mrb[0].mxu0
        %v678 = vadd.f32 %v465, %v677
        %v679 = vpop.f32.mrb[0].mxu0
        %v680 = vpop.f32.mrb[0].mxu0
        %v681 = vadd.f32 %v465, %v680
        %v682 = vpop.f32.mrb[0].mxu0
        %683 = vmatprep.mubr.bf16.mxu0 %v419
        %684 = vmatmul.mubr.bf16.gmra.mrb[0].mxu0 %v418
        %v685 = vpop.f32.mrb[0].mxu0
        %v686 = vadd.f32 %v465, %v685
        %v687 = vpop.f32.mrb[0].mxu0
        %v688 = vpop.f32.mrb[0].mxu0
        %v689 = vadd.f32 %v465, %v688
        %v690 = vpop.f32.mrb[0].mxu0
        %691 = vmatprep.mubr.bf16.mxu0 %v421
        %692 = vmatmul.mubr.bf16.gmra.mrb[0].mxu0 %v420
        %v693 = vpop.f32.mrb[0].mxu0
        %v694 = vadd.f32 %v465, %v693
        %v695 = vpop.f32.mrb[0].mxu0
        %v696 = vpop.f32.mrb[0].mxu0
        %v697 = vadd.f32 %v465, %v696
        %v698 = vpop.f32.mrb[0].mxu0
        %699 = vmatprep.mubr.bf16.mxu0 %v423
        %700 = vmatmul.mubr.bf16.gmra.mrb[0].mxu0 %v422
        %v701 = vpop.f32.mrb[0].mxu0
        %v702 = vadd.f32 %v465, %v701
        %v703 = vpop.f32.mrb[0].mxu0
        %v704 = vpop.f32.mrb[0].mxu0
        %v705 = vadd.f32 %v465, %v704
        %v706 = vpop.f32.mrb[0].mxu0
        %707 = vmatprep.mubr.bf16.mxu0 %v425
        %708 = vmatmul.mubr.bf16.gmra.mrb[0].mxu0 %v424
        %v709 = vpop.f32.mrb[0].mxu0
        %v710 = vadd.f32 %v465, %v709
        %v711 = vpop.f32.mrb[0].mxu0
        %v712 = vpop.f32.mrb[0].mxu0
        %v713 = vadd.f32 %v465, %v712
        %v714 = vpop.f32.mrb[0].mxu0
        %715 = vmatprep.mubr.bf16.mxu0 %v427
        %716 = vmatmul.mubr.bf16.gmra.mrb[0].mxu0 %v426
        %v717 = vpop.f32.mrb[0].mxu0
        %v718 = vadd.f32 %v465, %v717
        %v719 = vpop.f32.mrb[0].mxu0
        %v720 = vpop.f32.mrb[0].mxu0
        %v721 = vadd.f32 %v465, %v720
        %v722 = vpop.f32.mrb[0].mxu0
        %723 = vdwg.mxu0
        %v724 = vpack.c.bf16 %v601, %v598
        %v725 = vpack.c.bf16 %v609, %v606
        %v726 = vpack.c.bf16 %v617, %v614
        %v727 = vpack.c.bf16 %v625, %v622
        %v728 = vpack.c.bf16 %v633, %v630
        %v729 = vpack.c.bf16 %v641, %v638
        %v730 = vpack.c.bf16 %v649, %v646
        %v731 = vpack.c.bf16 %v657, %v654
        %v732 = vpack.c.bf16 %v665, %v662
        %v733 = vpack.c.bf16 %v673, %v670
        %v734 = vpack.c.bf16 %v681, %v678
        %v735 = vpack.c.bf16 %v689, %v686
        %v736 = vpack.c.bf16 %v697, %v694
        %v737 = vpack.c.bf16 %v705, %v702
        %v738 = vpack.c.bf16 %v713, %v710
        %v739 = vpack.c.bf16 %v721, %v718
        %v740 = vmax.bf16 %v724, 0
        %v741 = vmax.bf16 %v725, 0
        %v742 = vmax.bf16 %v726, 0
        %v743 = vmax.bf16 %v727, 0
        %v744 = vmax.bf16 %v728, 0
        %v745 = vmax.bf16 %v729, 0
        %v746 = vmax.bf16 %v730, 0
        %v747 = vmax.bf16 %v731, 0
        %v748 = vmax.bf16 %v732, 0
        %v749 = vmax.bf16 %v733, 0
        %v750 = vmax.bf16 %v734, 0
        %v751 = vmax.bf16 %v735, 0
        %v752 = vmax.bf16 %v736, 0
        %v753 = vmax.bf16 %v737, 0
        %v754 = vmax.bf16 %v738, 0
        %v755 = vmax.bf16 %v739, 0
        %v756 = vld [vmem:[#allocation8] sm:$0xf]
        %v757 = vld [vmem:[#allocation8 + $0x4] sm:$0xf]
        %v758 = vld [vmem:[#allocation8 + $0x8] sm:$0xf]
        %v759 = vld [vmem:[#allocation8 + $0xc] sm:$0xf]
        %v760 = vld [vmem:[#allocation8 + $0x10] sm:$0xf]
        %v761 = vld [vmem:[#allocation8 + $0x14] sm:$0xf]
        %v762 = vld [vmem:[#allocation8 + $0x18] sm:$0xf]
        %v763 = vld [vmem:[#allocation8 + $0x1c] sm:$0xf]
        %v764 = vld [vmem:[#allocation8 + $0x20] sm:$0xf]
        %v765 = vld [vmem:[#allocation8 + $0x24] sm:$0xf]
        %v766 = vld [vmem:[#allocation8 + $0x28] sm:$0xf]
        %v767 = vld [vmem:[#allocation8 + $0x2c] sm:$0xf]
        %v768 = vld [vmem:[#allocation8 + $0x30] sm:$0xf]
        %v769 = vld [vmem:[#allocation8 + $0x34] sm:$0xf]
        %v770 = vld [vmem:[#allocation8 + $0x38] sm:$0xf]
        %v771 = vld [vmem:[#allocation8 + $0x3c] sm:$0xf]
        %v772 = vld [vmem:[%s4] sm:$0x1]
        %v774 = vlaneseq
        %v775 = vshrl.u32 %v774, 7
        %v776 = vsub.s32 0, %v775
        %v777 = vrot.slane %v772, %v776
        %v795 = vunpack.c.l.b16 %v756
        %v796 = vunpack.c.l.b16 %v757
        %v797 = vunpack.c.l.b16 %v758
        %v798 = vunpack.c.l.b16 %v759
        %v799 = vunpack.c.l.b16 %v760
        %v800 = vunpack.c.l.b16 %v761
        %v801 = vunpack.c.l.b16 %v762
        %v802 = vunpack.c.l.b16 %v763
        %v803 = vunpack.c.l.b16 %v764
        %v804 = vunpack.c.l.b16 %v765
        %v805 = vunpack.c.l.b16 %v766
        %v806 = vunpack.c.l.b16 %v767
        %v807 = vunpack.c.l.b16 %v768
        %v808 = vunpack.c.l.b16 %v769
        %v809 = vunpack.c.l.b16 %v770
        %v810 = vunpack.c.l.b16 %v771
        %v811 = vpack.c.b16 %v796, %v795
        %v812 = vpack.c.b16 %v798, %v797
        %v813 = vpack.c.b16 %v800, %v799
        %v814 = vpack.c.b16 %v802, %v801
        %v815 = vpack.c.b16 %v804, %v803
        %v816 = vpack.c.b16 %v806, %v805
        %v817 = vpack.c.b16 %v808, %v807
        %v818 = vpack.c.b16 %v810, %v809
        %827 = vmatprep.subr.bf16.mxu0 0
        %828 = vmatpush1.bf16.msra.mxu0 %v811
        %829 = vmatprep.subr.bf16.mxu0 0
        %830 = vmatpush1.bf16.msra.mxu0 %v812
        %831 = vmatprep.subr.bf16.mxu0 0
        %832 = vmatpush1.bf16.msra.mxu0 %v813
        %833 = vmatprep.subr.bf16.mxu0 0
        %834 = vmatpush1.bf16.msra.mxu0 %v814
        %835 = vmatprep.subr.bf16.mxu0 0
        %836 = vmatpush1.bf16.msra.mxu0 %v815
        %837 = vmatprep.subr.bf16.mxu0 0
        %838 = vmatpush1.bf16.msra.mxu0 %v816
        %839 = vmatprep.subr.bf16.mxu0 0
        %840 = vmatpush1.bf16.msra.mxu0 %v817
        %841 = vmatprep.subr.bf16.mxu0 0
        %842 = vmatpush1.bf16.msra.mxu0 %v818
        %843 = vmatprep.subr.bf16.mxu0 0
        %844 = vmatpush1.bf16.msra.mxu0 0
        %845 = vmatprep.subr.bf16.mxu0 0
        %846 = vmatpush1.bf16.msra.mxu0 0
        %847 = vmatprep.subr.bf16.mxu0 0
        %848 = vmatpush1.bf16.msra.mxu0 0
        %849 = vmatprep.subr.bf16.mxu0 0
        %850 = vmatpush1.bf16.msra.mxu0 0
        %851 = vmatprep.subr.bf16.mxu0 0
        %852 = vmatpush1.bf16.msra.mxu0 0
        %853 = vmatprep.subr.bf16.mxu0 0
        %854 = vmatpush1.bf16.msra.mxu0 0
        %855 = vmatprep.subr.bf16.mxu0 0
        %856 = vmatpush1.bf16.msra.mxu0 0
        %857 = vmatprep.subr.bf16.mxu0 0
        %858 = vmatpush1.bf16.msra.mxu0 0
        %859 = vmatprep.mubr.bf16.mxu0 0
        %860 = vmatmul.mubr.bf16.gmra.mrb[0].mxu0 %v740
        %v861 = vpop.f32.mrb[0].mxu0
        %v862 = vadd.f32 %v777, %v861
        %v863 = vpop.f32.mrb[0].mxu0
        %v864 = vpop.f32.mrb[0].mxu0
        %v865 = vadd.f32 %v777, %v864
        %v866 = vpop.f32.mrb[0].mxu0
        %867 = vmatprep.mubr.bf16.mxu0 0
        %868 = vmatmul.mubr.bf16.gmra.mrb[0].mxu0 %v741
        %v869 = vpop.f32.mrb[0].mxu0
        %v870 = vadd.f32 %v777, %v869
        %v871 = vpop.f32.mrb[0].mxu0
        %v872 = vpop.f32.mrb[0].mxu0
        %v873 = vadd.f32 %v777, %v872
        %v874 = vpop.f32.mrb[0].mxu0
        %875 = vmatprep.mubr.bf16.mxu0 0
        %876 = vmatmul.mubr.bf16.gmra.mrb[0].mxu0 %v742
        %v877 = vpop.f32.mrb[0].mxu0
        %v878 = vadd.f32 %v777, %v877
        %v879 = vpop.f32.mrb[0].mxu0
        %v880 = vpop.f32.mrb[0].mxu0
        %v881 = vadd.f32 %v777, %v880
        %v882 = vpop.f32.mrb[0].mxu0
        %883 = vmatprep.mubr.bf16.mxu0 0
        %884 = vmatmul.mubr.bf16.gmra.mrb[0].mxu0 %v743
        %v885 = vpop.f32.mrb[0].mxu0
        %v886 = vadd.f32 %v777, %v885
        %v887 = vpop.f32.mrb[0].mxu0
        %v888 = vpop.f32.mrb[0].mxu0
        %v889 = vadd.f32 %v777, %v888
        %v890 = vpop.f32.mrb[0].mxu0
        %891 = vmatprep.mubr.bf16.mxu0 0
        %892 = vmatmul.mubr.bf16.gmra.mrb[0].mxu0 %v744
        %v893 = vpop.f32.mrb[0].mxu0
        %v894 = vadd.f32 %v777, %v893
        %v895 = vpop.f32.mrb[0].mxu0
        %v896 = vpop.f32.mrb[0].mxu0
        %v897 = vadd.f32 %v777, %v896
        %v898 = vpop.f32.mrb[0].mxu0
        %899 = vmatprep.mubr.bf16.mxu0 0
        %900 = vmatmul.mubr.bf16.gmra.mrb[0].mxu0 %v745
        %v901 = vpop.f32.mrb[0].mxu0
        %v902 = vadd.f32 %v777, %v901
        %v903 = vpop.f32.mrb[0].mxu0
        %v904 = vpop.f32.mrb[0].mxu0
        %v905 = vadd.f32 %v777, %v904
        %v906 = vpop.f32.mrb[0].mxu0
        %907 = vmatprep.mubr.bf16.mxu0 0
        %908 = vmatmul.mubr.bf16.gmra.mrb[0].mxu0 %v746
        %v909 = vpop.f32.mrb[0].mxu0
        %v910 = vadd.f32 %v777, %v909
        %v911 = vpop.f32.mrb[0].mxu0
        %v912 = vpop.f32.mrb[0].mxu0
        %v913 = vadd.f32 %v777, %v912
        %v914 = vpop.f32.mrb[0].mxu0
        %915 = vmatprep.mubr.bf16.mxu0 0
        %916 = vmatmul.mubr.bf16.gmra.mrb[0].mxu0 %v747
        %v917 = vpop.f32.mrb[0].mxu0
        %v918 = vadd.f32 %v777, %v917
        %v919 = vpop.f32.mrb[0].mxu0
        %v920 = vpop.f32.mrb[0].mxu0
        %v921 = vadd.f32 %v777, %v920
        %v922 = vpop.f32.mrb[0].mxu0
        %923 = vmatprep.mubr.bf16.mxu0 0
        %924 = vmatmul.mubr.bf16.gmra.mrb[0].mxu0 %v748
        %v925 = vpop.f32.mrb[0].mxu0
        %v926 = vadd.f32 %v777, %v925
        %v927 = vpop.f32.mrb[0].mxu0
        %v928 = vpop.f32.mrb[0].mxu0
        %v929 = vadd.f32 %v777, %v928
        %v930 = vpop.f32.mrb[0].mxu0
        %931 = vmatprep.mubr.bf16.mxu0 0
        %932 = vmatmul.mubr.bf16.gmra.mrb[0].mxu0 %v749
        %v933 = vpop.f32.mrb[0].mxu0
        %v934 = vadd.f32 %v777, %v933
        %v935 = vpop.f32.mrb[0].mxu0
        %v936 = vpop.f32.mrb[0].mxu0
        %v937 = vadd.f32 %v777, %v936
        %v938 = vpop.f32.mrb[0].mxu0
        %939 = vmatprep.mubr.bf16.mxu0 0
        %940 = vmatmul.mubr.bf16.gmra.mrb[0].mxu0 %v750
        %v941 = vpop.f32.mrb[0].mxu0
        %v942 = vadd.f32 %v777, %v941
        %v943 = vpop.f32.mrb[0].mxu0
        %v944 = vpop.f32.mrb[0].mxu0
        %v945 = vadd.f32 %v777, %v944
        %v946 = vpop.f32.mrb[0].mxu0
        %947 = vmatprep.mubr.bf16.mxu0 0
        %948 = vmatmul.mubr.bf16.gmra.mrb[0].mxu0 %v751
        %v949 = vpop.f32.mrb[0].mxu0
        %v950 = vadd.f32 %v777, %v949
        %v951 = vpop.f32.mrb[0].mxu0
        %v952 = vpop.f32.mrb[0].mxu0
        %v953 = vadd.f32 %v777, %v952
        %v954 = vpop.f32.mrb[0].mxu0
        %955 = vmatprep.mubr.bf16.mxu0 0
        %956 = vmatmul.mubr.bf16.gmra.mrb[0].mxu0 %v752
        %v957 = vpop.f32.mrb[0].mxu0
        %v958 = vadd.f32 %v777, %v957
        %v959 = vpop.f32.mrb[0].mxu0
        %v960 = vpop.f32.mrb[0].mxu0
        %v961 = vadd.f32 %v777, %v960
        %v962 = vpop.f32.mrb[0].mxu0
        %963 = vmatprep.mubr.bf16.mxu0 0
        %964 = vmatmul.mubr.bf16.gmra.mrb[0].mxu0 %v753
        %v965 = vpop.f32.mrb[0].mxu0
        %v966 = vadd.f32 %v777, %v965
        %v967 = vpop.f32.mrb[0].mxu0
        %v968 = vpop.f32.mrb[0].mxu0
        %v969 = vadd.f32 %v777, %v968
        %v970 = vpop.f32.mrb[0].mxu0
        %971 = vmatprep.mubr.bf16.mxu0 0
        %972 = vmatmul.mubr.bf16.gmra.mrb[0].mxu0 %v754
        %v973 = vpop.f32.mrb[0].mxu0
        %v974 = vadd.f32 %v777, %v973
        %v975 = vpop.f32.mrb[0].mxu0
        %v976 = vpop.f32.mrb[0].mxu0
        %v977 = vadd.f32 %v777, %v976
        %v978 = vpop.f32.mrb[0].mxu0
        %979 = vmatprep.mubr.bf16.mxu0 0
        %980 = vmatmul.mubr.bf16.gmra.mrb[0].mxu0 %v755
        %v981 = vpop.f32.mrb[0].mxu0
        %v982 = vadd.f32 %v777, %v981
        %v983 = vpop.f32.mrb[0].mxu0
        %v984 = vpop.f32.mrb[0].mxu0
        %v985 = vadd.f32 %v777, %v984
        %v986 = vpop.f32.mrb[0].mxu0
        %987 = vdwg.mxu0
        %v988 = vpack.c.bf16 %v865, %v862
        %v989 = vpack.c.bf16 %v873, %v870
        %v990 = vpack.c.bf16 %v881, %v878
        %v991 = vpack.c.bf16 %v889, %v886
        %v992 = vpack.c.bf16 %v897, %v894
        %v993 = vpack.c.bf16 %v905, %v902
        %v994 = vpack.c.bf16 %v913, %v910
        %v995 = vpack.c.bf16 %v921, %v918
        %v996 = vpack.c.bf16 %v929, %v926
        %v997 = vpack.c.bf16 %v937, %v934
        %v998 = vpack.c.bf16 %v945, %v942
        %v999 = vpack.c.bf16 %v953, %v950
        %v1000 = vpack.c.bf16 %v961, %v958
        %v1001 = vpack.c.bf16 %v969, %v966
        %v1002 = vpack.c.bf16 %v977, %v974
        %v1003 = vpack.c.bf16 %v985, %v982
        %v1004 = vmax.bf16 %v988, 0
        %v1005 = vmax.bf16 %v989, 0
        %v1006 = vmax.bf16 %v990, 0
        %v1007 = vmax.bf16 %v991, 0
        %v1008 = vmax.bf16 %v992, 0
        %v1009 = vmax.bf16 %v993, 0
        %v1010 = vmax.bf16 %v994, 0
        %v1011 = vmax.bf16 %v995, 0
        %v1012 = vmax.bf16 %v996, 0
        %v1013 = vmax.bf16 %v997, 0
        %v1014 = vmax.bf16 %v998, 0
        %v1015 = vmax.bf16 %v999, 0
        %v1016 = vmax.bf16 %v1000, 0
        %v1017 = vmax.bf16 %v1001, 0
        %v1018 = vmax.bf16 %v1002, 0
        %v1019 = vmax.bf16 %v1003, 0
        %v1020 = vld [vmem:[%s5] sm:$0x1]
        %v1021 = vld [vmem:[#allocation2] sm:$0x1]
        %v1022 = vunpack.c.l.bf16 %v1004
        %v1023 = vunpack.c.h.bf16 %v1004
        %v1024 = vunpack.c.l.bf16 %v1005
        %v1025 = vunpack.c.h.bf16 %v1005
        %v1026 = vunpack.c.l.bf16 %v1006
        %v1027 = vunpack.c.h.bf16 %v1006
        %v1028 = vunpack.c.l.bf16 %v1007
        %v1029 = vunpack.c.h.bf16 %v1007
        %v1030 = vunpack.c.l.bf16 %v1008
        %v1031 = vunpack.c.h.bf16 %v1008
        %v1032 = vunpack.c.l.bf16 %v1009
        %v1033 = vunpack.c.h.bf16 %v1009
        %v1034 = vunpack.c.l.bf16 %v1010
        %v1035 = vunpack.c.h.bf16 %v1010
        %v1036 = vunpack.c.l.bf16 %v1011
        %v1037 = vunpack.c.h.bf16 %v1011
        %v1038 = vunpack.c.l.bf16 %v1012
        %v1039 = vunpack.c.h.bf16 %v1012
        %v1040 = vunpack.c.l.bf16 %v1013
        %v1041 = vunpack.c.h.bf16 %v1013
        %v1042 = vunpack.c.l.bf16 %v1014
        %v1043 = vunpack.c.h.bf16 %v1014
        %v1044 = vunpack.c.l.bf16 %v1015
        %v1045 = vunpack.c.h.bf16 %v1015
        %v1046 = vunpack.c.l.bf16 %v1016
        %v1047 = vunpack.c.h.bf16 %v1016
        %v1048 = vunpack.c.l.bf16 %v1017
        %v1049 = vunpack.c.h.bf16 %v1017
        %v1050 = vunpack.c.l.bf16 %v1018
        %v1051 = vunpack.c.h.bf16 %v1018
        %v1052 = vunpack.c.l.bf16 %v1019
        %v1053 = vunpack.c.h.bf16 %v1019
        %v1055 = vlaneseq
        %v1056 = vshrl.u32 %v1055, 7
        %v1057 = vsub.s32 0, %v1056
        %v1058 = vrot.slane %v1020, %v1057
        %v1060 = vmul.f32 %v1022, %v1058
        %v1061 = vmul.f32 %v1023, %v1058
        %v1062 = vmul.f32 %v1024, %v1058
        %v1063 = vmul.f32 %v1025, %v1058
        %v1064 = vmul.f32 %v1026, %v1058
        %v1065 = vmul.f32 %v1027, %v1058
        %v1066 = vmul.f32 %v1028, %v1058
        %v1067 = vmul.f32 %v1029, %v1058
        %v1068 = vmul.f32 %v1030, %v1058
        %v1069 = vmul.f32 %v1031, %v1058
        %v1070 = vmul.f32 %v1032, %v1058
        %v1071 = vmul.f32 %v1033, %v1058
        %v1072 = vmul.f32 %v1034, %v1058
        %v1073 = vmul.f32 %v1035, %v1058
        %v1074 = vmul.f32 %v1036, %v1058
        %v1075 = vmul.f32 %v1037, %v1058
        %v1076 = vmul.f32 %v1038, %v1058
        %v1077 = vmul.f32 %v1039, %v1058
        %v1078 = vmul.f32 %v1040, %v1058
        %v1079 = vmul.f32 %v1041, %v1058
        %v1080 = vmul.f32 %v1042, %v1058
        %v1081 = vmul.f32 %v1043, %v1058
        %v1082 = vmul.f32 %v1044, %v1058
        %v1083 = vmul.f32 %v1045, %v1058
        %v1084 = vmul.f32 %v1046, %v1058
        %v1085 = vmul.f32 %v1047, %v1058
        %v1086 = vmul.f32 %v1048, %v1058
        %v1087 = vmul.f32 %v1049, %v1058
        %v1088 = vmul.f32 %v1050, %v1058
        %v1089 = vmul.f32 %v1051, %v1058
        %v1090 = vmul.f32 %v1052, %v1058
        %v1091 = vmul.f32 %v1053, %v1058
        %1092 = vadd.xlane.f32.xlu0 %v1060
        %v1093 = vpop.xlane.xlu0 %1092
        %1094 = vadd.xlane.f32.xlu0 %v1061
        %v1095 = vpop.xlane.xlu0 %1094
        %1096 = vadd.xlane.f32.xlu0 %v1062
        %v1097 = vpop.xlane.xlu0 %1096
        %1098 = vadd.xlane.f32.xlu0 %v1063
        %v1099 = vpop.xlane.xlu0 %1098
        %1100 = vadd.xlane.f32.xlu0 %v1064
        %v1101 = vpop.xlane.xlu0 %1100
        %1102 = vadd.xlane.f32.xlu0 %v1065
        %v1103 = vpop.xlane.xlu0 %1102
        %1104 = vadd.xlane.f32.xlu0 %v1066
        %v1105 = vpop.xlane.xlu0 %1104
        %1106 = vadd.xlane.f32.xlu0 %v1067
        %v1107 = vpop.xlane.xlu0 %1106
        %1108 = vadd.xlane.f32.xlu0 %v1068
        %v1109 = vpop.xlane.xlu0 %1108
        %1110 = vadd.xlane.f32.xlu0 %v1069
        %v1111 = vpop.xlane.xlu0 %1110
        %1112 = vadd.xlane.f32.xlu0 %v1070
        %v1113 = vpop.xlane.xlu0 %1112
        %1114 = vadd.xlane.f32.xlu0 %v1071
        %v1115 = vpop.xlane.xlu0 %1114
        %1116 = vadd.xlane.f32.xlu0 %v1072
        %v1117 = vpop.xlane.xlu0 %1116
        %1118 = vadd.xlane.f32.xlu0 %v1073
        %v1119 = vpop.xlane.xlu0 %1118
        %1120 = vadd.xlane.f32.xlu0 %v1074
        %v1121 = vpop.xlane.xlu0 %1120
        %1122 = vadd.xlane.f32.xlu0 %v1075
        %v1123 = vpop.xlane.xlu0 %1122
        %1124 = vadd.xlane.f32.xlu0 %v1076
        %v1125 = vpop.xlane.xlu0 %1124
        %1126 = vadd.xlane.f32.xlu0 %v1077
        %v1127 = vpop.xlane.xlu0 %1126
        %1128 = vadd.xlane.f32.xlu0 %v1078
        %v1129 = vpop.xlane.xlu0 %1128
        %1130 = vadd.xlane.f32.xlu0 %v1079
        %v1131 = vpop.xlane.xlu0 %1130
        %1132 = vadd.xlane.f32.xlu0 %v1080
        %v1133 = vpop.xlane.xlu0 %1132
        %1134 = vadd.xlane.f32.xlu0 %v1081
        %v1135 = vpop.xlane.xlu0 %1134
        %1136 = vadd.xlane.f32.xlu0 %v1082
        %v1137 = vpop.xlane.xlu0 %1136
        %1138 = vadd.xlane.f32.xlu0 %v1083
        %v1139 = vpop.xlane.xlu0 %1138
        %1140 = vadd.xlane.f32.xlu0 %v1084
        %v1141 = vpop.xlane.xlu0 %1140
        %1142 = vadd.xlane.f32.xlu0 %v1085
        %v1143 = vpop.xlane.xlu0 %1142
        %1144 = vadd.xlane.f32.xlu0 %v1086
        %v1145 = vpop.xlane.xlu0 %1144
        %1146 = vadd.xlane.f32.xlu0 %v1087
        %v1147 = vpop.xlane.xlu0 %1146
        %1148 = vadd.xlane.f32.xlu0 %v1088
        %v1149 = vpop.xlane.xlu0 %1148
        %1150 = vadd.xlane.f32.xlu0 %v1089
        %v1151 = vpop.xlane.xlu0 %1150
        %1152 = vadd.xlane.f32.xlu0 %v1090
        %v1153 = vpop.xlane.xlu0 %1152
        %1154 = vadd.xlane.f32.xlu0 %v1091
        %v1155 = vpop.xlane.xlu0 %1154
        %s1156 = vtos %v1021
        %v1157 = vstv %s1156
        %v1158 = vadd.f32 %v1093, %v1157
        %v1159 = vadd.f32 %v1095, %v1157
        %v1160 = vadd.f32 %v1097, %v1157
        %v1161 = vadd.f32 %v1099, %v1157
        %v1162 = vadd.f32 %v1101, %v1157
        %v1163 = vadd.f32 %v1103, %v1157
        %v1164 = vadd.f32 %v1105, %v1157
        %v1165 = vadd.f32 %v1107, %v1157
        %v1166 = vadd.f32 %v1109, %v1157
        %v1167 = vadd.f32 %v1111, %v1157
        %v1168 = vadd.f32 %v1113, %v1157
        %v1169 = vadd.f32 %v1115, %v1157
        %v1170 = vadd.f32 %v1117, %v1157
        %v1171 = vadd.f32 %v1119, %v1157
        %v1172 = vadd.f32 %v1121, %v1157
        %v1173 = vadd.f32 %v1123, %v1157
        %v1174 = vadd.f32 %v1125, %v1157
        %v1175 = vadd.f32 %v1127, %v1157
        %v1176 = vadd.f32 %v1129, %v1157
        %v1177 = vadd.f32 %v1131, %v1157
        %v1178 = vadd.f32 %v1133, %v1157
        %v1179 = vadd.f32 %v1135, %v1157
        %v1180 = vadd.f32 %v1137, %v1157
        %v1181 = vadd.f32 %v1139, %v1157
        %v1182 = vadd.f32 %v1141, %v1157
        %v1183 = vadd.f32 %v1143, %v1157
        %v1184 = vadd.f32 %v1145, %v1157
        %v1185 = vadd.f32 %v1147, %v1157
        %v1186 = vadd.f32 %v1149, %v1157
        %v1187 = vadd.f32 %v1151, %v1157
        %v1188 = vadd.f32 %v1153, %v1157
        %v1189 = vadd.f32 %v1155, %v1157
        %v1190 = vxor.u32 %v1158, 2147483648
        %v1191 = vxor.u32 %v1159, 2147483648
        %v1192 = vxor.u32 %v1160, 2147483648
        %v1193 = vxor.u32 %v1161, 2147483648
        %v1194 = vxor.u32 %v1162, 2147483648
        %v1195 = vxor.u32 %v1163, 2147483648
        %v1196 = vxor.u32 %v1164, 2147483648
        %v1197 = vxor.u32 %v1165, 2147483648
        %v1198 = vxor.u32 %v1166, 2147483648
        %v1199 = vxor.u32 %v1167, 2147483648
        %v1200 = vxor.u32 %v1168, 2147483648
        %v1201 = vxor.u32 %v1169, 2147483648
        %v1202 = vxor.u32 %v1170, 2147483648
        %v1203 = vxor.u32 %v1171, 2147483648
        %v1204 = vxor.u32 %v1172, 2147483648
        %v1205 = vxor.u32 %v1173, 2147483648
        %v1206 = vxor.u32 %v1174, 2147483648
        %v1207 = vxor.u32 %v1175, 2147483648
        %v1208 = vxor.u32 %v1176, 2147483648
        %v1209 = vxor.u32 %v1177, 2147483648
        %v1210 = vxor.u32 %v1178, 2147483648
        %v1211 = vxor.u32 %v1179, 2147483648
        %v1212 = vxor.u32 %v1180, 2147483648
        %v1213 = vxor.u32 %v1181, 2147483648
        %v1214 = vxor.u32 %v1182, 2147483648
        %v1215 = vxor.u32 %v1183, 2147483648
        %v1216 = vxor.u32 %v1184, 2147483648
        %v1217 = vxor.u32 %v1185, 2147483648
        %v1218 = vxor.u32 %v1186, 2147483648
        %v1219 = vxor.u32 %v1187, 2147483648
        %v1220 = vxor.u32 %v1188, 2147483648
        %v1221 = vxor.u32 %v1189, 2147483648
        %v1222 = vmul.f32 %v1190, 1.442695
        %v1223 = vpow.pop %v1222
        %v1224 = vmul.f32 %v1191, 1.442695
        %v1225 = vpow.pop %v1224
        %v1226 = vmul.f32 %v1192, 1.442695
        %v1227 = vpow.pop %v1226
        %v1228 = vmul.f32 %v1193, 1.442695
        %v1229 = vpow.pop %v1228
        %v1230 = vmul.f32 %v1194, 1.442695
        %v1231 = vpow.pop %v1230
        %v1232 = vmul.f32 %v1195, 1.442695
        %v1233 = vpow.pop %v1232
        %v1234 = vmul.f32 %v1196, 1.442695
        %v1235 = vpow.pop %v1234
        %v1236 = vmul.f32 %v1197, 1.442695
        %v1237 = vpow.pop %v1236
        %v1238 = vmul.f32 %v1198, 1.442695
        %v1239 = vpow.pop %v1238
        %v1240 = vmul.f32 %v1199, 1.442695
        %v1241 = vpow.pop %v1240
        %v1242 = vmul.f32 %v1200, 1.442695
        %v1243 = vpow.pop %v1242
        %v1244 = vmul.f32 %v1201, 1.442695
        %v1245 = vpow.pop %v1244
        %v1246 = vmul.f32 %v1202, 1.442695
        %v1247 = vpow.pop %v1246
        %v1248 = vmul.f32 %v1203, 1.442695
        %v1249 = vpow.pop %v1248
        %v1250 = vmul.f32 %v1204, 1.442695
        %v1251 = vpow.pop %v1250
        %v1252 = vmul.f32 %v1205, 1.442695
        %v1253 = vpow.pop %v1252
        %v1254 = vmul.f32 %v1206, 1.442695
        %v1255 = vpow.pop %v1254
        %v1256 = vmul.f32 %v1207, 1.442695
        %v1257 = vpow.pop %v1256
        %v1258 = vmul.f32 %v1208, 1.442695
        %v1259 = vpow.pop %v1258
        %v1260 = vmul.f32 %v1209, 1.442695
        %v1261 = vpow.pop %v1260
        %v1262 = vmul.f32 %v1210, 1.442695
        %v1263 = vpow.pop %v1262
        %v1264 = vmul.f32 %v1211, 1.442695
        %v1265 = vpow.pop %v1264
        %v1266 = vmul.f32 %v1212, 1.442695
        %v1267 = vpow.pop %v1266
        %v1268 = vmul.f32 %v1213, 1.442695
        %v1269 = vpow.pop %v1268
        %v1270 = vmul.f32 %v1214, 1.442695
        %v1271 = vpow.pop %v1270
        %v1272 = vmul.f32 %v1215, 1.442695
        %v1273 = vpow.pop %v1272
        %v1274 = vmul.f32 %v1216, 1.442695
        %v1275 = vpow.pop %v1274
        %v1276 = vmul.f32 %v1217, 1.442695
        %v1277 = vpow.pop %v1276
        %v1278 = vmul.f32 %v1218, 1.442695
        %v1279 = vpow.pop %v1278
        %v1280 = vmul.f32 %v1219, 1.442695
        %v1281 = vpow.pop %v1280
        %v1282 = vmul.f32 %v1220, 1.442695
        %v1283 = vpow.pop %v1282
        %v1284 = vmul.f32 %v1221, 1.442695
        %v1285 = vpow.pop %v1284
        %v1286 = vadd.f32 %v1223, 1.0
        %v1287 = vadd.f32 %v1225, 1.0
        %v1288 = vadd.f32 %v1227, 1.0
        %v1289 = vadd.f32 %v1229, 1.0
        %v1290 = vadd.f32 %v1231, 1.0
        %v1291 = vadd.f32 %v1233, 1.0
        %v1292 = vadd.f32 %v1235, 1.0
        %v1293 = vadd.f32 %v1237, 1.0
        %v1294 = vadd.f32 %v1239, 1.0
        %v1295 = vadd.f32 %v1241, 1.0
        %v1296 = vadd.f32 %v1243, 1.0
        %v1297 = vadd.f32 %v1245, 1.0
        %v1298 = vadd.f32 %v1247, 1.0
        %v1299 = vadd.f32 %v1249, 1.0
        %v1300 = vadd.f32 %v1251, 1.0
        %v1301 = vadd.f32 %v1253, 1.0
        %v1302 = vadd.f32 %v1255, 1.0
        %v1303 = vadd.f32 %v1257, 1.0
        %v1304 = vadd.f32 %v1259, 1.0
        %v1305 = vadd.f32 %v1261, 1.0
        %v1306 = vadd.f32 %v1263, 1.0
        %v1307 = vadd.f32 %v1265, 1.0
        %v1308 = vadd.f32 %v1267, 1.0
        %v1309 = vadd.f32 %v1269, 1.0
        %v1310 = vadd.f32 %v1271, 1.0
        %v1311 = vadd.f32 %v1273, 1.0
        %v1312 = vadd.f32 %v1275, 1.0
        %v1313 = vadd.f32 %v1277, 1.0
        %v1314 = vadd.f32 %v1279, 1.0
        %v1315 = vadd.f32 %v1281, 1.0
        %v1316 = vadd.f32 %v1283, 1.0
        %v1317 = vadd.f32 %v1285, 1.0
        %v1318 = vrcp.pop %v1286
        %v1319 = vmul.f32 1.0, %v1318
        %v1320 = vrcp.pop %v1287
        %v1321 = vmul.f32 1.0, %v1320
        %v1322 = vrcp.pop %v1288
        %v1323 = vmul.f32 1.0, %v1322
        %v1324 = vrcp.pop %v1289
        %v1325 = vmul.f32 1.0, %v1324
        %v1326 = vrcp.pop %v1290
        %v1327 = vmul.f32 1.0, %v1326
        %v1328 = vrcp.pop %v1291
        %v1329 = vmul.f32 1.0, %v1328
        %v1330 = vrcp.pop %v1292
        %v1331 = vmul.f32 1.0, %v1330
        %v1332 = vrcp.pop %v1293
        %v1333 = vmul.f32 1.0, %v1332
        %v1334 = vrcp.pop %v1294
        %v1335 = vmul.f32 1.0, %v1334
        %v1336 = vrcp.pop %v1295
        %v1337 = vmul.f32 1.0, %v1336
        %v1338 = vrcp.pop %v1296
        %v1339 = vmul.f32 1.0, %v1338
        %v1340 = vrcp.pop %v1297
        %v1341 = vmul.f32 1.0, %v1340
        %v1342 = vrcp.pop %v1298
        %v1343 = vmul.f32 1.0, %v1342
        %v1344 = vrcp.pop %v1299
        %v1345 = vmul.f32 1.0, %v1344
        %v1346 = vrcp.pop %v1300
        %v1347 = vmul.f32 1.0, %v1346
        %v1348 = vrcp.pop %v1301
        %v1349 = vmul.f32 1.0, %v1348
        %v1350 = vrcp.pop %v1302
        %v1351 = vmul.f32 1.0, %v1350
        %v1352 = vrcp.pop %v1303
        %v1353 = vmul.f32 1.0, %v1352
        %v1354 = vrcp.pop %v1304
        %v1355 = vmul.f32 1.0, %v1354
        %v1356 = vrcp.pop %v1305
        %v1357 = vmul.f32 1.0, %v1356
        %v1358 = vrcp.pop %v1306
        %v1359 = vmul.f32 1.0, %v1358
        %v1360 = vrcp.pop %v1307
        %v1361 = vmul.f32 1.0, %v1360
        %v1362 = vrcp.pop %v1308
        %v1363 = vmul.f32 1.0, %v1362
        %v1364 = vrcp.pop %v1309
        %v1365 = vmul.f32 1.0, %v1364
        %v1366 = vrcp.pop %v1310
        %v1367 = vmul.f32 1.0, %v1366
        %v1368 = vrcp.pop %v1311
        %v1369 = vmul.f32 1.0, %v1368
        %v1370 = vrcp.pop %v1312
        %v1371 = vmul.f32 1.0, %v1370
        %v1372 = vrcp.pop %v1313
        %v1373 = vmul.f32 1.0, %v1372
        %v1374 = vrcp.pop %v1314
        %v1375 = vmul.f32 1.0, %v1374
        %v1376 = vrcp.pop %v1315
        %v1377 = vmul.f32 1.0, %v1376
        %v1378 = vrcp.pop %v1316
        %v1379 = vmul.f32 1.0, %v1378
        %v1380 = vrcp.pop %v1317
        %v1381 = vmul.f32 1.0, %v1380
        %v1414 = vlaneseq
        %v1415 = vshrl.u32 %v1414, 7
        %v1416 = vsub.s32 0, %v1415
        %v1417 = vrot.slane %v1319, %v1416
        %v1418 = vlaneseq
        %v1419 = vshrl.u32 %v1418, 7
        %v1420 = vsub.s32 1, %v1419
        %v1421 = vrot.slane %v1319, %v1420
        %v1422 = vlaneseq
        %v1423 = vshrl.u32 %v1422, 7
        %v1424 = vsub.s32 2, %v1423
        %v1425 = vrot.slane %v1319, %v1424
        %v1426 = vlaneseq
        %v1427 = vshrl.u32 %v1426, 7
        %v1428 = vsub.s32 3, %v1427
        %v1429 = vrot.slane %v1319, %v1428
        %v1430 = vlaneseq
        %v1431 = vshrl.u32 %v1430, 7
        %v1432 = vsub.s32 4, %v1431
        %v1433 = vrot.slane %v1319, %v1432
        %v1434 = vlaneseq
        %v1435 = vshrl.u32 %v1434, 7
        %v1436 = vsub.s32 5, %v1435
        %v1437 = vrot.slane %v1319, %v1436
        %v1438 = vlaneseq
        %v1439 = vshrl.u32 %v1438, 7
        %v1440 = vsub.s32 6, %v1439
        %v1441 = vrot.slane %v1319, %v1440
        %v1442 = vlaneseq
        %v1443 = vshrl.u32 %v1442, 7
        %v1444 = vsub.s32 7, %v1443
        %v1445 = vrot.slane %v1319, %v1444
        %v1446 = vlaneseq
        %v1447 = vshrl.u32 %v1446, 7
        %v1448 = vsub.s32 0, %v1447
        %v1449 = vrot.slane %v1321, %v1448
        %v1450 = vlaneseq
        %v1451 = vshrl.u32 %v1450, 7
        %v1452 = vsub.s32 1, %v1451
        %v1453 = vrot.slane %v1321, %v1452
        %v1454 = vlaneseq
        %v1455 = vshrl.u32 %v1454, 7
        %v1456 = vsub.s32 2, %v1455
        %v1457 = vrot.slane %v1321, %v1456
        %v1458 = vlaneseq
        %v1459 = vshrl.u32 %v1458, 7
        %v1460 = vsub.s32 3, %v1459
        %v1461 = vrot.slane %v1321, %v1460
        %v1462 = vlaneseq
        %v1463 = vshrl.u32 %v1462, 7
        %v1464 = vsub.s32 4, %v1463
        %v1465 = vrot.slane %v1321, %v1464
        %v1466 = vlaneseq
        %v1467 = vshrl.u32 %v1466, 7
        %v1468 = vsub.s32 5, %v1467
        %v1469 = vrot.slane %v1321, %v1468
        %v1470 = vlaneseq
        %v1471 = vshrl.u32 %v1470, 7
        %v1472 = vsub.s32 6, %v1471
        %v1473 = vrot.slane %v1321, %v1472
        %v1474 = vlaneseq
        %v1475 = vshrl.u32 %v1474, 7
        %v1476 = vsub.s32 7, %v1475
        %v1477 = vrot.slane %v1321, %v1476
        %v1478 = vlaneseq
        %v1479 = vshrl.u32 %v1478, 7
        %v1480 = vsub.s32 0, %v1479
        %v1481 = vrot.slane %v1323, %v1480
        %v1482 = vlaneseq
        %v1483 = vshrl.u32 %v1482, 7
        %v1484 = vsub.s32 1, %v1483
        %v1485 = vrot.slane %v1323, %v1484
        %v1486 = vlaneseq
        %v1487 = vshrl.u32 %v1486, 7
        %v1488 = vsub.s32 2, %v1487
        %v1489 = vrot.slane %v1323, %v1488
        %v1490 = vlaneseq
        %v1491 = vshrl.u32 %v1490, 7
        %v1492 = vsub.s32 3, %v1491
        %v1493 = vrot.slane %v1323, %v1492
        %v1494 = vlaneseq
        %v1495 = vshrl.u32 %v1494, 7
        %v1496 = vsub.s32 4, %v1495
        %v1497 = vrot.slane %v1323, %v1496
        %v1498 = vlaneseq
        %v1499 = vshrl.u32 %v1498, 7
        %v1500 = vsub.s32 5, %v1499
        %v1501 = vrot.slane %v1323, %v1500
        %v1502 = vlaneseq
        %v1503 = vshrl.u32 %v1502, 7
        %v1504 = vsub.s32 6, %v1503
        %v1505 = vrot.slane %v1323, %v1504
        %v1506 = vlaneseq
        %v1507 = vshrl.u32 %v1506, 7
        %v1508 = vsub.s32 7, %v1507
        %v1509 = vrot.slane %v1323, %v1508
        %v1510 = vlaneseq
        %v1511 = vshrl.u32 %v1510, 7
        %v1512 = vsub.s32 0, %v1511
        %v1513 = vrot.slane %v1325, %v1512
        %v1514 = vlaneseq
        %v1515 = vshrl.u32 %v1514, 7
        %v1516 = vsub.s32 1, %v1515
        %v1517 = vrot.slane %v1325, %v1516
        %v1518 = vlaneseq
        %v1519 = vshrl.u32 %v1518, 7
        %v1520 = vsub.s32 2, %v1519
        %v1521 = vrot.slane %v1325, %v1520
        %v1522 = vlaneseq
        %v1523 = vshrl.u32 %v1522, 7
        %v1524 = vsub.s32 3, %v1523
        %v1525 = vrot.slane %v1325, %v1524
        %v1526 = vlaneseq
        %v1527 = vshrl.u32 %v1526, 7
        %v1528 = vsub.s32 4, %v1527
        %v1529 = vrot.slane %v1325, %v1528
        %v1530 = vlaneseq
        %v1531 = vshrl.u32 %v1530, 7
        %v1532 = vsub.s32 5, %v1531
        %v1533 = vrot.slane %v1325, %v1532
        %v1534 = vlaneseq
        %v1535 = vshrl.u32 %v1534, 7
        %v1536 = vsub.s32 6, %v1535
        %v1537 = vrot.slane %v1325, %v1536
        %v1538 = vlaneseq
        %v1539 = vshrl.u32 %v1538, 7
        %v1540 = vsub.s32 7, %v1539
        %v1541 = vrot.slane %v1325, %v1540
        %v1542 = vlaneseq
        %v1543 = vshrl.u32 %v1542, 7
        %v1544 = vsub.s32 0, %v1543
        %v1545 = vrot.slane %v1327, %v1544
        %v1546 = vlaneseq
        %v1547 = vshrl.u32 %v1546, 7
        %v1548 = vsub.s32 1, %v1547
        %v1549 = vrot.slane %v1327, %v1548
        %v1550 = vlaneseq
        %v1551 = vshrl.u32 %v1550, 7
        %v1552 = vsub.s32 2, %v1551
        %v1553 = vrot.slane %v1327, %v1552
        %v1554 = vlaneseq
        %v1555 = vshrl.u32 %v1554, 7
        %v1556 = vsub.s32 3, %v1555
        %v1557 = vrot.slane %v1327, %v1556
        %v1558 = vlaneseq
        %v1559 = vshrl.u32 %v1558, 7
        %v1560 = vsub.s32 4, %v1559
        %v1561 = vrot.slane %v1327, %v1560
        %v1562 = vlaneseq
        %v1563 = vshrl.u32 %v1562, 7
        %v1564 = vsub.s32 5, %v1563
        %v1565 = vrot.slane %v1327, %v1564
        %v1566 = vlaneseq
        %v1567 = vshrl.u32 %v1566, 7
        %v1568 = vsub.s32 6, %v1567
        %v1569 = vrot.slane %v1327, %v1568
        %v1570 = vlaneseq
        %v1571 = vshrl.u32 %v1570, 7
        %v1572 = vsub.s32 7, %v1571
        %v1573 = vrot.slane %v1327, %v1572
        %v1574 = vlaneseq
        %v1575 = vshrl.u32 %v1574, 7
        %v1576 = vsub.s32 0, %v1575
        %v1577 = vrot.slane %v1329, %v1576
        %v1578 = vlaneseq
        %v1579 = vshrl.u32 %v1578, 7
        %v1580 = vsub.s32 1, %v1579
        %v1581 = vrot.slane %v1329, %v1580
        %v1582 = vlaneseq
        %v1583 = vshrl.u32 %v1582, 7
        %v1584 = vsub.s32 2, %v1583
        %v1585 = vrot.slane %v1329, %v1584
        %v1586 = vlaneseq
        %v1587 = vshrl.u32 %v1586, 7
        %v1588 = vsub.s32 3, %v1587
        %v1589 = vrot.slane %v1329, %v1588
        %v1590 = vlaneseq
        %v1591 = vshrl.u32 %v1590, 7
        %v1592 = vsub.s32 4, %v1591
        %v1593 = vrot.slane %v1329, %v1592
        %v1594 = vlaneseq
        %v1595 = vshrl.u32 %v1594, 7
        %v1596 = vsub.s32 5, %v1595
        %v1597 = vrot.slane %v1329, %v1596
        %v1598 = vlaneseq
        %v1599 = vshrl.u32 %v1598, 7
        %v1600 = vsub.s32 6, %v1599
        %v1601 = vrot.slane %v1329, %v1600
        %v1602 = vlaneseq
        %v1603 = vshrl.u32 %v1602, 7
        %v1604 = vsub.s32 7, %v1603
        %v1605 = vrot.slane %v1329, %v1604
        %v1606 = vlaneseq
        %v1607 = vshrl.u32 %v1606, 7
        %v1608 = vsub.s32 0, %v1607
        %v1609 = vrot.slane %v1331, %v1608
        %v1610 = vlaneseq
        %v1611 = vshrl.u32 %v1610, 7
        %v1612 = vsub.s32 1, %v1611
        %v1613 = vrot.slane %v1331, %v1612
        %v1614 = vlaneseq
        %v1615 = vshrl.u32 %v1614, 7
        %v1616 = vsub.s32 2, %v1615
        %v1617 = vrot.slane %v1331, %v1616
        %v1618 = vlaneseq
        %v1619 = vshrl.u32 %v1618, 7
        %v1620 = vsub.s32 3, %v1619
        %v1621 = vrot.slane %v1331, %v1620
        %v1622 = vlaneseq
        %v1623 = vshrl.u32 %v1622, 7
        %v1624 = vsub.s32 4, %v1623
        %v1625 = vrot.slane %v1331, %v1624
        %v1626 = vlaneseq
        %v1627 = vshrl.u32 %v1626, 7
        %v1628 = vsub.s32 5, %v1627
        %v1629 = vrot.slane %v1331, %v1628
        %v1630 = vlaneseq
        %v1631 = vshrl.u32 %v1630, 7
        %v1632 = vsub.s32 6, %v1631
        %v1633 = vrot.slane %v1331, %v1632
        %v1634 = vlaneseq
        %v1635 = vshrl.u32 %v1634, 7
        %v1636 = vsub.s32 7, %v1635
        %v1637 = vrot.slane %v1331, %v1636
        %v1638 = vlaneseq
        %v1639 = vshrl.u32 %v1638, 7
        %v1640 = vsub.s32 0, %v1639
        %v1641 = vrot.slane %v1333, %v1640
        %v1642 = vlaneseq
        %v1643 = vshrl.u32 %v1642, 7
        %v1644 = vsub.s32 1, %v1643
        %v1645 = vrot.slane %v1333, %v1644
        %v1646 = vlaneseq
        %v1647 = vshrl.u32 %v1646, 7
        %v1648 = vsub.s32 2, %v1647
        %v1649 = vrot.slane %v1333, %v1648
        %v1650 = vlaneseq
        %v1651 = vshrl.u32 %v1650, 7
        %v1652 = vsub.s32 3, %v1651
        %v1653 = vrot.slane %v1333, %v1652
        %v1654 = vlaneseq
        %v1655 = vshrl.u32 %v1654, 7
        %v1656 = vsub.s32 4, %v1655
        %v1657 = vrot.slane %v1333, %v1656
        %v1658 = vlaneseq
        %v1659 = vshrl.u32 %v1658, 7
        %v1660 = vsub.s32 5, %v1659
        %v1661 = vrot.slane %v1333, %v1660
        %v1662 = vlaneseq
        %v1663 = vshrl.u32 %v1662, 7
        %v1664 = vsub.s32 6, %v1663
        %v1665 = vrot.slane %v1333, %v1664
        %v1666 = vlaneseq
        %v1667 = vshrl.u32 %v1666, 7
        %v1668 = vsub.s32 7, %v1667
        %v1669 = vrot.slane %v1333, %v1668
        %v1670 = vlaneseq
        %v1671 = vshrl.u32 %v1670, 7
        %v1672 = vsub.s32 0, %v1671
        %v1673 = vrot.slane %v1335, %v1672
        %v1674 = vlaneseq
        %v1675 = vshrl.u32 %v1674, 7
        %v1676 = vsub.s32 1, %v1675
        %v1677 = vrot.slane %v1335, %v1676
        %v1678 = vlaneseq
        %v1679 = vshrl.u32 %v1678, 7
        %v1680 = vsub.s32 2, %v1679
        %v1681 = vrot.slane %v1335, %v1680
        %v1682 = vlaneseq
        %v1683 = vshrl.u32 %v1682, 7
        %v1684 = vsub.s32 3, %v1683
        %v1685 = vrot.slane %v1335, %v1684
        %v1686 = vlaneseq
        %v1687 = vshrl.u32 %v1686, 7
        %v1688 = vsub.s32 4, %v1687
        %v1689 = vrot.slane %v1335, %v1688
        %v1690 = vlaneseq
        %v1691 = vshrl.u32 %v1690, 7
        %v1692 = vsub.s32 5, %v1691
        %v1693 = vrot.slane %v1335, %v1692
        %v1694 = vlaneseq
        %v1695 = vshrl.u32 %v1694, 7
        %v1696 = vsub.s32 6, %v1695
        %v1697 = vrot.slane %v1335, %v1696
        %v1698 = vlaneseq
        %v1699 = vshrl.u32 %v1698, 7
        %v1700 = vsub.s32 7, %v1699
        %v1701 = vrot.slane %v1335, %v1700
        %v1702 = vlaneseq
        %v1703 = vshrl.u32 %v1702, 7
        %v1704 = vsub.s32 0, %v1703
        %v1705 = vrot.slane %v1337, %v1704
        %v1706 = vlaneseq
        %v1707 = vshrl.u32 %v1706, 7
        %v1708 = vsub.s32 1, %v1707
        %v1709 = vrot.slane %v1337, %v1708
        %v1710 = vlaneseq
        %v1711 = vshrl.u32 %v1710, 7
        %v1712 = vsub.s32 2, %v1711
        %v1713 = vrot.slane %v1337, %v1712
        %v1714 = vlaneseq
        %v1715 = vshrl.u32 %v1714, 7
        %v1716 = vsub.s32 3, %v1715
        %v1717 = vrot.slane %v1337, %v1716
        %v1718 = vlaneseq
        %v1719 = vshrl.u32 %v1718, 7
        %v1720 = vsub.s32 4, %v1719
        %v1721 = vrot.slane %v1337, %v1720
        %v1722 = vlaneseq
        %v1723 = vshrl.u32 %v1722, 7
        %v1724 = vsub.s32 5, %v1723
        %v1725 = vrot.slane %v1337, %v1724
        %v1726 = vlaneseq
        %v1727 = vshrl.u32 %v1726, 7
        %v1728 = vsub.s32 6, %v1727
        %v1729 = vrot.slane %v1337, %v1728
        %v1730 = vlaneseq
        %v1731 = vshrl.u32 %v1730, 7
        %v1732 = vsub.s32 7, %v1731
        %v1733 = vrot.slane %v1337, %v1732
        %v1734 = vlaneseq
        %v1735 = vshrl.u32 %v1734, 7
        %v1736 = vsub.s32 0, %v1735
        %v1737 = vrot.slane %v1339, %v1736
        %v1738 = vlaneseq
        %v1739 = vshrl.u32 %v1738, 7
        %v1740 = vsub.s32 1, %v1739
        %v1741 = vrot.slane %v1339, %v1740
        %v1742 = vlaneseq
        %v1743 = vshrl.u32 %v1742, 7
        %v1744 = vsub.s32 2, %v1743
        %v1745 = vrot.slane %v1339, %v1744
        %v1746 = vlaneseq
        %v1747 = vshrl.u32 %v1746, 7
        %v1748 = vsub.s32 3, %v1747
        %v1749 = vrot.slane %v1339, %v1748
        %v1750 = vlaneseq
        %v1751 = vshrl.u32 %v1750, 7
        %v1752 = vsub.s32 4, %v1751
        %v1753 = vrot.slane %v1339, %v1752
        %v1754 = vlaneseq
        %v1755 = vshrl.u32 %v1754, 7
        %v1756 = vsub.s32 5, %v1755
        %v1757 = vrot.slane %v1339, %v1756
        %v1758 = vlaneseq
        %v1759 = vshrl.u32 %v1758, 7
        %v1760 = vsub.s32 6, %v1759
        %v1761 = vrot.slane %v1339, %v1760
        %v1762 = vlaneseq
        %v1763 = vshrl.u32 %v1762, 7
        %v1764 = vsub.s32 7, %v1763
        %v1765 = vrot.slane %v1339, %v1764
        %v1766 = vlaneseq
        %v1767 = vshrl.u32 %v1766, 7
        %v1768 = vsub.s32 0, %v1767
        %v1769 = vrot.slane %v1341, %v1768
        %v1770 = vlaneseq
        %v1771 = vshrl.u32 %v1770, 7
        %v1772 = vsub.s32 1, %v1771
        %v1773 = vrot.slane %v1341, %v1772
        %v1774 = vlaneseq
        %v1775 = vshrl.u32 %v1774, 7
        %v1776 = vsub.s32 2, %v1775
        %v1777 = vrot.slane %v1341, %v1776
        %v1778 = vlaneseq
        %v1779 = vshrl.u32 %v1778, 7
        %v1780 = vsub.s32 3, %v1779
        %v1781 = vrot.slane %v1341, %v1780
        %v1782 = vlaneseq
        %v1783 = vshrl.u32 %v1782, 7
        %v1784 = vsub.s32 4, %v1783
        %v1785 = vrot.slane %v1341, %v1784
        %v1786 = vlaneseq
        %v1787 = vshrl.u32 %v1786, 7
        %v1788 = vsub.s32 5, %v1787
        %v1789 = vrot.slane %v1341, %v1788
        %v1790 = vlaneseq
        %v1791 = vshrl.u32 %v1790, 7
        %v1792 = vsub.s32 6, %v1791
        %v1793 = vrot.slane %v1341, %v1792
        %v1794 = vlaneseq
        %v1795 = vshrl.u32 %v1794, 7
        %v1796 = vsub.s32 7, %v1795
        %v1797 = vrot.slane %v1341, %v1796
        %v1798 = vlaneseq
        %v1799 = vshrl.u32 %v1798, 7
        %v1800 = vsub.s32 0, %v1799
        %v1801 = vrot.slane %v1343, %v1800
        %v1802 = vlaneseq
        %v1803 = vshrl.u32 %v1802, 7
        %v1804 = vsub.s32 1, %v1803
        %v1805 = vrot.slane %v1343, %v1804
        %v1806 = vlaneseq
        %v1807 = vshrl.u32 %v1806, 7
        %v1808 = vsub.s32 2, %v1807
        %v1809 = vrot.slane %v1343, %v1808
        %v1810 = vlaneseq
        %v1811 = vshrl.u32 %v1810, 7
        %v1812 = vsub.s32 3, %v1811
        %v1813 = vrot.slane %v1343, %v1812
        %v1814 = vlaneseq
        %v1815 = vshrl.u32 %v1814, 7
        %v1816 = vsub.s32 4, %v1815
        %v1817 = vrot.slane %v1343, %v1816
        %v1818 = vlaneseq
        %v1819 = vshrl.u32 %v1818, 7
        %v1820 = vsub.s32 5, %v1819
        %v1821 = vrot.slane %v1343, %v1820
        %v1822 = vlaneseq
        %v1823 = vshrl.u32 %v1822, 7
        %v1824 = vsub.s32 6, %v1823
        %v1825 = vrot.slane %v1343, %v1824
        %v1826 = vlaneseq
        %v1827 = vshrl.u32 %v1826, 7
        %v1828 = vsub.s32 7, %v1827
        %v1829 = vrot.slane %v1343, %v1828
        %v1830 = vlaneseq
        %v1831 = vshrl.u32 %v1830, 7
        %v1832 = vsub.s32 0, %v1831
        %v1833 = vrot.slane %v1345, %v1832
        %v1834 = vlaneseq
        %v1835 = vshrl.u32 %v1834, 7
        %v1836 = vsub.s32 1, %v1835
        %v1837 = vrot.slane %v1345, %v1836
        %v1838 = vlaneseq
        %v1839 = vshrl.u32 %v1838, 7
        %v1840 = vsub.s32 2, %v1839
        %v1841 = vrot.slane %v1345, %v1840
        %v1842 = vlaneseq
        %v1843 = vshrl.u32 %v1842, 7
        %v1844 = vsub.s32 3, %v1843
        %v1845 = vrot.slane %v1345, %v1844
        %v1846 = vlaneseq
        %v1847 = vshrl.u32 %v1846, 7
        %v1848 = vsub.s32 4, %v1847
        %v1849 = vrot.slane %v1345, %v1848
        %v1850 = vlaneseq
        %v1851 = vshrl.u32 %v1850, 7
        %v1852 = vsub.s32 5, %v1851
        %v1853 = vrot.slane %v1345, %v1852
        %v1854 = vlaneseq
        %v1855 = vshrl.u32 %v1854, 7
        %v1856 = vsub.s32 6, %v1855
        %v1857 = vrot.slane %v1345, %v1856
        %v1858 = vlaneseq
        %v1859 = vshrl.u32 %v1858, 7
        %v1860 = vsub.s32 7, %v1859
        %v1861 = vrot.slane %v1345, %v1860
        %v1862 = vlaneseq
        %v1863 = vshrl.u32 %v1862, 7
        %v1864 = vsub.s32 0, %v1863
        %v1865 = vrot.slane %v1347, %v1864
        %v1866 = vlaneseq
        %v1867 = vshrl.u32 %v1866, 7
        %v1868 = vsub.s32 1, %v1867
        %v1869 = vrot.slane %v1347, %v1868
        %v1870 = vlaneseq
        %v1871 = vshrl.u32 %v1870, 7
        %v1872 = vsub.s32 2, %v1871
        %v1873 = vrot.slane %v1347, %v1872
        %v1874 = vlaneseq
        %v1875 = vshrl.u32 %v1874, 7
        %v1876 = vsub.s32 3, %v1875
        %v1877 = vrot.slane %v1347, %v1876
        %v1878 = vlaneseq
        %v1879 = vshrl.u32 %v1878, 7
        %v1880 = vsub.s32 4, %v1879
        %v1881 = vrot.slane %v1347, %v1880
        %v1882 = vlaneseq
        %v1883 = vshrl.u32 %v1882, 7
        %v1884 = vsub.s32 5, %v1883
        %v1885 = vrot.slane %v1347, %v1884
        %v1886 = vlaneseq
        %v1887 = vshrl.u32 %v1886, 7
        %v1888 = vsub.s32 6, %v1887
        %v1889 = vrot.slane %v1347, %v1888
        %v1890 = vlaneseq
        %v1891 = vshrl.u32 %v1890, 7
        %v1892 = vsub.s32 7, %v1891
        %v1893 = vrot.slane %v1347, %v1892
        %v1894 = vlaneseq
        %v1895 = vshrl.u32 %v1894, 7
        %v1896 = vsub.s32 0, %v1895
        %v1897 = vrot.slane %v1349, %v1896
        %v1898 = vlaneseq
        %v1899 = vshrl.u32 %v1898, 7
        %v1900 = vsub.s32 1, %v1899
        %v1901 = vrot.slane %v1349, %v1900
        %v1902 = vlaneseq
        %v1903 = vshrl.u32 %v1902, 7
        %v1904 = vsub.s32 2, %v1903
        %v1905 = vrot.slane %v1349, %v1904
        %v1906 = vlaneseq
        %v1907 = vshrl.u32 %v1906, 7
        %v1908 = vsub.s32 3, %v1907
        %v1909 = vrot.slane %v1349, %v1908
        %v1910 = vlaneseq
        %v1911 = vshrl.u32 %v1910, 7
        %v1912 = vsub.s32 4, %v1911
        %v1913 = vrot.slane %v1349, %v1912
        %v1914 = vlaneseq
        %v1915 = vshrl.u32 %v1914, 7
        %v1916 = vsub.s32 5, %v1915
        %v1917 = vrot.slane %v1349, %v1916
        %v1918 = vlaneseq
        %v1919 = vshrl.u32 %v1918, 7
        %v1920 = vsub.s32 6, %v1919
        %v1921 = vrot.slane %v1349, %v1920
        %v1922 = vlaneseq
        %v1923 = vshrl.u32 %v1922, 7
        %v1924 = vsub.s32 7, %v1923
        %v1925 = vrot.slane %v1349, %v1924
        %v1926 = vlaneseq
        %v1927 = vshrl.u32 %v1926, 7
        %v1928 = vsub.s32 0, %v1927
        %v1929 = vrot.slane %v1351, %v1928
        %v1930 = vlaneseq
        %v1931 = vshrl.u32 %v1930, 7
        %v1932 = vsub.s32 1, %v1931
        %v1933 = vrot.slane %v1351, %v1932
        %v1934 = vlaneseq
        %v1935 = vshrl.u32 %v1934, 7
        %v1936 = vsub.s32 2, %v1935
        %v1937 = vrot.slane %v1351, %v1936
        %v1938 = vlaneseq
        %v1939 = vshrl.u32 %v1938, 7
        %v1940 = vsub.s32 3, %v1939
        %v1941 = vrot.slane %v1351, %v1940
        %v1942 = vlaneseq
        %v1943 = vshrl.u32 %v1942, 7
        %v1944 = vsub.s32 4, %v1943
        %v1945 = vrot.slane %v1351, %v1944
        %v1946 = vlaneseq
        %v1947 = vshrl.u32 %v1946, 7
        %v1948 = vsub.s32 5, %v1947
        %v1949 = vrot.slane %v1351, %v1948
        %v1950 = vlaneseq
        %v1951 = vshrl.u32 %v1950, 7
        %v1952 = vsub.s32 6, %v1951
        %v1953 = vrot.slane %v1351, %v1952
        %v1954 = vlaneseq
        %v1955 = vshrl.u32 %v1954, 7
        %v1956 = vsub.s32 7, %v1955
        %v1957 = vrot.slane %v1351, %v1956
        %v1958 = vlaneseq
        %v1959 = vshrl.u32 %v1958, 7
        %v1960 = vsub.s32 0, %v1959
        %v1961 = vrot.slane %v1353, %v1960
        %v1962 = vlaneseq
        %v1963 = vshrl.u32 %v1962, 7
        %v1964 = vsub.s32 1, %v1963
        %v1965 = vrot.slane %v1353, %v1964
        %v1966 = vlaneseq
        %v1967 = vshrl.u32 %v1966, 7
        %v1968 = vsub.s32 2, %v1967
        %v1969 = vrot.slane %v1353, %v1968
        %v1970 = vlaneseq
        %v1971 = vshrl.u32 %v1970, 7
        %v1972 = vsub.s32 3, %v1971
        %v1973 = vrot.slane %v1353, %v1972
        %v1974 = vlaneseq
        %v1975 = vshrl.u32 %v1974, 7
        %v1976 = vsub.s32 4, %v1975
        %v1977 = vrot.slane %v1353, %v1976
        %v1978 = vlaneseq
        %v1979 = vshrl.u32 %v1978, 7
        %v1980 = vsub.s32 5, %v1979
        %v1981 = vrot.slane %v1353, %v1980
        %v1982 = vlaneseq
        %v1983 = vshrl.u32 %v1982, 7
        %v1984 = vsub.s32 6, %v1983
        %v1985 = vrot.slane %v1353, %v1984
        %v1986 = vlaneseq
        %v1987 = vshrl.u32 %v1986, 7
        %v1988 = vsub.s32 7, %v1987
        %v1989 = vrot.slane %v1353, %v1988
        %v1990 = vlaneseq
        %v1991 = vshrl.u32 %v1990, 7
        %v1992 = vsub.s32 0, %v1991
        %v1993 = vrot.slane %v1355, %v1992
        %v1994 = vlaneseq
        %v1995 = vshrl.u32 %v1994, 7
        %v1996 = vsub.s32 1, %v1995
        %v1997 = vrot.slane %v1355, %v1996
        %v1998 = vlaneseq
        %v1999 = vshrl.u32 %v1998, 7
        %v2000 = vsub.s32 2, %v1999
        %v2001 = vrot.slane %v1355, %v2000
        %v2002 = vlaneseq
        %v2003 = vshrl.u32 %v2002, 7
        %v2004 = vsub.s32 3, %v2003
        %v2005 = vrot.slane %v1355, %v2004
        %v2006 = vlaneseq
        %v2007 = vshrl.u32 %v2006, 7
        %v2008 = vsub.s32 4, %v2007
        %v2009 = vrot.slane %v1355, %v2008
        %v2010 = vlaneseq
        %v2011 = vshrl.u32 %v2010, 7
        %v2012 = vsub.s32 5, %v2011
        %v2013 = vrot.slane %v1355, %v2012
        %v2014 = vlaneseq
        %v2015 = vshrl.u32 %v2014, 7
        %v2016 = vsub.s32 6, %v2015
        %v2017 = vrot.slane %v1355, %v2016
        %v2018 = vlaneseq
        %v2019 = vshrl.u32 %v2018, 7
        %v2020 = vsub.s32 7, %v2019
        %v2021 = vrot.slane %v1355, %v2020
        %v2022 = vlaneseq
        %v2023 = vshrl.u32 %v2022, 7
        %v2024 = vsub.s32 0, %v2023
        %v2025 = vrot.slane %v1357, %v2024
        %v2026 = vlaneseq
        %v2027 = vshrl.u32 %v2026, 7
        %v2028 = vsub.s32 1, %v2027
        %v2029 = vrot.slane %v1357, %v2028
        %v2030 = vlaneseq
        %v2031 = vshrl.u32 %v2030, 7
        %v2032 = vsub.s32 2, %v2031
        %v2033 = vrot.slane %v1357, %v2032
        %v2034 = vlaneseq
        %v2035 = vshrl.u32 %v2034, 7
        %v2036 = vsub.s32 3, %v2035
        %v2037 = vrot.slane %v1357, %v2036
        %v2038 = vlaneseq
        %v2039 = vshrl.u32 %v2038, 7
        %v2040 = vsub.s32 4, %v2039
        %v2041 = vrot.slane %v1357, %v2040
        %v2042 = vlaneseq
        %v2043 = vshrl.u32 %v2042, 7
        %v2044 = vsub.s32 5, %v2043
        %v2045 = vrot.slane %v1357, %v2044
        %v2046 = vlaneseq
        %v2047 = vshrl.u32 %v2046, 7
        %v2048 = vsub.s32 6, %v2047
        %v2049 = vrot.slane %v1357, %v2048
        %v2050 = vlaneseq
        %v2051 = vshrl.u32 %v2050, 7
        %v2052 = vsub.s32 7, %v2051
        %v2053 = vrot.slane %v1357, %v2052
        %v2054 = vlaneseq
        %v2055 = vshrl.u32 %v2054, 7
        %v2056 = vsub.s32 0, %v2055
        %v2057 = vrot.slane %v1359, %v2056
        %v2058 = vlaneseq
        %v2059 = vshrl.u32 %v2058, 7
        %v2060 = vsub.s32 1, %v2059
        %v2061 = vrot.slane %v1359, %v2060
        %v2062 = vlaneseq
        %v2063 = vshrl.u32 %v2062, 7
        %v2064 = vsub.s32 2, %v2063
        %v2065 = vrot.slane %v1359, %v2064
        %v2066 = vlaneseq
        %v2067 = vshrl.u32 %v2066, 7
        %v2068 = vsub.s32 3, %v2067
        %v2069 = vrot.slane %v1359, %v2068
        %v2070 = vlaneseq
        %v2071 = vshrl.u32 %v2070, 7
        %v2072 = vsub.s32 4, %v2071
        %v2073 = vrot.slane %v1359, %v2072
        %v2074 = vlaneseq
        %v2075 = vshrl.u32 %v2074, 7
        %v2076 = vsub.s32 5, %v2075
        %v2077 = vrot.slane %v1359, %v2076
        %v2078 = vlaneseq
        %v2079 = vshrl.u32 %v2078, 7
        %v2080 = vsub.s32 6, %v2079
        %v2081 = vrot.slane %v1359, %v2080
        %v2082 = vlaneseq
        %v2083 = vshrl.u32 %v2082, 7
        %v2084 = vsub.s32 7, %v2083
        %v2085 = vrot.slane %v1359, %v2084
        %v2086 = vlaneseq
        %v2087 = vshrl.u32 %v2086, 7
        %v2088 = vsub.s32 0, %v2087
        %v2089 = vrot.slane %v1361, %v2088
        %v2090 = vlaneseq
        %v2091 = vshrl.u32 %v2090, 7
        %v2092 = vsub.s32 1, %v2091
        %v2093 = vrot.slane %v1361, %v2092
        %v2094 = vlaneseq
        %v2095 = vshrl.u32 %v2094, 7
        %v2096 = vsub.s32 2, %v2095
        %v2097 = vrot.slane %v1361, %v2096
        %v2098 = vlaneseq
        %v2099 = vshrl.u32 %v2098, 7
        %v2100 = vsub.s32 3, %v2099
        %v2101 = vrot.slane %v1361, %v2100
        %v2102 = vlaneseq
        %v2103 = vshrl.u32 %v2102, 7
        %v2104 = vsub.s32 4, %v2103
        %v2105 = vrot.slane %v1361, %v2104
        %v2106 = vlaneseq
        %v2107 = vshrl.u32 %v2106, 7
        %v2108 = vsub.s32 5, %v2107
        %v2109 = vrot.slane %v1361, %v2108
        %v2110 = vlaneseq
        %v2111 = vshrl.u32 %v2110, 7
        %v2112 = vsub.s32 6, %v2111
        %v2113 = vrot.slane %v1361, %v2112
        %v2114 = vlaneseq
        %v2115 = vshrl.u32 %v2114, 7
        %v2116 = vsub.s32 7, %v2115
        %v2117 = vrot.slane %v1361, %v2116
        %v2118 = vlaneseq
        %v2119 = vshrl.u32 %v2118, 7
        %v2120 = vsub.s32 0, %v2119
        %v2121 = vrot.slane %v1363, %v2120
        %v2122 = vlaneseq
        %v2123 = vshrl.u32 %v2122, 7
        %v2124 = vsub.s32 1, %v2123
        %v2125 = vrot.slane %v1363, %v2124
        %v2126 = vlaneseq
        %v2127 = vshrl.u32 %v2126, 7
        %v2128 = vsub.s32 2, %v2127
        %v2129 = vrot.slane %v1363, %v2128
        %v2130 = vlaneseq
        %v2131 = vshrl.u32 %v2130, 7
        %v2132 = vsub.s32 3, %v2131
        %v2133 = vrot.slane %v1363, %v2132
        %v2134 = vlaneseq
        %v2135 = vshrl.u32 %v2134, 7
        %v2136 = vsub.s32 4, %v2135
        %v2137 = vrot.slane %v1363, %v2136
        %v2138 = vlaneseq
        %v2139 = vshrl.u32 %v2138, 7
        %v2140 = vsub.s32 5, %v2139
        %v2141 = vrot.slane %v1363, %v2140
        %v2142 = vlaneseq
        %v2143 = vshrl.u32 %v2142, 7
        %v2144 = vsub.s32 6, %v2143
        %v2145 = vrot.slane %v1363, %v2144
        %v2146 = vlaneseq
        %v2147 = vshrl.u32 %v2146, 7
        %v2148 = vsub.s32 7, %v2147
        %v2149 = vrot.slane %v1363, %v2148
        %v2150 = vlaneseq
        %v2151 = vshrl.u32 %v2150, 7
        %v2152 = vsub.s32 0, %v2151
        %v2153 = vrot.slane %v1365, %v2152
        %v2154 = vlaneseq
        %v2155 = vshrl.u32 %v2154, 7
        %v2156 = vsub.s32 1, %v2155
        %v2157 = vrot.slane %v1365, %v2156
        %v2158 = vlaneseq
        %v2159 = vshrl.u32 %v2158, 7
        %v2160 = vsub.s32 2, %v2159
        %v2161 = vrot.slane %v1365, %v2160
        %v2162 = vlaneseq
        %v2163 = vshrl.u32 %v2162, 7
        %v2164 = vsub.s32 3, %v2163
        %v2165 = vrot.slane %v1365, %v2164
        %v2166 = vlaneseq
        %v2167 = vshrl.u32 %v2166, 7
        %v2168 = vsub.s32 4, %v2167
        %v2169 = vrot.slane %v1365, %v2168
        %v2170 = vlaneseq
        %v2171 = vshrl.u32 %v2170, 7
        %v2172 = vsub.s32 5, %v2171
        %v2173 = vrot.slane %v1365, %v2172
        %v2174 = vlaneseq
        %v2175 = vshrl.u32 %v2174, 7
        %v2176 = vsub.s32 6, %v2175
        %v2177 = vrot.slane %v1365, %v2176
        %v2178 = vlaneseq
        %v2179 = vshrl.u32 %v2178, 7
        %v2180 = vsub.s32 7, %v2179
        %v2181 = vrot.slane %v1365, %v2180
        %v2182 = vlaneseq
        %v2183 = vshrl.u32 %v2182, 7
        %v2184 = vsub.s32 0, %v2183
        %v2185 = vrot.slane %v1367, %v2184
        %v2186 = vlaneseq
        %v2187 = vshrl.u32 %v2186, 7
        %v2188 = vsub.s32 1, %v2187
        %v2189 = vrot.slane %v1367, %v2188
        %v2190 = vlaneseq
        %v2191 = vshrl.u32 %v2190, 7
        %v2192 = vsub.s32 2, %v2191
        %v2193 = vrot.slane %v1367, %v2192
        %v2194 = vlaneseq
        %v2195 = vshrl.u32 %v2194, 7
        %v2196 = vsub.s32 3, %v2195
        %v2197 = vrot.slane %v1367, %v2196
        %v2198 = vlaneseq
        %v2199 = vshrl.u32 %v2198, 7
        %v2200 = vsub.s32 4, %v2199
        %v2201 = vrot.slane %v1367, %v2200
        %v2202 = vlaneseq
        %v2203 = vshrl.u32 %v2202, 7
        %v2204 = vsub.s32 5, %v2203
        %v2205 = vrot.slane %v1367, %v2204
        %v2206 = vlaneseq
        %v2207 = vshrl.u32 %v2206, 7
        %v2208 = vsub.s32 6, %v2207
        %v2209 = vrot.slane %v1367, %v2208
        %v2210 = vlaneseq
        %v2211 = vshrl.u32 %v2210, 7
        %v2212 = vsub.s32 7, %v2211
        %v2213 = vrot.slane %v1367, %v2212
        %v2214 = vlaneseq
        %v2215 = vshrl.u32 %v2214, 7
        %v2216 = vsub.s32 0, %v2215
        %v2217 = vrot.slane %v1369, %v2216
        %v2218 = vlaneseq
        %v2219 = vshrl.u32 %v2218, 7
        %v2220 = vsub.s32 1, %v2219
        %v2221 = vrot.slane %v1369, %v2220
        %v2222 = vlaneseq
        %v2223 = vshrl.u32 %v2222, 7
        %v2224 = vsub.s32 2, %v2223
        %v2225 = vrot.slane %v1369, %v2224
        %v2226 = vlaneseq
        %v2227 = vshrl.u32 %v2226, 7
        %v2228 = vsub.s32 3, %v2227
        %v2229 = vrot.slane %v1369, %v2228
        %v2230 = vlaneseq
        %v2231 = vshrl.u32 %v2230, 7
        %v2232 = vsub.s32 4, %v2231
        %v2233 = vrot.slane %v1369, %v2232
        %v2234 = vlaneseq
        %v2235 = vshrl.u32 %v2234, 7
        %v2236 = vsub.s32 5, %v2235
        %v2237 = vrot.slane %v1369, %v2236
        %v2238 = vlaneseq
        %v2239 = vshrl.u32 %v2238, 7
        %v2240 = vsub.s32 6, %v2239
        %v2241 = vrot.slane %v1369, %v2240
        %v2242 = vlaneseq
        %v2243 = vshrl.u32 %v2242, 7
        %v2244 = vsub.s32 7, %v2243
        %v2245 = vrot.slane %v1369, %v2244
        %v2246 = vlaneseq
        %v2247 = vshrl.u32 %v2246, 7
        %v2248 = vsub.s32 0, %v2247
        %v2249 = vrot.slane %v1371, %v2248
        %v2250 = vlaneseq
        %v2251 = vshrl.u32 %v2250, 7
        %v2252 = vsub.s32 1, %v2251
        %v2253 = vrot.slane %v1371, %v2252
        %v2254 = vlaneseq
        %v2255 = vshrl.u32 %v2254, 7
        %v2256 = vsub.s32 2, %v2255
        %v2257 = vrot.slane %v1371, %v2256
        %v2258 = vlaneseq
        %v2259 = vshrl.u32 %v2258, 7
        %v2260 = vsub.s32 3, %v2259
        %v2261 = vrot.slane %v1371, %v2260
        %v2262 = vlaneseq
        %v2263 = vshrl.u32 %v2262, 7
        %v2264 = vsub.s32 4, %v2263
        %v2265 = vrot.slane %v1371, %v2264
        %v2266 = vlaneseq
        %v2267 = vshrl.u32 %v2266, 7
        %v2268 = vsub.s32 5, %v2267
        %v2269 = vrot.slane %v1371, %v2268
        %v2270 = vlaneseq
        %v2271 = vshrl.u32 %v2270, 7
        %v2272 = vsub.s32 6, %v2271
        %v2273 = vrot.slane %v1371, %v2272
        %v2274 = vlaneseq
        %v2275 = vshrl.u32 %v2274, 7
        %v2276 = vsub.s32 7, %v2275
        %v2277 = vrot.slane %v1371, %v2276
        %v2278 = vlaneseq
        %v2279 = vshrl.u32 %v2278, 7
        %v2280 = vsub.s32 0, %v2279
        %v2281 = vrot.slane %v1373, %v2280
        %v2282 = vlaneseq
        %v2283 = vshrl.u32 %v2282, 7
        %v2284 = vsub.s32 1, %v2283
        %v2285 = vrot.slane %v1373, %v2284
        %v2286 = vlaneseq
        %v2287 = vshrl.u32 %v2286, 7
        %v2288 = vsub.s32 2, %v2287
        %v2289 = vrot.slane %v1373, %v2288
        %v2290 = vlaneseq
        %v2291 = vshrl.u32 %v2290, 7
        %v2292 = vsub.s32 3, %v2291
        %v2293 = vrot.slane %v1373, %v2292
        %v2294 = vlaneseq
        %v2295 = vshrl.u32 %v2294, 7
        %v2296 = vsub.s32 4, %v2295
        %v2297 = vrot.slane %v1373, %v2296
        %v2298 = vlaneseq
        %v2299 = vshrl.u32 %v2298, 7
        %v2300 = vsub.s32 5, %v2299
        %v2301 = vrot.slane %v1373, %v2300
        %v2302 = vlaneseq
        %v2303 = vshrl.u32 %v2302, 7
        %v2304 = vsub.s32 6, %v2303
        %v2305 = vrot.slane %v1373, %v2304
        %v2306 = vlaneseq
        %v2307 = vshrl.u32 %v2306, 7
        %v2308 = vsub.s32 7, %v2307
        %v2309 = vrot.slane %v1373, %v2308
        %v2310 = vlaneseq
        %v2311 = vshrl.u32 %v2310, 7
        %v2312 = vsub.s32 0, %v2311
        %v2313 = vrot.slane %v1375, %v2312
        %v2314 = vlaneseq
        %v2315 = vshrl.u32 %v2314, 7
        %v2316 = vsub.s32 1, %v2315
        %v2317 = vrot.slane %v1375, %v2316
        %v2318 = vlaneseq
        %v2319 = vshrl.u32 %v2318, 7
        %v2320 = vsub.s32 2, %v2319
        %v2321 = vrot.slane %v1375, %v2320
        %v2322 = vlaneseq
        %v2323 = vshrl.u32 %v2322, 7
        %v2324 = vsub.s32 3, %v2323
        %v2325 = vrot.slane %v1375, %v2324
        %v2326 = vlaneseq
        %v2327 = vshrl.u32 %v2326, 7
        %v2328 = vsub.s32 4, %v2327
        %v2329 = vrot.slane %v1375, %v2328
        %v2330 = vlaneseq
        %v2331 = vshrl.u32 %v2330, 7
        %v2332 = vsub.s32 5, %v2331
        %v2333 = vrot.slane %v1375, %v2332
        %v2334 = vlaneseq
        %v2335 = vshrl.u32 %v2334, 7
        %v2336 = vsub.s32 6, %v2335
        %v2337 = vrot.slane %v1375, %v2336
        %v2338 = vlaneseq
        %v2339 = vshrl.u32 %v2338, 7
        %v2340 = vsub.s32 7, %v2339
        %v2341 = vrot.slane %v1375, %v2340
        %v2342 = vlaneseq
        %v2343 = vshrl.u32 %v2342, 7
        %v2344 = vsub.s32 0, %v2343
        %v2345 = vrot.slane %v1377, %v2344
        %v2346 = vlaneseq
        %v2347 = vshrl.u32 %v2346, 7
        %v2348 = vsub.s32 1, %v2347
        %v2349 = vrot.slane %v1377, %v2348
        %v2350 = vlaneseq
        %v2351 = vshrl.u32 %v2350, 7
        %v2352 = vsub.s32 2, %v2351
        %v2353 = vrot.slane %v1377, %v2352
        %v2354 = vlaneseq
        %v2355 = vshrl.u32 %v2354, 7
        %v2356 = vsub.s32 3, %v2355
        %v2357 = vrot.slane %v1377, %v2356
        %v2358 = vlaneseq
        %v2359 = vshrl.u32 %v2358, 7
        %v2360 = vsub.s32 4, %v2359
        %v2361 = vrot.slane %v1377, %v2360
        %v2362 = vlaneseq
        %v2363 = vshrl.u32 %v2362, 7
        %v2364 = vsub.s32 5, %v2363
        %v2365 = vrot.slane %v1377, %v2364
        %v2366 = vlaneseq
        %v2367 = vshrl.u32 %v2366, 7
        %v2368 = vsub.s32 6, %v2367
        %v2369 = vrot.slane %v1377, %v2368
        %v2370 = vlaneseq
        %v2371 = vshrl.u32 %v2370, 7
        %v2372 = vsub.s32 7, %v2371
        %v2373 = vrot.slane %v1377, %v2372
        %v2374 = vlaneseq
        %v2375 = vshrl.u32 %v2374, 7
        %v2376 = vsub.s32 0, %v2375
        %v2377 = vrot.slane %v1379, %v2376
        %v2378 = vlaneseq
        %v2379 = vshrl.u32 %v2378, 7
        %v2380 = vsub.s32 1, %v2379
        %v2381 = vrot.slane %v1379, %v2380
        %v2382 = vlaneseq
        %v2383 = vshrl.u32 %v2382, 7
        %v2384 = vsub.s32 2, %v2383
        %v2385 = vrot.slane %v1379, %v2384
        %v2386 = vlaneseq
        %v2387 = vshrl.u32 %v2386, 7
        %v2388 = vsub.s32 3, %v2387
        %v2389 = vrot.slane %v1379, %v2388
        %v2390 = vlaneseq
        %v2391 = vshrl.u32 %v2390, 7
        %v2392 = vsub.s32 4, %v2391
        %v2393 = vrot.slane %v1379, %v2392
        %v2394 = vlaneseq
        %v2395 = vshrl.u32 %v2394, 7
        %v2396 = vsub.s32 5, %v2395
        %v2397 = vrot.slane %v1379, %v2396
        %v2398 = vlaneseq
        %v2399 = vshrl.u32 %v2398, 7
        %v2400 = vsub.s32 6, %v2399
        %v2401 = vrot.slane %v1379, %v2400
        %v2402 = vlaneseq
        %v2403 = vshrl.u32 %v2402, 7
        %v2404 = vsub.s32 7, %v2403
        %v2405 = vrot.slane %v1379, %v2404
        %v2406 = vlaneseq
        %v2407 = vshrl.u32 %v2406, 7
        %v2408 = vsub.s32 0, %v2407
        %v2409 = vrot.slane %v1381, %v2408
        %v2410 = vlaneseq
        %v2411 = vshrl.u32 %v2410, 7
        %v2412 = vsub.s32 1, %v2411
        %v2413 = vrot.slane %v1381, %v2412
        %v2414 = vlaneseq
        %v2415 = vshrl.u32 %v2414, 7
        %v2416 = vsub.s32 2, %v2415
        %v2417 = vrot.slane %v1381, %v2416
        %v2418 = vlaneseq
        %v2419 = vshrl.u32 %v2418, 7
        %v2420 = vsub.s32 3, %v2419
        %v2421 = vrot.slane %v1381, %v2420
        %v2422 = vlaneseq
        %v2423 = vshrl.u32 %v2422, 7
        %v2424 = vsub.s32 4, %v2423
        %v2425 = vrot.slane %v1381, %v2424
        %v2426 = vlaneseq
        %v2427 = vshrl.u32 %v2426, 7
        %v2428 = vsub.s32 5, %v2427
        %v2429 = vrot.slane %v1381, %v2428
        %v2430 = vlaneseq
        %v2431 = vshrl.u32 %v2430, 7
        %v2432 = vsub.s32 6, %v2431
        %v2433 = vrot.slane %v1381, %v2432
        %v2434 = vlaneseq
        %v2435 = vshrl.u32 %v2434, 7
        %v2436 = vsub.s32 7, %v2435
        %v2437 = vrot.slane %v1381, %v2436
        %v2438 = vcombine.low %v1417, %v1421
        %v2439 = vcombine.low %v1425, %v1429
        %v2440 = vcombine.low %v1433, %v1437
        %v2441 = vcombine.low %v1441, %v1445
        %v2443 = vunpack.c.l.s4 1966171168
        %v2444 = vunpack.c.0.s8 %v2443
        %v2445 = vlaneseq
        %v2446 = vshrl.u32 %v2445, 7
        %v2447 = vsub.s32 %v2444, %v2446
        %v2448 = vrot.slane %v2438, %v2447
        %v2450 = vunpack.c.l.s4 1966171168
        %v2451 = vunpack.c.0.s8 %v2450
        %v2452 = vlaneseq
        %v2453 = vshrl.u32 %v2452, 7
        %v2454 = vsub.s32 %v2451, %v2453
        %v2455 = vrot.slane %v2439, %v2454
        %v2457 = vunpack.c.l.s4 1966171168
        %v2458 = vunpack.c.0.s8 %v2457
        %v2459 = vlaneseq
        %v2460 = vshrl.u32 %v2459, 7
        %v2461 = vsub.s32 %v2458, %v2460
        %v2462 = vrot.slane %v2440, %v2461
        %v2464 = vunpack.c.l.s4 1966171168
        %v2465 = vunpack.c.0.s8 %v2464
        %v2466 = vlaneseq
        %v2467 = vshrl.u32 %v2466, 7
        %v2468 = vsub.s32 %v2465, %v2467
        %v2469 = vrot.slane %v2441, %v2468
        %v2470 = vcombine.low %v2448, %v2455
        %v2471 = vcombine.low %v2462, %v2469
        %v2473 = vunpack.c.l.s4 1966171168
        %v2474 = vunpack.c.0.s8 %v2473
        %v2475 = vlaneseq
        %v2476 = vshrl.u32 %v2475, 7
        %v2477 = vsub.s32 %v2474, %v2476
        %v2478 = vrot.slane %v2470, %v2477
        %v2480 = vunpack.c.l.s4 1966171168
        %v2481 = vunpack.c.0.s8 %v2480
        %v2482 = vlaneseq
        %v2483 = vshrl.u32 %v2482, 7
        %v2484 = vsub.s32 %v2481, %v2483
        %v2485 = vrot.slane %v2471, %v2484
        %v2486 = vcombine.low %v2478, %v2485
        %v2487 = vcombine.low %v1449, %v1453
        %v2488 = vcombine.low %v1457, %v1461
        %v2489 = vcombine.low %v1465, %v1469
        %v2490 = vcombine.low %v1473, %v1477
        %v2492 = vunpack.c.l.s4 1966171168
        %v2493 = vunpack.c.0.s8 %v2492
        %v2494 = vlaneseq
        %v2495 = vshrl.u32 %v2494, 7
        %v2496 = vsub.s32 %v2493, %v2495
        %v2497 = vrot.slane %v2487, %v2496
        %v2499 = vunpack.c.l.s4 1966171168
        %v2500 = vunpack.c.0.s8 %v2499
        %v2501 = vlaneseq
        %v2502 = vshrl.u32 %v2501, 7
        %v2503 = vsub.s32 %v2500, %v2502
        %v2504 = vrot.slane %v2488, %v2503
        %v2506 = vunpack.c.l.s4 1966171168
        %v2507 = vunpack.c.0.s8 %v2506
        %v2508 = vlaneseq
        %v2509 = vshrl.u32 %v2508, 7
        %v2510 = vsub.s32 %v2507, %v2509
        %v2511 = vrot.slane %v2489, %v2510
        %v2513 = vunpack.c.l.s4 1966171168
        %v2514 = vunpack.c.0.s8 %v2513
        %v2515 = vlaneseq
        %v2516 = vshrl.u32 %v2515, 7
        %v2517 = vsub.s32 %v2514, %v2516
        %v2518 = vrot.slane %v2490, %v2517
        %v2519 = vcombine.low %v2497, %v2504
        %v2520 = vcombine.low %v2511, %v2518
        %v2522 = vunpack.c.l.s4 1966171168
        %v2523 = vunpack.c.0.s8 %v2522
        %v2524 = vlaneseq
        %v2525 = vshrl.u32 %v2524, 7
        %v2526 = vsub.s32 %v2523, %v2525
        %v2527 = vrot.slane %v2519, %v2526
        %v2529 = vunpack.c.l.s4 1966171168
        %v2530 = vunpack.c.0.s8 %v2529
        %v2531 = vlaneseq
        %v2532 = vshrl.u32 %v2531, 7
        %v2533 = vsub.s32 %v2530, %v2532
        %v2534 = vrot.slane %v2520, %v2533
        %v2535 = vcombine.low %v2527, %v2534
        %v2536 = vcombine.low %v1481, %v1485
        %v2537 = vcombine.low %v1489, %v1493
        %v2538 = vcombine.low %v1497, %v1501
        %v2539 = vcombine.low %v1505, %v1509
        %v2541 = vunpack.c.l.s4 1966171168
        %v2542 = vunpack.c.0.s8 %v2541
        %v2543 = vlaneseq
        %v2544 = vshrl.u32 %v2543, 7
        %v2545 = vsub.s32 %v2542, %v2544
        %v2546 = vrot.slane %v2536, %v2545
        %v2548 = vunpack.c.l.s4 1966171168
        %v2549 = vunpack.c.0.s8 %v2548
        %v2550 = vlaneseq
        %v2551 = vshrl.u32 %v2550, 7
        %v2552 = vsub.s32 %v2549, %v2551
        %v2553 = vrot.slane %v2537, %v2552
        %v2555 = vunpack.c.l.s4 1966171168
        %v2556 = vunpack.c.0.s8 %v2555
        %v2557 = vlaneseq
        %v2558 = vshrl.u32 %v2557, 7
        %v2559 = vsub.s32 %v2556, %v2558
        %v2560 = vrot.slane %v2538, %v2559
        %v2562 = vunpack.c.l.s4 1966171168
        %v2563 = vunpack.c.0.s8 %v2562
        %v2564 = vlaneseq
        %v2565 = vshrl.u32 %v2564, 7
        %v2566 = vsub.s32 %v2563, %v2565
        %v2567 = vrot.slane %v2539, %v2566
        %v2568 = vcombine.low %v2546, %v2553
        %v2569 = vcombine.low %v2560, %v2567
        %v2571 = vunpack.c.l.s4 1966171168
        %v2572 = vunpack.c.0.s8 %v2571
        %v2573 = vlaneseq
        %v2574 = vshrl.u32 %v2573, 7
        %v2575 = vsub.s32 %v2572, %v2574
        %v2576 = vrot.slane %v2568, %v2575
        %v2578 = vunpack.c.l.s4 1966171168
        %v2579 = vunpack.c.0.s8 %v2578
        %v2580 = vlaneseq
        %v2581 = vshrl.u32 %v2580, 7
        %v2582 = vsub.s32 %v2579, %v2581
        %v2583 = vrot.slane %v2569, %v2582
        %v2584 = vcombine.low %v2576, %v2583
        %v2585 = vcombine.low %v1513, %v1517
        %v2586 = vcombine.low %v1521, %v1525
        %v2587 = vcombine.low %v1529, %v1533
        %v2588 = vcombine.low %v1537, %v1541
        %v2590 = vunpack.c.l.s4 1966171168
        %v2591 = vunpack.c.0.s8 %v2590
        %v2592 = vlaneseq
        %v2593 = vshrl.u32 %v2592, 7
        %v2594 = vsub.s32 %v2591, %v2593
        %v2595 = vrot.slane %v2585, %v2594
        %v2597 = vunpack.c.l.s4 1966171168
        %v2598 = vunpack.c.0.s8 %v2597
        %v2599 = vlaneseq
        %v2600 = vshrl.u32 %v2599, 7
        %v2601 = vsub.s32 %v2598, %v2600
        %v2602 = vrot.slane %v2586, %v2601
        %v2604 = vunpack.c.l.s4 1966171168
        %v2605 = vunpack.c.0.s8 %v2604
        %v2606 = vlaneseq
        %v2607 = vshrl.u32 %v2606, 7
        %v2608 = vsub.s32 %v2605, %v2607
        %v2609 = vrot.slane %v2587, %v2608
        %v2611 = vunpack.c.l.s4 1966171168
        %v2612 = vunpack.c.0.s8 %v2611
        %v2613 = vlaneseq
        %v2614 = vshrl.u32 %v2613, 7
        %v2615 = vsub.s32 %v2612, %v2614
        %v2616 = vrot.slane %v2588, %v2615
        %v2617 = vcombine.low %v2595, %v2602
        %v2618 = vcombine.low %v2609, %v2616
        %v2620 = vunpack.c.l.s4 1966171168
        %v2621 = vunpack.c.0.s8 %v2620
        %v2622 = vlaneseq
        %v2623 = vshrl.u32 %v2622, 7
        %v2624 = vsub.s32 %v2621, %v2623
        %v2625 = vrot.slane %v2617, %v2624
        %v2627 = vunpack.c.l.s4 1966171168
        %v2628 = vunpack.c.0.s8 %v2627
        %v2629 = vlaneseq
        %v2630 = vshrl.u32 %v2629, 7
        %v2631 = vsub.s32 %v2628, %v2630
        %v2632 = vrot.slane %v2618, %v2631
        %v2633 = vcombine.low %v2625, %v2632
        %v2634 = vcombine.low %v1545, %v1549
        %v2635 = vcombine.low %v1553, %v1557
        %v2636 = vcombine.low %v1561, %v1565
        %v2637 = vcombine.low %v1569, %v1573
        %v2639 = vunpack.c.l.s4 1966171168
        %v2640 = vunpack.c.0.s8 %v2639
        %v2641 = vlaneseq
        %v2642 = vshrl.u32 %v2641, 7
        %v2643 = vsub.s32 %v2640, %v2642
        %v2644 = vrot.slane %v2634, %v2643
        %v2646 = vunpack.c.l.s4 1966171168
        %v2647 = vunpack.c.0.s8 %v2646
        %v2648 = vlaneseq
        %v2649 = vshrl.u32 %v2648, 7
        %v2650 = vsub.s32 %v2647, %v2649
        %v2651 = vrot.slane %v2635, %v2650
        %v2653 = vunpack.c.l.s4 1966171168
        %v2654 = vunpack.c.0.s8 %v2653
        %v2655 = vlaneseq
        %v2656 = vshrl.u32 %v2655, 7
        %v2657 = vsub.s32 %v2654, %v2656
        %v2658 = vrot.slane %v2636, %v2657
        %v2660 = vunpack.c.l.s4 1966171168
        %v2661 = vunpack.c.0.s8 %v2660
        %v2662 = vlaneseq
        %v2663 = vshrl.u32 %v2662, 7
        %v2664 = vsub.s32 %v2661, %v2663
        %v2665 = vrot.slane %v2637, %v2664
        %v2666 = vcombine.low %v2644, %v2651
        %v2667 = vcombine.low %v2658, %v2665
        %v2669 = vunpack.c.l.s4 1966171168
        %v2670 = vunpack.c.0.s8 %v2669
        %v2671 = vlaneseq
        %v2672 = vshrl.u32 %v2671, 7
        %v2673 = vsub.s32 %v2670, %v2672
        %v2674 = vrot.slane %v2666, %v2673
        %v2676 = vunpack.c.l.s4 1966171168
        %v2677 = vunpack.c.0.s8 %v2676
        %v2678 = vlaneseq
        %v2679 = vshrl.u32 %v2678, 7
        %v2680 = vsub.s32 %v2677, %v2679
        %v2681 = vrot.slane %v2667, %v2680
        %v2682 = vcombine.low %v2674, %v2681
        %v2683 = vcombine.low %v1577, %v1581
        %v2684 = vcombine.low %v1585, %v1589
        %v2685 = vcombine.low %v1593, %v1597
        %v2686 = vcombine.low %v1601, %v1605
        %v2688 = vunpack.c.l.s4 1966171168
        %v2689 = vunpack.c.0.s8 %v2688
        %v2690 = vlaneseq
        %v2691 = vshrl.u32 %v2690, 7
        %v2692 = vsub.s32 %v2689, %v2691
        %v2693 = vrot.slane %v2683, %v2692
        %v2695 = vunpack.c.l.s4 1966171168
        %v2696 = vunpack.c.0.s8 %v2695
        %v2697 = vlaneseq
        %v2698 = vshrl.u32 %v2697, 7
        %v2699 = vsub.s32 %v2696, %v2698
        %v2700 = vrot.slane %v2684, %v2699
        %v2702 = vunpack.c.l.s4 1966171168
        %v2703 = vunpack.c.0.s8 %v2702
        %v2704 = vlaneseq
        %v2705 = vshrl.u32 %v2704, 7
        %v2706 = vsub.s32 %v2703, %v2705
        %v2707 = vrot.slane %v2685, %v2706
        %v2709 = vunpack.c.l.s4 1966171168
        %v2710 = vunpack.c.0.s8 %v2709
        %v2711 = vlaneseq
        %v2712 = vshrl.u32 %v2711, 7
        %v2713 = vsub.s32 %v2710, %v2712
        %v2714 = vrot.slane %v2686, %v2713
        %v2715 = vcombine.low %v2693, %v2700
        %v2716 = vcombine.low %v2707, %v2714
        %v2718 = vunpack.c.l.s4 1966171168
        %v2719 = vunpack.c.0.s8 %v2718
        %v2720 = vlaneseq
        %v2721 = vshrl.u32 %v2720, 7
        %v2722 = vsub.s32 %v2719, %v2721
        %v2723 = vrot.slane %v2715, %v2722
        %v2725 = vunpack.c.l.s4 1966171168
        %v2726 = vunpack.c.0.s8 %v2725
        %v2727 = vlaneseq
        %v2728 = vshrl.u32 %v2727, 7
        %v2729 = vsub.s32 %v2726, %v2728
        %v2730 = vrot.slane %v2716, %v2729
        %v2731 = vcombine.low %v2723, %v2730
        %v2732 = vcombine.low %v1609, %v1613
        %v2733 = vcombine.low %v1617, %v1621
        %v2734 = vcombine.low %v1625, %v1629
        %v2735 = vcombine.low %v1633, %v1637
        %v2737 = vunpack.c.l.s4 1966171168
        %v2738 = vunpack.c.0.s8 %v2737
        %v2739 = vlaneseq
        %v2740 = vshrl.u32 %v2739, 7
        %v2741 = vsub.s32 %v2738, %v2740
        %v2742 = vrot.slane %v2732, %v2741
        %v2744 = vunpack.c.l.s4 1966171168
        %v2745 = vunpack.c.0.s8 %v2744
        %v2746 = vlaneseq
        %v2747 = vshrl.u32 %v2746, 7
        %v2748 = vsub.s32 %v2745, %v2747
        %v2749 = vrot.slane %v2733, %v2748
        %v2751 = vunpack.c.l.s4 1966171168
        %v2752 = vunpack.c.0.s8 %v2751
        %v2753 = vlaneseq
        %v2754 = vshrl.u32 %v2753, 7
        %v2755 = vsub.s32 %v2752, %v2754
        %v2756 = vrot.slane %v2734, %v2755
        %v2758 = vunpack.c.l.s4 1966171168
        %v2759 = vunpack.c.0.s8 %v2758
        %v2760 = vlaneseq
        %v2761 = vshrl.u32 %v2760, 7
        %v2762 = vsub.s32 %v2759, %v2761
        %v2763 = vrot.slane %v2735, %v2762
        %v2764 = vcombine.low %v2742, %v2749
        %v2765 = vcombine.low %v2756, %v2763
        %v2767 = vunpack.c.l.s4 1966171168
        %v2768 = vunpack.c.0.s8 %v2767
        %v2769 = vlaneseq
        %v2770 = vshrl.u32 %v2769, 7
        %v2771 = vsub.s32 %v2768, %v2770
        %v2772 = vrot.slane %v2764, %v2771
        %v2774 = vunpack.c.l.s4 1966171168
        %v2775 = vunpack.c.0.s8 %v2774
        %v2776 = vlaneseq
        %v2777 = vshrl.u32 %v2776, 7
        %v2778 = vsub.s32 %v2775, %v2777
        %v2779 = vrot.slane %v2765, %v2778
        %v2780 = vcombine.low %v2772, %v2779
        %v2781 = vcombine.low %v1641, %v1645
        %v2782 = vcombine.low %v1649, %v1653
        %v2783 = vcombine.low %v1657, %v1661
        %v2784 = vcombine.low %v1665, %v1669
        %v2786 = vunpack.c.l.s4 1966171168
        %v2787 = vunpack.c.0.s8 %v2786
        %v2788 = vlaneseq
        %v2789 = vshrl.u32 %v2788, 7
        %v2790 = vsub.s32 %v2787, %v2789
        %v2791 = vrot.slane %v2781, %v2790
        %v2793 = vunpack.c.l.s4 1966171168
        %v2794 = vunpack.c.0.s8 %v2793
        %v2795 = vlaneseq
        %v2796 = vshrl.u32 %v2795, 7
        %v2797 = vsub.s32 %v2794, %v2796
        %v2798 = vrot.slane %v2782, %v2797
        %v2800 = vunpack.c.l.s4 1966171168
        %v2801 = vunpack.c.0.s8 %v2800
        %v2802 = vlaneseq
        %v2803 = vshrl.u32 %v2802, 7
        %v2804 = vsub.s32 %v2801, %v2803
        %v2805 = vrot.slane %v2783, %v2804
        %v2807 = vunpack.c.l.s4 1966171168
        %v2808 = vunpack.c.0.s8 %v2807
        %v2809 = vlaneseq
        %v2810 = vshrl.u32 %v2809, 7
        %v2811 = vsub.s32 %v2808, %v2810
        %v2812 = vrot.slane %v2784, %v2811
        %v2813 = vcombine.low %v2791, %v2798
        %v2814 = vcombine.low %v2805, %v2812
        %v2816 = vunpack.c.l.s4 1966171168
        %v2817 = vunpack.c.0.s8 %v2816
        %v2818 = vlaneseq
        %v2819 = vshrl.u32 %v2818, 7
        %v2820 = vsub.s32 %v2817, %v2819
        %v2821 = vrot.slane %v2813, %v2820
        %v2823 = vunpack.c.l.s4 1966171168
        %v2824 = vunpack.c.0.s8 %v2823
        %v2825 = vlaneseq
        %v2826 = vshrl.u32 %v2825, 7
        %v2827 = vsub.s32 %v2824, %v2826
        %v2828 = vrot.slane %v2814, %v2827
        %v2829 = vcombine.low %v2821, %v2828
        %v2830 = vcombine.low %v1673, %v1677
        %v2831 = vcombine.low %v1681, %v1685
        %v2832 = vcombine.low %v1689, %v1693
        %v2833 = vcombine.low %v1697, %v1701
        %v2835 = vunpack.c.l.s4 1966171168
        %v2836 = vunpack.c.0.s8 %v2835
        %v2837 = vlaneseq
        %v2838 = vshrl.u32 %v2837, 7
        %v2839 = vsub.s32 %v2836, %v2838
        %v2840 = vrot.slane %v2830, %v2839
        %v2842 = vunpack.c.l.s4 1966171168
        %v2843 = vunpack.c.0.s8 %v2842
        %v2844 = vlaneseq
        %v2845 = vshrl.u32 %v2844, 7
        %v2846 = vsub.s32 %v2843, %v2845
        %v2847 = vrot.slane %v2831, %v2846
        %v2849 = vunpack.c.l.s4 1966171168
        %v2850 = vunpack.c.0.s8 %v2849
        %v2851 = vlaneseq
        %v2852 = vshrl.u32 %v2851, 7
        %v2853 = vsub.s32 %v2850, %v2852
        %v2854 = vrot.slane %v2832, %v2853
        %v2856 = vunpack.c.l.s4 1966171168
        %v2857 = vunpack.c.0.s8 %v2856
        %v2858 = vlaneseq
        %v2859 = vshrl.u32 %v2858, 7
        %v2860 = vsub.s32 %v2857, %v2859
        %v2861 = vrot.slane %v2833, %v2860
        %v2862 = vcombine.low %v2840, %v2847
        %v2863 = vcombine.low %v2854, %v2861
        %v2865 = vunpack.c.l.s4 1966171168
        %v2866 = vunpack.c.0.s8 %v2865
        %v2867 = vlaneseq
        %v2868 = vshrl.u32 %v2867, 7
        %v2869 = vsub.s32 %v2866, %v2868
        %v2870 = vrot.slane %v2862, %v2869
        %v2872 = vunpack.c.l.s4 1966171168
        %v2873 = vunpack.c.0.s8 %v2872
        %v2874 = vlaneseq
        %v2875 = vshrl.u32 %v2874, 7
        %v2876 = vsub.s32 %v2873, %v2875
        %v2877 = vrot.slane %v2863, %v2876
        %v2878 = vcombine.low %v2870, %v2877
        %v2879 = vcombine.low %v1705, %v1709
        %v2880 = vcombine.low %v1713, %v1717
        %v2881 = vcombine.low %v1721, %v1725
        %v2882 = vcombine.low %v1729, %v1733
        %v2884 = vunpack.c.l.s4 1966171168
        %v2885 = vunpack.c.0.s8 %v2884
        %v2886 = vlaneseq
        %v2887 = vshrl.u32 %v2886, 7
        %v2888 = vsub.s32 %v2885, %v2887
        %v2889 = vrot.slane %v2879, %v2888
        %v2891 = vunpack.c.l.s4 1966171168
        %v2892 = vunpack.c.0.s8 %v2891
        %v2893 = vlaneseq
        %v2894 = vshrl.u32 %v2893, 7
        %v2895 = vsub.s32 %v2892, %v2894
        %v2896 = vrot.slane %v2880, %v2895
        %v2898 = vunpack.c.l.s4 1966171168
        %v2899 = vunpack.c.0.s8 %v2898
        %v2900 = vlaneseq
        %v2901 = vshrl.u32 %v2900, 7
        %v2902 = vsub.s32 %v2899, %v2901
        %v2903 = vrot.slane %v2881, %v2902
        %v2905 = vunpack.c.l.s4 1966171168
        %v2906 = vunpack.c.0.s8 %v2905
        %v2907 = vlaneseq
        %v2908 = vshrl.u32 %v2907, 7
        %v2909 = vsub.s32 %v2906, %v2908
        %v2910 = vrot.slane %v2882, %v2909
        %v2911 = vcombine.low %v2889, %v2896
        %v2912 = vcombine.low %v2903, %v2910
        %v2914 = vunpack.c.l.s4 1966171168
        %v2915 = vunpack.c.0.s8 %v2914
        %v2916 = vlaneseq
        %v2917 = vshrl.u32 %v2916, 7
        %v2918 = vsub.s32 %v2915, %v2917
        %v2919 = vrot.slane %v2911, %v2918
        %v2921 = vunpack.c.l.s4 1966171168
        %v2922 = vunpack.c.0.s8 %v2921
        %v2923 = vlaneseq
        %v2924 = vshrl.u32 %v2923, 7
        %v2925 = vsub.s32 %v2922, %v2924
        %v2926 = vrot.slane %v2912, %v2925
        %v2927 = vcombine.low %v2919, %v2926
        %v2928 = vcombine.low %v1737, %v1741
        %v2929 = vcombine.low %v1745, %v1749
        %v2930 = vcombine.low %v1753, %v1757
        %v2931 = vcombine.low %v1761, %v1765
        %v2933 = vunpack.c.l.s4 1966171168
        %v2934 = vunpack.c.0.s8 %v2933
        %v2935 = vlaneseq
        %v2936 = vshrl.u32 %v2935, 7
        %v2937 = vsub.s32 %v2934, %v2936
        %v2938 = vrot.slane %v2928, %v2937
        %v2940 = vunpack.c.l.s4 1966171168
        %v2941 = vunpack.c.0.s8 %v2940
        %v2942 = vlaneseq
        %v2943 = vshrl.u32 %v2942, 7
        %v2944 = vsub.s32 %v2941, %v2943
        %v2945 = vrot.slane %v2929, %v2944
        %v2947 = vunpack.c.l.s4 1966171168
        %v2948 = vunpack.c.0.s8 %v2947
        %v2949 = vlaneseq
        %v2950 = vshrl.u32 %v2949, 7
        %v2951 = vsub.s32 %v2948, %v2950
        %v2952 = vrot.slane %v2930, %v2951
        %v2954 = vunpack.c.l.s4 1966171168
        %v2955 = vunpack.c.0.s8 %v2954
        %v2956 = vlaneseq
        %v2957 = vshrl.u32 %v2956, 7
        %v2958 = vsub.s32 %v2955, %v2957
        %v2959 = vrot.slane %v2931, %v2958
        %v2960 = vcombine.low %v2938, %v2945
        %v2961 = vcombine.low %v2952, %v2959
        %v2963 = vunpack.c.l.s4 1966171168
        %v2964 = vunpack.c.0.s8 %v2963
        %v2965 = vlaneseq
        %v2966 = vshrl.u32 %v2965, 7
        %v2967 = vsub.s32 %v2964, %v2966
        %v2968 = vrot.slane %v2960, %v2967
        %v2970 = vunpack.c.l.s4 1966171168
        %v2971 = vunpack.c.0.s8 %v2970
        %v2972 = vlaneseq
        %v2973 = vshrl.u32 %v2972, 7
        %v2974 = vsub.s32 %v2971, %v2973
        %v2975 = vrot.slane %v2961, %v2974
        %v2976 = vcombine.low %v2968, %v2975
        %v2977 = vcombine.low %v1769, %v1773
        %v2978 = vcombine.low %v1777, %v1781
        %v2979 = vcombine.low %v1785, %v1789
        %v2980 = vcombine.low %v1793, %v1797
        %v2982 = vunpack.c.l.s4 1966171168
        %v2983 = vunpack.c.0.s8 %v2982
        %v2984 = vlaneseq
        %v2985 = vshrl.u32 %v2984, 7
        %v2986 = vsub.s32 %v2983, %v2985
        %v2987 = vrot.slane %v2977, %v2986
        %v2989 = vunpack.c.l.s4 1966171168
        %v2990 = vunpack.c.0.s8 %v2989
        %v2991 = vlaneseq
        %v2992 = vshrl.u32 %v2991, 7
        %v2993 = vsub.s32 %v2990, %v2992
        %v2994 = vrot.slane %v2978, %v2993
        %v2996 = vunpack.c.l.s4 1966171168
        %v2997 = vunpack.c.0.s8 %v2996
        %v2998 = vlaneseq
        %v2999 = vshrl.u32 %v2998, 7
        %v3000 = vsub.s32 %v2997, %v2999
        %v3001 = vrot.slane %v2979, %v3000
        %v3003 = vunpack.c.l.s4 1966171168
        %v3004 = vunpack.c.0.s8 %v3003
        %v3005 = vlaneseq
        %v3006 = vshrl.u32 %v3005, 7
        %v3007 = vsub.s32 %v3004, %v3006
        %v3008 = vrot.slane %v2980, %v3007
        %v3009 = vcombine.low %v2987, %v2994
        %v3010 = vcombine.low %v3001, %v3008
        %v3012 = vunpack.c.l.s4 1966171168
        %v3013 = vunpack.c.0.s8 %v3012
        %v3014 = vlaneseq
        %v3015 = vshrl.u32 %v3014, 7
        %v3016 = vsub.s32 %v3013, %v3015
        %v3017 = vrot.slane %v3009, %v3016
        %v3019 = vunpack.c.l.s4 1966171168
        %v3020 = vunpack.c.0.s8 %v3019
        %v3021 = vlaneseq
        %v3022 = vshrl.u32 %v3021, 7
        %v3023 = vsub.s32 %v3020, %v3022
        %v3024 = vrot.slane %v3010, %v3023
        %v3025 = vcombine.low %v3017, %v3024
        %v3026 = vcombine.low %v1801, %v1805
        %v3027 = vcombine.low %v1809, %v1813
        %v3028 = vcombine.low %v1817, %v1821
        %v3029 = vcombine.low %v1825, %v1829
        %v3031 = vunpack.c.l.s4 1966171168
        %v3032 = vunpack.c.0.s8 %v3031
        %v3033 = vlaneseq
        %v3034 = vshrl.u32 %v3033, 7
        %v3035 = vsub.s32 %v3032, %v3034
        %v3036 = vrot.slane %v3026, %v3035
        %v3038 = vunpack.c.l.s4 1966171168
        %v3039 = vunpack.c.0.s8 %v3038
        %v3040 = vlaneseq
        %v3041 = vshrl.u32 %v3040, 7
        %v3042 = vsub.s32 %v3039, %v3041
        %v3043 = vrot.slane %v3027, %v3042
        %v3045 = vunpack.c.l.s4 1966171168
        %v3046 = vunpack.c.0.s8 %v3045
        %v3047 = vlaneseq
        %v3048 = vshrl.u32 %v3047, 7
        %v3049 = vsub.s32 %v3046, %v3048
        %v3050 = vrot.slane %v3028, %v3049
        %v3052 = vunpack.c.l.s4 1966171168
        %v3053 = vunpack.c.0.s8 %v3052
        %v3054 = vlaneseq
        %v3055 = vshrl.u32 %v3054, 7
        %v3056 = vsub.s32 %v3053, %v3055
        %v3057 = vrot.slane %v3029, %v3056
        %v3058 = vcombine.low %v3036, %v3043
        %v3059 = vcombine.low %v3050, %v3057
        %v3061 = vunpack.c.l.s4 1966171168
        %v3062 = vunpack.c.0.s8 %v3061
        %v3063 = vlaneseq
        %v3064 = vshrl.u32 %v3063, 7
        %v3065 = vsub.s32 %v3062, %v3064
        %v3066 = vrot.slane %v3058, %v3065
        %v3068 = vunpack.c.l.s4 1966171168
        %v3069 = vunpack.c.0.s8 %v3068
        %v3070 = vlaneseq
        %v3071 = vshrl.u32 %v3070, 7
        %v3072 = vsub.s32 %v3069, %v3071
        %v3073 = vrot.slane %v3059, %v3072
        %v3074 = vcombine.low %v3066, %v3073
        %v3075 = vcombine.low %v1833, %v1837
        %v3076 = vcombine.low %v1841, %v1845
        %v3077 = vcombine.low %v1849, %v1853
        %v3078 = vcombine.low %v1857, %v1861
        %v3080 = vunpack.c.l.s4 1966171168
        %v3081 = vunpack.c.0.s8 %v3080
        %v3082 = vlaneseq
        %v3083 = vshrl.u32 %v3082, 7
        %v3084 = vsub.s32 %v3081, %v3083
        %v3085 = vrot.slane %v3075, %v3084
        %v3087 = vunpack.c.l.s4 1966171168
        %v3088 = vunpack.c.0.s8 %v3087
        %v3089 = vlaneseq
        %v3090 = vshrl.u32 %v3089, 7
        %v3091 = vsub.s32 %v3088, %v3090
        %v3092 = vrot.slane %v3076, %v3091
        %v3094 = vunpack.c.l.s4 1966171168
        %v3095 = vunpack.c.0.s8 %v3094
        %v3096 = vlaneseq
        %v3097 = vshrl.u32 %v3096, 7
        %v3098 = vsub.s32 %v3095, %v3097
        %v3099 = vrot.slane %v3077, %v3098
        %v3101 = vunpack.c.l.s4 1966171168
        %v3102 = vunpack.c.0.s8 %v3101
        %v3103 = vlaneseq
        %v3104 = vshrl.u32 %v3103, 7
        %v3105 = vsub.s32 %v3102, %v3104
        %v3106 = vrot.slane %v3078, %v3105
        %v3107 = vcombine.low %v3085, %v3092
        %v3108 = vcombine.low %v3099, %v3106
        %v3110 = vunpack.c.l.s4 1966171168
        %v3111 = vunpack.c.0.s8 %v3110
        %v3112 = vlaneseq
        %v3113 = vshrl.u32 %v3112, 7
        %v3114 = vsub.s32 %v3111, %v3113
        %v3115 = vrot.slane %v3107, %v3114
        %v3117 = vunpack.c.l.s4 1966171168
        %v3118 = vunpack.c.0.s8 %v3117
        %v3119 = vlaneseq
        %v3120 = vshrl.u32 %v3119, 7
        %v3121 = vsub.s32 %v3118, %v3120
        %v3122 = vrot.slane %v3108, %v3121
        %v3123 = vcombine.low %v3115, %v3122
        %v3124 = vcombine.low %v1865, %v1869
        %v3125 = vcombine.low %v1873, %v1877
        %v3126 = vcombine.low %v1881, %v1885
        %v3127 = vcombine.low %v1889, %v1893
        %v3129 = vunpack.c.l.s4 1966171168
        %v3130 = vunpack.c.0.s8 %v3129
        %v3131 = vlaneseq
        %v3132 = vshrl.u32 %v3131, 7
        %v3133 = vsub.s32 %v3130, %v3132
        %v3134 = vrot.slane %v3124, %v3133
        %v3136 = vunpack.c.l.s4 1966171168
        %v3137 = vunpack.c.0.s8 %v3136
        %v3138 = vlaneseq
        %v3139 = vshrl.u32 %v3138, 7
        %v3140 = vsub.s32 %v3137, %v3139
        %v3141 = vrot.slane %v3125, %v3140
        %v3143 = vunpack.c.l.s4 1966171168
        %v3144 = vunpack.c.0.s8 %v3143
        %v3145 = vlaneseq
        %v3146 = vshrl.u32 %v3145, 7
        %v3147 = vsub.s32 %v3144, %v3146
        %v3148 = vrot.slane %v3126, %v3147
        %v3150 = vunpack.c.l.s4 1966171168
        %v3151 = vunpack.c.0.s8 %v3150
        %v3152 = vlaneseq
        %v3153 = vshrl.u32 %v3152, 7
        %v3154 = vsub.s32 %v3151, %v3153
        %v3155 = vrot.slane %v3127, %v3154
        %v3156 = vcombine.low %v3134, %v3141
        %v3157 = vcombine.low %v3148, %v3155
        %v3159 = vunpack.c.l.s4 1966171168
        %v3160 = vunpack.c.0.s8 %v3159
        %v3161 = vlaneseq
        %v3162 = vshrl.u32 %v3161, 7
        %v3163 = vsub.s32 %v3160, %v3162
        %v3164 = vrot.slane %v3156, %v3163
        %v3166 = vunpack.c.l.s4 1966171168
        %v3167 = vunpack.c.0.s8 %v3166
        %v3168 = vlaneseq
        %v3169 = vshrl.u32 %v3168, 7
        %v3170 = vsub.s32 %v3167, %v3169
        %v3171 = vrot.slane %v3157, %v3170
        %v3172 = vcombine.low %v3164, %v3171
        %v3173 = vcombine.low %v1897, %v1901
        %v3174 = vcombine.low %v1905, %v1909
        %v3175 = vcombine.low %v1913, %v1917
        %v3176 = vcombine.low %v1921, %v1925
        %v3178 = vunpack.c.l.s4 1966171168
        %v3179 = vunpack.c.0.s8 %v3178
        %v3180 = vlaneseq
        %v3181 = vshrl.u32 %v3180, 7
        %v3182 = vsub.s32 %v3179, %v3181
        %v3183 = vrot.slane %v3173, %v3182
        %v3185 = vunpack.c.l.s4 1966171168
        %v3186 = vunpack.c.0.s8 %v3185
        %v3187 = vlaneseq
        %v3188 = vshrl.u32 %v3187, 7
        %v3189 = vsub.s32 %v3186, %v3188
        %v3190 = vrot.slane %v3174, %v3189
        %v3192 = vunpack.c.l.s4 1966171168
        %v3193 = vunpack.c.0.s8 %v3192
        %v3194 = vlaneseq
        %v3195 = vshrl.u32 %v3194, 7
        %v3196 = vsub.s32 %v3193, %v3195
        %v3197 = vrot.slane %v3175, %v3196
        %v3199 = vunpack.c.l.s4 1966171168
        %v3200 = vunpack.c.0.s8 %v3199
        %v3201 = vlaneseq
        %v3202 = vshrl.u32 %v3201, 7
        %v3203 = vsub.s32 %v3200, %v3202
        %v3204 = vrot.slane %v3176, %v3203
        %v3205 = vcombine.low %v3183, %v3190
        %v3206 = vcombine.low %v3197, %v3204
        %v3208 = vunpack.c.l.s4 1966171168
        %v3209 = vunpack.c.0.s8 %v3208
        %v3210 = vlaneseq
        %v3211 = vshrl.u32 %v3210, 7
        %v3212 = vsub.s32 %v3209, %v3211
        %v3213 = vrot.slane %v3205, %v3212
        %v3215 = vunpack.c.l.s4 1966171168
        %v3216 = vunpack.c.0.s8 %v3215
        %v3217 = vlaneseq
        %v3218 = vshrl.u32 %v3217, 7
        %v3219 = vsub.s32 %v3216, %v3218
        %v3220 = vrot.slane %v3206, %v3219
        %v3221 = vcombine.low %v3213, %v3220
        %v3222 = vcombine.low %v1929, %v1933
        %v3223 = vcombine.low %v1937, %v1941
        %v3224 = vcombine.low %v1945, %v1949
        %v3225 = vcombine.low %v1953, %v1957
        %v3227 = vunpack.c.l.s4 1966171168
        %v3228 = vunpack.c.0.s8 %v3227
        %v3229 = vlaneseq
        %v3230 = vshrl.u32 %v3229, 7
        %v3231 = vsub.s32 %v3228, %v3230
        %v3232 = vrot.slane %v3222, %v3231
        %v3234 = vunpack.c.l.s4 1966171168
        %v3235 = vunpack.c.0.s8 %v3234
        %v3236 = vlaneseq
        %v3237 = vshrl.u32 %v3236, 7
        %v3238 = vsub.s32 %v3235, %v3237
        %v3239 = vrot.slane %v3223, %v3238
        %v3241 = vunpack.c.l.s4 1966171168
        %v3242 = vunpack.c.0.s8 %v3241
        %v3243 = vlaneseq
        %v3244 = vshrl.u32 %v3243, 7
        %v3245 = vsub.s32 %v3242, %v3244
        %v3246 = vrot.slane %v3224, %v3245
        %v3248 = vunpack.c.l.s4 1966171168
        %v3249 = vunpack.c.0.s8 %v3248
        %v3250 = vlaneseq
        %v3251 = vshrl.u32 %v3250, 7
        %v3252 = vsub.s32 %v3249, %v3251
        %v3253 = vrot.slane %v3225, %v3252
        %v3254 = vcombine.low %v3232, %v3239
        %v3255 = vcombine.low %v3246, %v3253
        %v3257 = vunpack.c.l.s4 1966171168
        %v3258 = vunpack.c.0.s8 %v3257
        %v3259 = vlaneseq
        %v3260 = vshrl.u32 %v3259, 7
        %v3261 = vsub.s32 %v3258, %v3260
        %v3262 = vrot.slane %v3254, %v3261
        %v3264 = vunpack.c.l.s4 1966171168
        %v3265 = vunpack.c.0.s8 %v3264
        %v3266 = vlaneseq
        %v3267 = vshrl.u32 %v3266, 7
        %v3268 = vsub.s32 %v3265, %v3267
        %v3269 = vrot.slane %v3255, %v3268
        %v3270 = vcombine.low %v3262, %v3269
        %v3271 = vcombine.low %v1961, %v1965
        %v3272 = vcombine.low %v1969, %v1973
        %v3273 = vcombine.low %v1977, %v1981
        %v3274 = vcombine.low %v1985, %v1989
        %v3276 = vunpack.c.l.s4 1966171168
        %v3277 = vunpack.c.0.s8 %v3276
        %v3278 = vlaneseq
        %v3279 = vshrl.u32 %v3278, 7
        %v3280 = vsub.s32 %v3277, %v3279
        %v3281 = vrot.slane %v3271, %v3280
        %v3283 = vunpack.c.l.s4 1966171168
        %v3284 = vunpack.c.0.s8 %v3283
        %v3285 = vlaneseq
        %v3286 = vshrl.u32 %v3285, 7
        %v3287 = vsub.s32 %v3284, %v3286
        %v3288 = vrot.slane %v3272, %v3287
        %v3290 = vunpack.c.l.s4 1966171168
        %v3291 = vunpack.c.0.s8 %v3290
        %v3292 = vlaneseq
        %v3293 = vshrl.u32 %v3292, 7
        %v3294 = vsub.s32 %v3291, %v3293
        %v3295 = vrot.slane %v3273, %v3294
        %v3297 = vunpack.c.l.s4 1966171168
        %v3298 = vunpack.c.0.s8 %v3297
        %v3299 = vlaneseq
        %v3300 = vshrl.u32 %v3299, 7
        %v3301 = vsub.s32 %v3298, %v3300
        %v3302 = vrot.slane %v3274, %v3301
        %v3303 = vcombine.low %v3281, %v3288
        %v3304 = vcombine.low %v3295, %v3302
        %v3306 = vunpack.c.l.s4 1966171168
        %v3307 = vunpack.c.0.s8 %v3306
        %v3308 = vlaneseq
        %v3309 = vshrl.u32 %v3308, 7
        %v3310 = vsub.s32 %v3307, %v3309
        %v3311 = vrot.slane %v3303, %v3310
        %v3313 = vunpack.c.l.s4 1966171168
        %v3314 = vunpack.c.0.s8 %v3313
        %v3315 = vlaneseq
        %v3316 = vshrl.u32 %v3315, 7
        %v3317 = vsub.s32 %v3314, %v3316
        %v3318 = vrot.slane %v3304, %v3317
        %v3319 = vcombine.low %v3311, %v3318
        %v3320 = vcombine.low %v1993, %v1997
        %v3321 = vcombine.low %v2001, %v2005
        %v3322 = vcombine.low %v2009, %v2013
        %v3323 = vcombine.low %v2017, %v2021
        %v3325 = vunpack.c.l.s4 1966171168
        %v3326 = vunpack.c.0.s8 %v3325
        %v3327 = vlaneseq
        %v3328 = vshrl.u32 %v3327, 7
        %v3329 = vsub.s32 %v3326, %v3328
        %v3330 = vrot.slane %v3320, %v3329
        %v3332 = vunpack.c.l.s4 1966171168
        %v3333 = vunpack.c.0.s8 %v3332
        %v3334 = vlaneseq
        %v3335 = vshrl.u32 %v3334, 7
        %v3336 = vsub.s32 %v3333, %v3335
        %v3337 = vrot.slane %v3321, %v3336
        %v3339 = vunpack.c.l.s4 1966171168
        %v3340 = vunpack.c.0.s8 %v3339
        %v3341 = vlaneseq
        %v3342 = vshrl.u32 %v3341, 7
        %v3343 = vsub.s32 %v3340, %v3342
        %v3344 = vrot.slane %v3322, %v3343
        %v3346 = vunpack.c.l.s4 1966171168
        %v3347 = vunpack.c.0.s8 %v3346
        %v3348 = vlaneseq
        %v3349 = vshrl.u32 %v3348, 7
        %v3350 = vsub.s32 %v3347, %v3349
        %v3351 = vrot.slane %v3323, %v3350
        %v3352 = vcombine.low %v3330, %v3337
        %v3353 = vcombine.low %v3344, %v3351
        %v3355 = vunpack.c.l.s4 1966171168
        %v3356 = vunpack.c.0.s8 %v3355
        %v3357 = vlaneseq
        %v3358 = vshrl.u32 %v3357, 7
        %v3359 = vsub.s32 %v3356, %v3358
        %v3360 = vrot.slane %v3352, %v3359
        %v3362 = vunpack.c.l.s4 1966171168
        %v3363 = vunpack.c.0.s8 %v3362
        %v3364 = vlaneseq
        %v3365 = vshrl.u32 %v3364, 7
        %v3366 = vsub.s32 %v3363, %v3365
        %v3367 = vrot.slane %v3353, %v3366
        %v3368 = vcombine.low %v3360, %v3367
        %v3369 = vcombine.low %v2025, %v2029
        %v3370 = vcombine.low %v2033, %v2037
        %v3371 = vcombine.low %v2041, %v2045
        %v3372 = vcombine.low %v2049, %v2053
        %v3374 = vunpack.c.l.s4 1966171168
        %v3375 = vunpack.c.0.s8 %v3374
        %v3376 = vlaneseq
        %v3377 = vshrl.u32 %v3376, 7
        %v3378 = vsub.s32 %v3375, %v3377
        %v3379 = vrot.slane %v3369, %v3378
        %v3381 = vunpack.c.l.s4 1966171168
        %v3382 = vunpack.c.0.s8 %v3381
        %v3383 = vlaneseq
        %v3384 = vshrl.u32 %v3383, 7
        %v3385 = vsub.s32 %v3382, %v3384
        %v3386 = vrot.slane %v3370, %v3385
        %v3388 = vunpack.c.l.s4 1966171168
        %v3389 = vunpack.c.0.s8 %v3388
        %v3390 = vlaneseq
        %v3391 = vshrl.u32 %v3390, 7
        %v3392 = vsub.s32 %v3389, %v3391
        %v3393 = vrot.slane %v3371, %v3392
        %v3395 = vunpack.c.l.s4 1966171168
        %v3396 = vunpack.c.0.s8 %v3395
        %v3397 = vlaneseq
        %v3398 = vshrl.u32 %v3397, 7
        %v3399 = vsub.s32 %v3396, %v3398
        %v3400 = vrot.slane %v3372, %v3399
        %v3401 = vcombine.low %v3379, %v3386
        %v3402 = vcombine.low %v3393, %v3400
        %v3404 = vunpack.c.l.s4 1966171168
        %v3405 = vunpack.c.0.s8 %v3404
        %v3406 = vlaneseq
        %v3407 = vshrl.u32 %v3406, 7
        %v3408 = vsub.s32 %v3405, %v3407
        %v3409 = vrot.slane %v3401, %v3408
        %v3411 = vunpack.c.l.s4 1966171168
        %v3412 = vunpack.c.0.s8 %v3411
        %v3413 = vlaneseq
        %v3414 = vshrl.u32 %v3413, 7
        %v3415 = vsub.s32 %v3412, %v3414
        %v3416 = vrot.slane %v3402, %v3415
        %v3417 = vcombine.low %v3409, %v3416
        %v3418 = vcombine.low %v2057, %v2061
        %v3419 = vcombine.low %v2065, %v2069
        %v3420 = vcombine.low %v2073, %v2077
        %v3421 = vcombine.low %v2081, %v2085
        %v3423 = vunpack.c.l.s4 1966171168
        %v3424 = vunpack.c.0.s8 %v3423
        %v3425 = vlaneseq
        %v3426 = vshrl.u32 %v3425, 7
        %v3427 = vsub.s32 %v3424, %v3426
        %v3428 = vrot.slane %v3418, %v3427
        %v3430 = vunpack.c.l.s4 1966171168
        %v3431 = vunpack.c.0.s8 %v3430
        %v3432 = vlaneseq
        %v3433 = vshrl.u32 %v3432, 7
        %v3434 = vsub.s32 %v3431, %v3433
        %v3435 = vrot.slane %v3419, %v3434
        %v3437 = vunpack.c.l.s4 1966171168
        %v3438 = vunpack.c.0.s8 %v3437
        %v3439 = vlaneseq
        %v3440 = vshrl.u32 %v3439, 7
        %v3441 = vsub.s32 %v3438, %v3440
        %v3442 = vrot.slane %v3420, %v3441
        %v3444 = vunpack.c.l.s4 1966171168
        %v3445 = vunpack.c.0.s8 %v3444
        %v3446 = vlaneseq
        %v3447 = vshrl.u32 %v3446, 7
        %v3448 = vsub.s32 %v3445, %v3447
        %v3449 = vrot.slane %v3421, %v3448
        %v3450 = vcombine.low %v3428, %v3435
        %v3451 = vcombine.low %v3442, %v3449
        %v3453 = vunpack.c.l.s4 1966171168
        %v3454 = vunpack.c.0.s8 %v3453
        %v3455 = vlaneseq
        %v3456 = vshrl.u32 %v3455, 7
        %v3457 = vsub.s32 %v3454, %v3456
        %v3458 = vrot.slane %v3450, %v3457
        %v3460 = vunpack.c.l.s4 1966171168
        %v3461 = vunpack.c.0.s8 %v3460
        %v3462 = vlaneseq
        %v3463 = vshrl.u32 %v3462, 7
        %v3464 = vsub.s32 %v3461, %v3463
        %v3465 = vrot.slane %v3451, %v3464
        %v3466 = vcombine.low %v3458, %v3465
        %v3467 = vcombine.low %v2089, %v2093
        %v3468 = vcombine.low %v2097, %v2101
        %v3469 = vcombine.low %v2105, %v2109
        %v3470 = vcombine.low %v2113, %v2117
        %v3472 = vunpack.c.l.s4 1966171168
        %v3473 = vunpack.c.0.s8 %v3472
        %v3474 = vlaneseq
        %v3475 = vshrl.u32 %v3474, 7
        %v3476 = vsub.s32 %v3473, %v3475
        %v3477 = vrot.slane %v3467, %v3476
        %v3479 = vunpack.c.l.s4 1966171168
        %v3480 = vunpack.c.0.s8 %v3479
        %v3481 = vlaneseq
        %v3482 = vshrl.u32 %v3481, 7
        %v3483 = vsub.s32 %v3480, %v3482
        %v3484 = vrot.slane %v3468, %v3483
        %v3486 = vunpack.c.l.s4 1966171168
        %v3487 = vunpack.c.0.s8 %v3486
        %v3488 = vlaneseq
        %v3489 = vshrl.u32 %v3488, 7
        %v3490 = vsub.s32 %v3487, %v3489
        %v3491 = vrot.slane %v3469, %v3490
        %v3493 = vunpack.c.l.s4 1966171168
        %v3494 = vunpack.c.0.s8 %v3493
        %v3495 = vlaneseq
        %v3496 = vshrl.u32 %v3495, 7
        %v3497 = vsub.s32 %v3494, %v3496
        %v3498 = vrot.slane %v3470, %v3497
        %v3499 = vcombine.low %v3477, %v3484
        %v3500 = vcombine.low %v3491, %v3498
        %v3502 = vunpack.c.l.s4 1966171168
        %v3503 = vunpack.c.0.s8 %v3502
        %v3504 = vlaneseq
        %v3505 = vshrl.u32 %v3504, 7
        %v3506 = vsub.s32 %v3503, %v3505
        %v3507 = vrot.slane %v3499, %v3506
        %v3509 = vunpack.c.l.s4 1966171168
        %v3510 = vunpack.c.0.s8 %v3509
        %v3511 = vlaneseq
        %v3512 = vshrl.u32 %v3511, 7
        %v3513 = vsub.s32 %v3510, %v3512
        %v3514 = vrot.slane %v3500, %v3513
        %v3515 = vcombine.low %v3507, %v3514
        %v3516 = vcombine.low %v2121, %v2125
        %v3517 = vcombine.low %v2129, %v2133
        %v3518 = vcombine.low %v2137, %v2141
        %v3519 = vcombine.low %v2145, %v2149
        %v3521 = vunpack.c.l.s4 1966171168
        %v3522 = vunpack.c.0.s8 %v3521
        %v3523 = vlaneseq
        %v3524 = vshrl.u32 %v3523, 7
        %v3525 = vsub.s32 %v3522, %v3524
        %v3526 = vrot.slane %v3516, %v3525
        %v3528 = vunpack.c.l.s4 1966171168
        %v3529 = vunpack.c.0.s8 %v3528
        %v3530 = vlaneseq
        %v3531 = vshrl.u32 %v3530, 7
        %v3532 = vsub.s32 %v3529, %v3531
        %v3533 = vrot.slane %v3517, %v3532
        %v3535 = vunpack.c.l.s4 1966171168
        %v3536 = vunpack.c.0.s8 %v3535
        %v3537 = vlaneseq
        %v3538 = vshrl.u32 %v3537, 7
        %v3539 = vsub.s32 %v3536, %v3538
        %v3540 = vrot.slane %v3518, %v3539
        %v3542 = vunpack.c.l.s4 1966171168
        %v3543 = vunpack.c.0.s8 %v3542
        %v3544 = vlaneseq
        %v3545 = vshrl.u32 %v3544, 7
        %v3546 = vsub.s32 %v3543, %v3545
        %v3547 = vrot.slane %v3519, %v3546
        %v3548 = vcombine.low %v3526, %v3533
        %v3549 = vcombine.low %v3540, %v3547
        %v3551 = vunpack.c.l.s4 1966171168
        %v3552 = vunpack.c.0.s8 %v3551
        %v3553 = vlaneseq
        %v3554 = vshrl.u32 %v3553, 7
        %v3555 = vsub.s32 %v3552, %v3554
        %v3556 = vrot.slane %v3548, %v3555
        %v3558 = vunpack.c.l.s4 1966171168
        %v3559 = vunpack.c.0.s8 %v3558
        %v3560 = vlaneseq
        %v3561 = vshrl.u32 %v3560, 7
        %v3562 = vsub.s32 %v3559, %v3561
        %v3563 = vrot.slane %v3549, %v3562
        %v3564 = vcombine.low %v3556, %v3563
        %v3565 = vcombine.low %v2153, %v2157
        %v3566 = vcombine.low %v2161, %v2165
        %v3567 = vcombine.low %v2169, %v2173
        %v3568 = vcombine.low %v2177, %v2181
        %v3570 = vunpack.c.l.s4 1966171168
        %v3571 = vunpack.c.0.s8 %v3570
        %v3572 = vlaneseq
        %v3573 = vshrl.u32 %v3572, 7
        %v3574 = vsub.s32 %v3571, %v3573
        %v3575 = vrot.slane %v3565, %v3574
        %v3577 = vunpack.c.l.s4 1966171168
        %v3578 = vunpack.c.0.s8 %v3577
        %v3579 = vlaneseq
        %v3580 = vshrl.u32 %v3579, 7
        %v3581 = vsub.s32 %v3578, %v3580
        %v3582 = vrot.slane %v3566, %v3581
        %v3584 = vunpack.c.l.s4 1966171168
        %v3585 = vunpack.c.0.s8 %v3584
        %v3586 = vlaneseq
        %v3587 = vshrl.u32 %v3586, 7
        %v3588 = vsub.s32 %v3585, %v3587
        %v3589 = vrot.slane %v3567, %v3588
        %v3591 = vunpack.c.l.s4 1966171168
        %v3592 = vunpack.c.0.s8 %v3591
        %v3593 = vlaneseq
        %v3594 = vshrl.u32 %v3593, 7
        %v3595 = vsub.s32 %v3592, %v3594
        %v3596 = vrot.slane %v3568, %v3595
        %v3597 = vcombine.low %v3575, %v3582
        %v3598 = vcombine.low %v3589, %v3596
        %v3600 = vunpack.c.l.s4 1966171168
        %v3601 = vunpack.c.0.s8 %v3600
        %v3602 = vlaneseq
        %v3603 = vshrl.u32 %v3602, 7
        %v3604 = vsub.s32 %v3601, %v3603
        %v3605 = vrot.slane %v3597, %v3604
        %v3607 = vunpack.c.l.s4 1966171168
        %v3608 = vunpack.c.0.s8 %v3607
        %v3609 = vlaneseq
        %v3610 = vshrl.u32 %v3609, 7
        %v3611 = vsub.s32 %v3608, %v3610
        %v3612 = vrot.slane %v3598, %v3611
        %v3613 = vcombine.low %v3605, %v3612
        %v3614 = vcombine.low %v2185, %v2189
        %v3615 = vcombine.low %v2193, %v2197
        %v3616 = vcombine.low %v2201, %v2205
        %v3617 = vcombine.low %v2209, %v2213
        %v3619 = vunpack.c.l.s4 1966171168
        %v3620 = vunpack.c.0.s8 %v3619
        %v3621 = vlaneseq
        %v3622 = vshrl.u32 %v3621, 7
        %v3623 = vsub.s32 %v3620, %v3622
        %v3624 = vrot.slane %v3614, %v3623
        %v3626 = vunpack.c.l.s4 1966171168
        %v3627 = vunpack.c.0.s8 %v3626
        %v3628 = vlaneseq
        %v3629 = vshrl.u32 %v3628, 7
        %v3630 = vsub.s32 %v3627, %v3629
        %v3631 = vrot.slane %v3615, %v3630
        %v3633 = vunpack.c.l.s4 1966171168
        %v3634 = vunpack.c.0.s8 %v3633
        %v3635 = vlaneseq
        %v3636 = vshrl.u32 %v3635, 7
        %v3637 = vsub.s32 %v3634, %v3636
        %v3638 = vrot.slane %v3616, %v3637
        %v3640 = vunpack.c.l.s4 1966171168
        %v3641 = vunpack.c.0.s8 %v3640
        %v3642 = vlaneseq
        %v3643 = vshrl.u32 %v3642, 7
        %v3644 = vsub.s32 %v3641, %v3643
        %v3645 = vrot.slane %v3617, %v3644
        %v3646 = vcombine.low %v3624, %v3631
        %v3647 = vcombine.low %v3638, %v3645
        %v3649 = vunpack.c.l.s4 1966171168
        %v3650 = vunpack.c.0.s8 %v3649
        %v3651 = vlaneseq
        %v3652 = vshrl.u32 %v3651, 7
        %v3653 = vsub.s32 %v3650, %v3652
        %v3654 = vrot.slane %v3646, %v3653
        %v3656 = vunpack.c.l.s4 1966171168
        %v3657 = vunpack.c.0.s8 %v3656
        %v3658 = vlaneseq
        %v3659 = vshrl.u32 %v3658, 7
        %v3660 = vsub.s32 %v3657, %v3659
        %v3661 = vrot.slane %v3647, %v3660
        %v3662 = vcombine.low %v3654, %v3661
        %v3663 = vcombine.low %v2217, %v2221
        %v3664 = vcombine.low %v2225, %v2229
        %v3665 = vcombine.low %v2233, %v2237
        %v3666 = vcombine.low %v2241, %v2245
        %v3668 = vunpack.c.l.s4 1966171168
        %v3669 = vunpack.c.0.s8 %v3668
        %v3670 = vlaneseq
        %v3671 = vshrl.u32 %v3670, 7
        %v3672 = vsub.s32 %v3669, %v3671
        %v3673 = vrot.slane %v3663, %v3672
        %v3675 = vunpack.c.l.s4 1966171168
        %v3676 = vunpack.c.0.s8 %v3675
        %v3677 = vlaneseq
        %v3678 = vshrl.u32 %v3677, 7
        %v3679 = vsub.s32 %v3676, %v3678
        %v3680 = vrot.slane %v3664, %v3679
        %v3682 = vunpack.c.l.s4 1966171168
        %v3683 = vunpack.c.0.s8 %v3682
        %v3684 = vlaneseq
        %v3685 = vshrl.u32 %v3684, 7
        %v3686 = vsub.s32 %v3683, %v3685
        %v3687 = vrot.slane %v3665, %v3686
        %v3689 = vunpack.c.l.s4 1966171168
        %v3690 = vunpack.c.0.s8 %v3689
        %v3691 = vlaneseq
        %v3692 = vshrl.u32 %v3691, 7
        %v3693 = vsub.s32 %v3690, %v3692
        %v3694 = vrot.slane %v3666, %v3693
        %v3695 = vcombine.low %v3673, %v3680
        %v3696 = vcombine.low %v3687, %v3694
        %v3698 = vunpack.c.l.s4 1966171168
        %v3699 = vunpack.c.0.s8 %v3698
        %v3700 = vlaneseq
        %v3701 = vshrl.u32 %v3700, 7
        %v3702 = vsub.s32 %v3699, %v3701
        %v3703 = vrot.slane %v3695, %v3702
        %v3705 = vunpack.c.l.s4 1966171168
        %v3706 = vunpack.c.0.s8 %v3705
        %v3707 = vlaneseq
        %v3708 = vshrl.u32 %v3707, 7
        %v3709 = vsub.s32 %v3706, %v3708
        %v3710 = vrot.slane %v3696, %v3709
        %v3711 = vcombine.low %v3703, %v3710
        %v3712 = vcombine.low %v2249, %v2253
        %v3713 = vcombine.low %v2257, %v2261
        %v3714 = vcombine.low %v2265, %v2269
        %v3715 = vcombine.low %v2273, %v2277
        %v3717 = vunpack.c.l.s4 1966171168
        %v3718 = vunpack.c.0.s8 %v3717
        %v3719 = vlaneseq
        %v3720 = vshrl.u32 %v3719, 7
        %v3721 = vsub.s32 %v3718, %v3720
        %v3722 = vrot.slane %v3712, %v3721
        %v3724 = vunpack.c.l.s4 1966171168
        %v3725 = vunpack.c.0.s8 %v3724
        %v3726 = vlaneseq
        %v3727 = vshrl.u32 %v3726, 7
        %v3728 = vsub.s32 %v3725, %v3727
        %v3729 = vrot.slane %v3713, %v3728
        %v3731 = vunpack.c.l.s4 1966171168
        %v3732 = vunpack.c.0.s8 %v3731
        %v3733 = vlaneseq
        %v3734 = vshrl.u32 %v3733, 7
        %v3735 = vsub.s32 %v3732, %v3734
        %v3736 = vrot.slane %v3714, %v3735
        %v3738 = vunpack.c.l.s4 1966171168
        %v3739 = vunpack.c.0.s8 %v3738
        %v3740 = vlaneseq
        %v3741 = vshrl.u32 %v3740, 7
        %v3742 = vsub.s32 %v3739, %v3741
        %v3743 = vrot.slane %v3715, %v3742
        %v3744 = vcombine.low %v3722, %v3729
        %v3745 = vcombine.low %v3736, %v3743
        %v3747 = vunpack.c.l.s4 1966171168
        %v3748 = vunpack.c.0.s8 %v3747
        %v3749 = vlaneseq
        %v3750 = vshrl.u32 %v3749, 7
        %v3751 = vsub.s32 %v3748, %v3750
        %v3752 = vrot.slane %v3744, %v3751
        %v3754 = vunpack.c.l.s4 1966171168
        %v3755 = vunpack.c.0.s8 %v3754
        %v3756 = vlaneseq
        %v3757 = vshrl.u32 %v3756, 7
        %v3758 = vsub.s32 %v3755, %v3757
        %v3759 = vrot.slane %v3745, %v3758
        %v3760 = vcombine.low %v3752, %v3759
        %v3761 = vcombine.low %v2281, %v2285
        %v3762 = vcombine.low %v2289, %v2293
        %v3763 = vcombine.low %v2297, %v2301
        %v3764 = vcombine.low %v2305, %v2309
        %v3766 = vunpack.c.l.s4 1966171168
        %v3767 = vunpack.c.0.s8 %v3766
        %v3768 = vlaneseq
        %v3769 = vshrl.u32 %v3768, 7
        %v3770 = vsub.s32 %v3767, %v3769
        %v3771 = vrot.slane %v3761, %v3770
        %v3773 = vunpack.c.l.s4 1966171168
        %v3774 = vunpack.c.0.s8 %v3773
        %v3775 = vlaneseq
        %v3776 = vshrl.u32 %v3775, 7
        %v3777 = vsub.s32 %v3774, %v3776
        %v3778 = vrot.slane %v3762, %v3777
        %v3780 = vunpack.c.l.s4 1966171168
        %v3781 = vunpack.c.0.s8 %v3780
        %v3782 = vlaneseq
        %v3783 = vshrl.u32 %v3782, 7
        %v3784 = vsub.s32 %v3781, %v3783
        %v3785 = vrot.slane %v3763, %v3784
        %v3787 = vunpack.c.l.s4 1966171168
        %v3788 = vunpack.c.0.s8 %v3787
        %v3789 = vlaneseq
        %v3790 = vshrl.u32 %v3789, 7
        %v3791 = vsub.s32 %v3788, %v3790
        %v3792 = vrot.slane %v3764, %v3791
        %v3793 = vcombine.low %v3771, %v3778
        %v3794 = vcombine.low %v3785, %v3792
        %v3796 = vunpack.c.l.s4 1966171168
        %v3797 = vunpack.c.0.s8 %v3796
        %v3798 = vlaneseq
        %v3799 = vshrl.u32 %v3798, 7
        %v3800 = vsub.s32 %v3797, %v3799
        %v3801 = vrot.slane %v3793, %v3800
        %v3803 = vunpack.c.l.s4 1966171168
        %v3804 = vunpack.c.0.s8 %v3803
        %v3805 = vlaneseq
        %v3806 = vshrl.u32 %v3805, 7
        %v3807 = vsub.s32 %v3804, %v3806
        %v3808 = vrot.slane %v3794, %v3807
        %v3809 = vcombine.low %v3801, %v3808
        %v3810 = vcombine.low %v2313, %v2317
        %v3811 = vcombine.low %v2321, %v2325
        %v3812 = vcombine.low %v2329, %v2333
        %v3813 = vcombine.low %v2337, %v2341
        %v3815 = vunpack.c.l.s4 1966171168
        %v3816 = vunpack.c.0.s8 %v3815
        %v3817 = vlaneseq
        %v3818 = vshrl.u32 %v3817, 7
        %v3819 = vsub.s32 %v3816, %v3818
        %v3820 = vrot.slane %v3810, %v3819
        %v3822 = vunpack.c.l.s4 1966171168
        %v3823 = vunpack.c.0.s8 %v3822
        %v3824 = vlaneseq
        %v3825 = vshrl.u32 %v3824, 7
        %v3826 = vsub.s32 %v3823, %v3825
        %v3827 = vrot.slane %v3811, %v3826
        %v3829 = vunpack.c.l.s4 1966171168
        %v3830 = vunpack.c.0.s8 %v3829
        %v3831 = vlaneseq
        %v3832 = vshrl.u32 %v3831, 7
        %v3833 = vsub.s32 %v3830, %v3832
        %v3834 = vrot.slane %v3812, %v3833
        %v3836 = vunpack.c.l.s4 1966171168
        %v3837 = vunpack.c.0.s8 %v3836
        %v3838 = vlaneseq
        %v3839 = vshrl.u32 %v3838, 7
        %v3840 = vsub.s32 %v3837, %v3839
        %v3841 = vrot.slane %v3813, %v3840
        %v3842 = vcombine.low %v3820, %v3827
        %v3843 = vcombine.low %v3834, %v3841
        %v3845 = vunpack.c.l.s4 1966171168
        %v3846 = vunpack.c.0.s8 %v3845
        %v3847 = vlaneseq
        %v3848 = vshrl.u32 %v3847, 7
        %v3849 = vsub.s32 %v3846, %v3848
        %v3850 = vrot.slane %v3842, %v3849
        %v3852 = vunpack.c.l.s4 1966171168
        %v3853 = vunpack.c.0.s8 %v3852
        %v3854 = vlaneseq
        %v3855 = vshrl.u32 %v3854, 7
        %v3856 = vsub.s32 %v3853, %v3855
        %v3857 = vrot.slane %v3843, %v3856
        %v3858 = vcombine.low %v3850, %v3857
        %v3859 = vcombine.low %v2345, %v2349
        %v3860 = vcombine.low %v2353, %v2357
        %v3861 = vcombine.low %v2361, %v2365
        %v3862 = vcombine.low %v2369, %v2373
        %v3864 = vunpack.c.l.s4 1966171168
        %v3865 = vunpack.c.0.s8 %v3864
        %v3866 = vlaneseq
        %v3867 = vshrl.u32 %v3866, 7
        %v3868 = vsub.s32 %v3865, %v3867
        %v3869 = vrot.slane %v3859, %v3868
        %v3871 = vunpack.c.l.s4 1966171168
        %v3872 = vunpack.c.0.s8 %v3871
        %v3873 = vlaneseq
        %v3874 = vshrl.u32 %v3873, 7
        %v3875 = vsub.s32 %v3872, %v3874
        %v3876 = vrot.slane %v3860, %v3875
        %v3878 = vunpack.c.l.s4 1966171168
        %v3879 = vunpack.c.0.s8 %v3878
        %v3880 = vlaneseq
        %v3881 = vshrl.u32 %v3880, 7
        %v3882 = vsub.s32 %v3879, %v3881
        %v3883 = vrot.slane %v3861, %v3882
        %v3885 = vunpack.c.l.s4 1966171168
        %v3886 = vunpack.c.0.s8 %v3885
        %v3887 = vlaneseq
        %v3888 = vshrl.u32 %v3887, 7
        %v3889 = vsub.s32 %v3886, %v3888
        %v3890 = vrot.slane %v3862, %v3889
        %v3891 = vcombine.low %v3869, %v3876
        %v3892 = vcombine.low %v3883, %v3890
        %v3894 = vunpack.c.l.s4 1966171168
        %v3895 = vunpack.c.0.s8 %v3894
        %v3896 = vlaneseq
        %v3897 = vshrl.u32 %v3896, 7
        %v3898 = vsub.s32 %v3895, %v3897
        %v3899 = vrot.slane %v3891, %v3898
        %v3901 = vunpack.c.l.s4 1966171168
        %v3902 = vunpack.c.0.s8 %v3901
        %v3903 = vlaneseq
        %v3904 = vshrl.u32 %v3903, 7
        %v3905 = vsub.s32 %v3902, %v3904
        %v3906 = vrot.slane %v3892, %v3905
        %v3907 = vcombine.low %v3899, %v3906
        %v3908 = vcombine.low %v2377, %v2381
        %v3909 = vcombine.low %v2385, %v2389
        %v3910 = vcombine.low %v2393, %v2397
        %v3911 = vcombine.low %v2401, %v2405
        %v3913 = vunpack.c.l.s4 1966171168
        %v3914 = vunpack.c.0.s8 %v3913
        %v3915 = vlaneseq
        %v3916 = vshrl.u32 %v3915, 7
        %v3917 = vsub.s32 %v3914, %v3916
        %v3918 = vrot.slane %v3908, %v3917
        %v3920 = vunpack.c.l.s4 1966171168
        %v3921 = vunpack.c.0.s8 %v3920
        %v3922 = vlaneseq
        %v3923 = vshrl.u32 %v3922, 7
        %v3924 = vsub.s32 %v3921, %v3923
        %v3925 = vrot.slane %v3909, %v3924
        %v3927 = vunpack.c.l.s4 1966171168
        %v3928 = vunpack.c.0.s8 %v3927
        %v3929 = vlaneseq
        %v3930 = vshrl.u32 %v3929, 7
        %v3931 = vsub.s32 %v3928, %v3930
        %v3932 = vrot.slane %v3910, %v3931
        %v3934 = vunpack.c.l.s4 1966171168
        %v3935 = vunpack.c.0.s8 %v3934
        %v3936 = vlaneseq
        %v3937 = vshrl.u32 %v3936, 7
        %v3938 = vsub.s32 %v3935, %v3937
        %v3939 = vrot.slane %v3911, %v3938
        %v3940 = vcombine.low %v3918, %v3925
        %v3941 = vcombine.low %v3932, %v3939
        %v3943 = vunpack.c.l.s4 1966171168
        %v3944 = vunpack.c.0.s8 %v3943
        %v3945 = vlaneseq
        %v3946 = vshrl.u32 %v3945, 7
        %v3947 = vsub.s32 %v3944, %v3946
        %v3948 = vrot.slane %v3940, %v3947
        %v3950 = vunpack.c.l.s4 1966171168
        %v3951 = vunpack.c.0.s8 %v3950
        %v3952 = vlaneseq
        %v3953 = vshrl.u32 %v3952, 7
        %v3954 = vsub.s32 %v3951, %v3953
        %v3955 = vrot.slane %v3941, %v3954
        %v3956 = vcombine.low %v3948, %v3955
        %v3957 = vcombine.low %v2409, %v2413
        %v3958 = vcombine.low %v2417, %v2421
        %v3959 = vcombine.low %v2425, %v2429
        %v3960 = vcombine.low %v2433, %v2437
        %v3962 = vunpack.c.l.s4 1966171168
        %v3963 = vunpack.c.0.s8 %v3962
        %v3964 = vlaneseq
        %v3965 = vshrl.u32 %v3964, 7
        %v3966 = vsub.s32 %v3963, %v3965
        %v3967 = vrot.slane %v3957, %v3966
        %v3969 = vunpack.c.l.s4 1966171168
        %v3970 = vunpack.c.0.s8 %v3969
        %v3971 = vlaneseq
        %v3972 = vshrl.u32 %v3971, 7
        %v3973 = vsub.s32 %v3970, %v3972
        %v3974 = vrot.slane %v3958, %v3973
        %v3976 = vunpack.c.l.s4 1966171168
        %v3977 = vunpack.c.0.s8 %v3976
        %v3978 = vlaneseq
        %v3979 = vshrl.u32 %v3978, 7
        %v3980 = vsub.s32 %v3977, %v3979
        %v3981 = vrot.slane %v3959, %v3980
        %v3983 = vunpack.c.l.s4 1966171168
        %v3984 = vunpack.c.0.s8 %v3983
        %v3985 = vlaneseq
        %v3986 = vshrl.u32 %v3985, 7
        %v3987 = vsub.s32 %v3984, %v3986
        %v3988 = vrot.slane %v3960, %v3987
        %v3989 = vcombine.low %v3967, %v3974
        %v3990 = vcombine.low %v3981, %v3988
        %v3992 = vunpack.c.l.s4 1966171168
        %v3993 = vunpack.c.0.s8 %v3992
        %v3994 = vlaneseq
        %v3995 = vshrl.u32 %v3994, 7
        %v3996 = vsub.s32 %v3993, %v3995
        %v3997 = vrot.slane %v3989, %v3996
        %v3999 = vunpack.c.l.s4 1966171168
        %v4000 = vunpack.c.0.s8 %v3999
        %v4001 = vlaneseq
        %v4002 = vshrl.u32 %v4001, 7
        %v4003 = vsub.s32 %v4000, %v4002
        %v4004 = vrot.slane %v3990, %v4003
        %v4005 = vcombine.low %v3997, %v4004
        %4006 = vset.pattern.permute.xlu0 0
        %4007 = vperm.xlu0 %4006, %v2486
        %v4008 = vpop.permute.xlu0 %4007
        %4009 = vset.pattern.permute.xlu0 0
        %4010 = vperm.xlu0 %4009, %v2535
        %v4011 = vpop.permute.xlu0 %4010
        %4012 = vset.pattern.permute.xlu0 0
        %4013 = vperm.xlu0 %4012, %v2584
        %v4014 = vpop.permute.xlu0 %4013
        %4015 = vset.pattern.permute.xlu0 0
        %4016 = vperm.xlu0 %4015, %v2633
        %v4017 = vpop.permute.xlu0 %4016
        %4018 = vset.pattern.permute.xlu0 0
        %4019 = vperm.xlu0 %4018, %v2682
        %v4020 = vpop.permute.xlu0 %4019
        %4021 = vset.pattern.permute.xlu0 0
        %4022 = vperm.xlu0 %4021, %v2731
        %v4023 = vpop.permute.xlu0 %4022
        %4024 = vset.pattern.permute.xlu0 0
        %4025 = vperm.xlu0 %4024, %v2780
        %v4026 = vpop.permute.xlu0 %4025
        %4027 = vset.pattern.permute.xlu0 0
        %4028 = vperm.xlu0 %4027, %v2829
        %v4029 = vpop.permute.xlu0 %4028
        %4030 = vset.pattern.permute.xlu0 0
        %4031 = vperm.xlu0 %4030, %v2878
        %v4032 = vpop.permute.xlu0 %4031
        %4033 = vset.pattern.permute.xlu0 0
        %4034 = vperm.xlu0 %4033, %v2927
        %v4035 = vpop.permute.xlu0 %4034
        %4036 = vset.pattern.permute.xlu0 0
        %4037 = vperm.xlu0 %4036, %v2976
        %v4038 = vpop.permute.xlu0 %4037
        %4039 = vset.pattern.permute.xlu0 0
        %4040 = vperm.xlu0 %4039, %v3025
        %v4041 = vpop.permute.xlu0 %4040
        %4042 = vset.pattern.permute.xlu0 0
        %4043 = vperm.xlu0 %4042, %v3074
        %v4044 = vpop.permute.xlu0 %4043
        %4045 = vset.pattern.permute.xlu0 0
        %4046 = vperm.xlu0 %4045, %v3123
        %v4047 = vpop.permute.xlu0 %4046
        %4048 = vset.pattern.permute.xlu0 0
        %4049 = vperm.xlu0 %4048, %v3172
        %v4050 = vpop.permute.xlu0 %4049
        %4051 = vset.pattern.permute.xlu0 0
        %4052 = vperm.xlu0 %4051, %v3221
        %v4053 = vpop.permute.xlu0 %4052
        %4054 = vset.pattern.permute.xlu0 0
        %4055 = vperm.xlu0 %4054, %v3270
        %v4056 = vpop.permute.xlu0 %4055
        %4057 = vset.pattern.permute.xlu0 0
        %4058 = vperm.xlu0 %4057, %v3319
        %v4059 = vpop.permute.xlu0 %4058
        %4060 = vset.pattern.permute.xlu0 0
        %4061 = vperm.xlu0 %4060, %v3368
        %v4062 = vpop.permute.xlu0 %4061
        %4063 = vset.pattern.permute.xlu0 0
        %4064 = vperm.xlu0 %4063, %v3417
        %v4065 = vpop.permute.xlu0 %4064
        %4066 = vset.pattern.permute.xlu0 0
        %4067 = vperm.xlu0 %4066, %v3466
        %v4068 = vpop.permute.xlu0 %4067
        %4069 = vset.pattern.permute.xlu0 0
        %4070 = vperm.xlu0 %4069, %v3515
        %v4071 = vpop.permute.xlu0 %4070
        %4072 = vset.pattern.permute.xlu0 0
        %4073 = vperm.xlu0 %4072, %v3564
        %v4074 = vpop.permute.xlu0 %4073
        %4075 = vset.pattern.permute.xlu0 0
        %4076 = vperm.xlu0 %4075, %v3613
        %v4077 = vpop.permute.xlu0 %4076
        %4078 = vset.pattern.permute.xlu0 0
        %4079 = vperm.xlu0 %4078, %v3662
        %v4080 = vpop.permute.xlu0 %4079
        %4081 = vset.pattern.permute.xlu0 0
        %4082 = vperm.xlu0 %4081, %v3711
        %v4083 = vpop.permute.xlu0 %4082
        %4084 = vset.pattern.permute.xlu0 0
        %4085 = vperm.xlu0 %4084, %v3760
        %v4086 = vpop.permute.xlu0 %4085
        %4087 = vset.pattern.permute.xlu0 0
        %4088 = vperm.xlu0 %4087, %v3809
        %v4089 = vpop.permute.xlu0 %4088
        %4090 = vset.pattern.permute.xlu0 0
        %4091 = vperm.xlu0 %4090, %v3858
        %v4092 = vpop.permute.xlu0 %4091
        %4093 = vset.pattern.permute.xlu0 0
        %4094 = vperm.xlu0 %4093, %v3907
        %v4095 = vpop.permute.xlu0 %4094
        %4096 = vset.pattern.permute.xlu0 0
        %4097 = vperm.xlu0 %4096, %v3956
        %v4098 = vpop.permute.xlu0 %4097
        %4099 = vset.pattern.permute.xlu0 0
        %4100 = vperm.xlu0 %4099, %v4005
        %v4101 = vpop.permute.xlu0 %4100
        %v4102 = vlaneseq
        %v4103 = vand.u32 %v4102, 127
        %v4104 = vlaneseq
        %v4105 = vshrl.u32 %v4104, 7
        %v4106 = vsub.s32 %v4103, %v4105
        %v4107 = vrot.slane %v4008, %v4106
        %v4108 = vadd.s32 %v4103, 4294967288
        %v4109 = vlaneseq
        %v4110 = vshrl.u32 %v4109, 7
        %v4111 = vsub.s32 %v4108, %v4110
        %v4112 = vrot.slane %v4011, %v4111
        %vm4113 = vcmask 130112
        %v4114 = vsel %vm4113, %v4112, %v4107
        %v4115 = vadd.s32 %v4103, 4294967280
        %v4116 = vlaneseq
        %v4117 = vshrl.u32 %v4116, 7
        %v4118 = vsub.s32 %v4115, %v4117
        %v4119 = vrot.slane %v4014, %v4118
        %vm4120 = vcmask 195712
        %v4121 = vsel %vm4120, %v4119, %v4114
        %v4122 = vadd.s32 %v4103, 4294967272
        %v4123 = vlaneseq
        %v4124 = vshrl.u32 %v4123, 7
        %v4125 = vsub.s32 %v4122, %v4124
        %v4126 = vrot.slane %v4017, %v4125
        %vm4127 = vcmask 261312
        %v4128 = vsel %vm4127, %v4126, %v4121
        %v4129 = vadd.s32 %v4103, 4294967264
        %v4130 = vlaneseq
        %v4131 = vshrl.u32 %v4130, 7
        %v4132 = vsub.s32 %v4129, %v4131
        %v4133 = vrot.slane %v4020, %v4132
        %vm4134 = vcmask 326912
        %v4135 = vsel %vm4134, %v4133, %v4128
        %v4136 = vadd.s32 %v4103, 4294967256
        %v4137 = vlaneseq
        %v4138 = vshrl.u32 %v4137, 7
        %v4139 = vsub.s32 %v4136, %v4138
        %v4140 = vrot.slane %v4023, %v4139
        %vm4141 = vcmask 392512
        %v4142 = vsel %vm4141, %v4140, %v4135
        %v4143 = vadd.s32 %v4103, 4294967248
        %v4144 = vlaneseq
        %v4145 = vshrl.u32 %v4144, 7
        %v4146 = vsub.s32 %v4143, %v4145
        %v4147 = vrot.slane %v4026, %v4146
        %vm4148 = vcmask 458112
        %v4149 = vsel %vm4148, %v4147, %v4142
        %v4150 = vadd.s32 %v4103, 4294967240
        %v4151 = vlaneseq
        %v4152 = vshrl.u32 %v4151, 7
        %v4153 = vsub.s32 %v4150, %v4152
        %v4154 = vrot.slane %v4029, %v4153
        %vm4155 = vcmask 523712
        %v4156 = vsel %vm4155, %v4154, %v4149
        %v4157 = vadd.s32 %v4103, 4294967232
        %v4158 = vlaneseq
        %v4159 = vshrl.u32 %v4158, 7
        %v4160 = vsub.s32 %v4157, %v4159
        %v4161 = vrot.slane %v4032, %v4160
        %vm4162 = vcmask 589312
        %v4163 = vsel %vm4162, %v4161, %v4156
        %v4164 = vadd.s32 %v4103, 4294967224
        %v4165 = vlaneseq
        %v4166 = vshrl.u32 %v4165, 7
        %v4167 = vsub.s32 %v4164, %v4166
        %v4168 = vrot.slane %v4035, %v4167
        %vm4169 = vcmask 654912
        %v4170 = vsel %vm4169, %v4168, %v4163
        %v4171 = vadd.s32 %v4103, 4294967216
        %v4172 = vlaneseq
        %v4173 = vshrl.u32 %v4172, 7
        %v4174 = vsub.s32 %v4171, %v4173
        %v4175 = vrot.slane %v4038, %v4174
        %vm4176 = vcmask 720512
        %v4177 = vsel %vm4176, %v4175, %v4170
        %v4178 = vadd.s32 %v4103, 4294967208
        %v4179 = vlaneseq
        %v4180 = vshrl.u32 %v4179, 7
        %v4181 = vsub.s32 %v4178, %v4180
        %v4182 = vrot.slane %v4041, %v4181
        %vm4183 = vcmask 786112
        %v4184 = vsel %vm4183, %v4182, %v4177
        %v4185 = vadd.s32 %v4103, 4294967200
        %v4186 = vlaneseq
        %v4187 = vshrl.u32 %v4186, 7
        %v4188 = vsub.s32 %v4185, %v4187
        %v4189 = vrot.slane %v4044, %v4188
        %vm4190 = vcmask 851712
        %v4191 = vsel %vm4190, %v4189, %v4184
        %v4192 = vadd.s32 %v4103, 4294967192
        %v4193 = vlaneseq
        %v4194 = vshrl.u32 %v4193, 7
        %v4195 = vsub.s32 %v4192, %v4194
        %v4196 = vrot.slane %v4047, %v4195
        %vm4197 = vcmask 917312
        %v4198 = vsel %vm4197, %v4196, %v4191
        %v4199 = vadd.s32 %v4103, 4294967184
        %v4200 = vlaneseq
        %v4201 = vshrl.u32 %v4200, 7
        %v4202 = vsub.s32 %v4199, %v4201
        %v4203 = vrot.slane %v4050, %v4202
        %vm4204 = vcmask 982912
        %v4205 = vsel %vm4204, %v4203, %v4198
        %v4206 = vadd.s32 %v4103, 4294967176
        %v4207 = vlaneseq
        %v4208 = vshrl.u32 %v4207, 7
        %v4209 = vsub.s32 %v4206, %v4208
        %v4210 = vrot.slane %v4053, %v4209
        %vm4211 = vcmask 1048512
        %v4212 = vsel %vm4211, %v4210, %v4205
        %v4213 = vlaneseq
        %v4214 = vshrl.u32 %v4213, 7
        %v4215 = vsub.s32 %v4103, %v4214
        %v4216 = vrot.slane %v4056, %v4215
        %v4217 = vlaneseq
        %v4218 = vshrl.u32 %v4217, 7
        %v4219 = vsub.s32 %v4108, %v4218
        %v4220 = vrot.slane %v4059, %v4219
        %v4221 = vsel %vm4113, %v4220, %v4216
        %v4222 = vlaneseq
        %v4223 = vshrl.u32 %v4222, 7
        %v4224 = vsub.s32 %v4115, %v4223
        %v4225 = vrot.slane %v4062, %v4224
        %v4226 = vsel %vm4120, %v4225, %v4221
        %v4227 = vlaneseq
        %v4228 = vshrl.u32 %v4227, 7
        %v4229 = vsub.s32 %v4122, %v4228
        %v4230 = vrot.slane %v4065, %v4229
        %v4231 = vsel %vm4127, %v4230, %v4226
        %v4232 = vlaneseq
        %v4233 = vshrl.u32 %v4232, 7
        %v4234 = vsub.s32 %v4129, %v4233
        %v4235 = vrot.slane %v4068, %v4234
        %v4236 = vsel %vm4134, %v4235, %v4231
        %v4237 = vlaneseq
        %v4238 = vshrl.u32 %v4237, 7
        %v4239 = vsub.s32 %v4136, %v4238
        %v4240 = vrot.slane %v4071, %v4239
        %v4241 = vsel %vm4141, %v4240, %v4236
        %v4242 = vlaneseq
        %v4243 = vshrl.u32 %v4242, 7
        %v4244 = vsub.s32 %v4143, %v4243
        %v4245 = vrot.slane %v4074, %v4244
        %v4246 = vsel %vm4148, %v4245, %v4241
        %v4247 = vlaneseq
        %v4248 = vshrl.u32 %v4247, 7
        %v4249 = vsub.s32 %v4150, %v4248
        %v4250 = vrot.slane %v4077, %v4249
        %v4251 = vsel %vm4155, %v4250, %v4246
        %v4252 = vlaneseq
        %v4253 = vshrl.u32 %v4252, 7
        %v4254 = vsub.s32 %v4157, %v4253
        %v4255 = vrot.slane %v4080, %v4254
        %v4256 = vsel %vm4162, %v4255, %v4251
        %v4257 = vlaneseq
        %v4258 = vshrl.u32 %v4257, 7
        %v4259 = vsub.s32 %v4164, %v4258
        %v4260 = vrot.slane %v4083, %v4259
        %v4261 = vsel %vm4169, %v4260, %v4256
        %v4262 = vlaneseq
        %v4263 = vshrl.u32 %v4262, 7
        %v4264 = vsub.s32 %v4171, %v4263
        %v4265 = vrot.slane %v4086, %v4264
        %v4266 = vsel %vm4176, %v4265, %v4261
        %v4267 = vlaneseq
        %v4268 = vshrl.u32 %v4267, 7
        %v4269 = vsub.s32 %v4178, %v4268
        %v4270 = vrot.slane %v4089, %v4269
        %v4271 = vsel %vm4183, %v4270, %v4266
        %v4272 = vlaneseq
        %v4273 = vshrl.u32 %v4272, 7
        %v4274 = vsub.s32 %v4185, %v4273
        %v4275 = vrot.slane %v4092, %v4274
        %v4276 = vsel %vm4190, %v4275, %v4271
        %v4277 = vlaneseq
        %v4278 = vshrl.u32 %v4277, 7
        %v4279 = vsub.s32 %v4192, %v4278
        %v4280 = vrot.slane %v4095, %v4279
        %v4281 = vsel %vm4197, %v4280, %v4276
        %v4282 = vlaneseq
        %v4283 = vshrl.u32 %v4282, 7
        %v4284 = vsub.s32 %v4199, %v4283
        %v4285 = vrot.slane %v4098, %v4284
        %v4286 = vsel %vm4204, %v4285, %v4281
        %v4287 = vlaneseq
        %v4288 = vshrl.u32 %v4287, 7
        %v4289 = vsub.s32 %v4206, %v4288
        %v4290 = vrot.slane %v4101, %v4289
        %v4291 = vsel %vm4211, %v4290, %v4286
        %v4292 = vcombine.low %v4212, %v4291
        %v4294 = vunpack.c.l.s4 1966171168
        %v4295 = vunpack.c.0.s8 %v4294
        %v4296 = vlaneseq
        %v4297 = vshrl.u32 %v4296, 7
        %v4298 = vsub.s32 %v4295, %v4297
        %v4299 = vrot.slane %v4292, %v4298
        %v4301 = vunpack.c.l.s4 1966171168
        %v4302 = vunpack.c.0.s8 %v4301
        %v4303 = vlaneseq
        %v4304 = vshrl.u32 %v4303, 7
        %v4305 = vsub.s32 %v4302, %v4304
        %v4306 = vrot.slane %v4299, %v4305
        %v4308 = vlaneseq
        %vm4309 = vcmp.ge.s32.totalorder %v4308, 0
        %vm4310 = vcmp.lt.s32.totalorder %v4308, 256
        %vm4311 = vmand %vm4309, %vm4310
        %4312 = vst.msk [vmem:[%s328] sm:$0x3] %vm4311, %v4306
        %s4313 = sand.u32 %s187, 1
        %s4314 = scalar_lea.sflag [#allocation5], %s4313
        %s4315 = sand.u32 %s187, 1
        %s4316 = smul.addr %s4315, 2
        %s4317 = scalar_lea.vmem [#allocation9], %s4316
        // Predicated region
        $region61: #{tpu_custom_call.1} parent=47 // pred_check
          %p4318 = pneg %p197
        $region62: #{tpu_custom_call.1} parent=47 // pred_check_branch
          %4320 = sbr.rel (%p4318) target = $region64
        $region63: #{tpu_custom_call.1} parent=47 // pred_region
          %s4321 = smul.u32 2, %s27
          %s4323 = ssub.s32 32, 32
          %4324 = vsyncadd %s4314, %s4323
          %s4325 = smul.addr %s4321, 16
          %s4326 = scalar_lea.hbm %s7, %s4325
          %s4328 = sshll.u32 %s4317, 4
          %s4329 = int_to_ptr.vmem [resolvable:$true] %s4328
          %4331 = dma.vmem_to_hbm [thread:$0]  %s4329, 32, %s4326, %s4314
        $region64: #{tpu_custom_call.1} parent=47 // pred_fallthru
          _
      $region48: #{tpu_custom_call.1} parent=5 // pred_fallthru
        _
      %p4332 = scmp.le.s32.totalorder 2, %s22
      // Predicated region
      $region65: #{tpu_custom_call.1} parent=5 // pred_check
        %p4333 = pneg %p4332
      $region66: #{tpu_custom_call.1} parent=5 // pred_check_branch
        %4335 = sbr.rel (%p4333) target = $region68
      $region67: #{tpu_custom_call.1} parent=5 // pred_region
        %s4336 = ssub.s32 %s22, 2
        // Predicated region
        $region69: #{tpu_custom_call.1} parent=67 // pred_check
          %p4337 = pneg %p203
        $region70: #{tpu_custom_call.1} parent=67 // pred_check_branch
          %4339 = sbr.rel (%p4337) target = $region72
        $region71: #{tpu_custom_call.1} parent=67 // pred_region
          %s4340 = sand.u32 %s188, 1
          %s4341 = scalar_lea.sflag [#allocation5], %s4340
          %s4342 = sand.u32 %s188, 1
          %s4343 = smul.addr %s4342, 2
          %s4344 = scalar_lea.vmem [#allocation9], %s4343
          %4345 = dma.done %s4341, 32
        $region72: #{tpu_custom_call.1} parent=67 // pred_fallthru
          _
      $region68: #{tpu_custom_call.1} parent=5 // pred_fallthru
        _
    $region6: #{tpu_custom_call.1} parent=1 // loop_footer
      %s26 = sadd.s32 1, %s22
    $region7: #{tpu_custom_call.1} parent=1 // loop_footer_branch
      %21 = sbr.rel target = $region3
    $region8: #{tpu_custom_call.1} parent=1 // loop_exit
      _
    %4346 = vsyncpa [#allocation4], 1
    %s4347 = scalar_lea.sflag [#allocation4], 1
    %4348 = vsyncpa %s4347, 1
    %4349 = vsyncpa [#allocation7], 1
    %4350 = vsyncpa [#allocation5], 1
    %s4351 = scalar_lea.sflag [#allocation5], 1
    %4352 = vsyncpa %s4351, 1

</llo_original>
